<compile_context>
chip_gen: v7x
topology: tpu7x:2x2x1
jax: 0.10.0
libtpu: 0.0.40
codegen_flags: <defaults>
</compile_context>

<pallas_src>
import functools

import jax
import jax.numpy as jnp
from jax.experimental import pallas as pl
from jax.experimental.pallas import tpu as pltpu


# ----------------------------- Pallas kernels ------------------------------

def _matmul_bias_kernel(x_ref, w_ref, b_ref, o_ref):
    # o = x @ w + b   (fused ActNorm + InvConv + in_norm via folded w/b)
    o_ref[...] = jnp.dot(x_ref[...], w_ref[...],
                         preferred_element_type=jnp.float32) + b_ref[...]


def _nn_in_mid_kernel(kin_ref, xc_ref, w1_ref, b1_ref, w2h_ref, w2c_ref,
                      b2_ref, o_ref):
    # h1 = relu(bn_mid(conv3x3([bn(x_id)|xc1|xc2])))   (BN folded into w1/b1)
    # h2 = relu(bn_out(conv1x1(h1) + conv1x1([xc1|xc2])))  (BN folded in)
    h1 = jnp.dot(kin_ref[...], w1_ref[...],
                 preferred_element_type=jnp.float32) + b1_ref[...]
    h1 = jnp.maximum(h1, 0.0)
    h2 = (jnp.dot(h1.astype(w2h_ref.dtype), w2h_ref[...],
                  preferred_element_type=jnp.float32)
          + jnp.dot(xc_ref[...], w2c_ref[...],
                    preferred_element_type=jnp.float32)
          + b2_ref[...])
    o_ref[...] = jnp.maximum(h2, 0.0).astype(o_ref.dtype)


def _out_coupling_kernel(kout_ref, xc_ref, w_ref, b_ref, scale_ref,
                         o_ref, ldj_ref, *, half):
    # st = conv3x3(h2) + bias   (columns pre-permuted: [s cols | t cols])
    # s = scale * tanh(s_raw);  x_change = (x_change + t) * exp(s)
    # ldj_row = sum_c s  (per-pixel; per-sample reduction done outside)
    st = jnp.dot(kout_ref[...], w_ref[...],
                 preferred_element_type=jnp.float32) + b_ref[...]
    s_raw = st[:, :half]
    t = st[:, half:]
    s = scale_ref[...] * jnp.tanh(s_raw)
    o_ref[...] = (xc_ref[...] + t) * jnp.exp(s)
    ldj_ref[...] = jnp.sum(s, axis=-1, keepdims=True)


# ----------------------------- Pallas wrappers ------------------------------

_PARALLEL = pltpu.CompilerParams(dimension_semantics=("parallel",))


def _pick_tm(m):
    for t in (1024, 512, 256, 128, 64, 32, 16, 8):
        if m % t == 0:
            return t
    return m


def pallas_matmul_bias(x, w, b):
    m, k = x.shape
    n = w.shape[1]
    tm = _pick_tm(m)
    return pl.pallas_call(
        _matmul_bias_kernel,
        out_shape=jax.ShapeDtypeStruct((m, n), jnp.float32),
        grid=(m // tm,),
        in_specs=[pl.BlockSpec((tm, k), lambda i: (i, 0)),
                  pl.BlockSpec((k, n), lambda i: (0, 0)),
                  pl.BlockSpec((1, n), lambda i: (0, 0))],
        out_specs=pl.BlockSpec((tm, n), lambda i: (i, 0)),
        compiler_params=_PARALLEL,
    )(x, w, b.reshape(1, n))


def pallas_nn_in_mid(k_in, xc12, w1, b1, w2h, w2c, b2):
    m, k1 = k_in.shape
    kc = xc12.shape[1]
    mid = w1.shape[1]
    tm = _pick_tm(m)
    return pl.pallas_call(
        _nn_in_mid_kernel,
        out_shape=jax.ShapeDtypeStruct((m, mid), jnp.bfloat16),
        grid=(m // tm,),
        in_specs=[pl.BlockSpec((tm, k1), lambda i: (i, 0)),
                  pl.BlockSpec((tm, kc), lambda i: (i, 0)),
                  pl.BlockSpec((k1, mid), lambda i: (0, 0)),
                  pl.BlockSpec((1, mid), lambda i: (0, 0)),
                  pl.BlockSpec((mid, mid), lambda i: (0, 0)),
                  pl.BlockSpec((kc, mid), lambda i: (0, 0)),
                  pl.BlockSpec((1, mid), lambda i: (0, 0))],
        out_specs=pl.BlockSpec((tm, mid), lambda i: (i, 0)),
        compiler_params=_PARALLEL,
    )(k_in, xc12, w1, b1.reshape(1, mid), w2h, w2c, b2.reshape(1, mid))


def pallas_out_coupling(k_out, x_change, w_out, b_out, coup_scale, half):
    m, kk = k_out.shape
    tm = _pick_tm(m)
    return pl.pallas_call(
        functools.partial(_out_coupling_kernel, half=half),
        out_shape=(jax.ShapeDtypeStruct((m, half), jnp.float32),
                   jax.ShapeDtypeStruct((m, 1), jnp.float32)),
        grid=(m // tm,),
        in_specs=[pl.BlockSpec((tm, kk), lambda i: (i, 0)),
                  pl.BlockSpec((tm, half), lambda i: (i, 0)),
                  pl.BlockSpec((kk, 2 * half), lambda i: (0, 0)),
                  pl.BlockSpec((1, 2 * half), lambda i: (0, 0)),
                  pl.BlockSpec((1, half), lambda i: (0, 0))],
        out_specs=(pl.BlockSpec((tm, half), lambda i: (i, 0)),
                   pl.BlockSpec((tm, 1), lambda i: (i, 0))),
        compiler_params=_PARALLEL,
    )(k_out, x_change, w_out, b_out.reshape(1, 2 * half),
      coup_scale.reshape(1, half))


# ------------------------------- JAX glue -----------------------------------

def im2col3x3(x):
    """x: (N,H,W,C), zero pad 1 -> (N*H*W, 9*C); column order (ky, kx, c)."""
    n, h, w, c = x.shape
    xp = jnp.pad(x, ((0, 0), (1, 1), (1, 1), (0, 0)))
    cols = []
    for ky in range(3):
        for kx in range(3):
            cols.append(xp[:, ky:ky + h, kx:kx + w, :])
    return jnp.concatenate(cols, axis=-1).reshape(n * h * w, 9 * c)


def w3x3_mat(w):
    """PyTorch (Cout,Cin,3,3) -> (9*Cin, Cout), matching im2col3x3 order."""
    cout = w.shape[0]
    return jnp.transpose(w, (2, 3, 1, 0)).reshape(-1, cout)


def w1x1_mat(w):
    return w[:, :, 0, 0].T


def _bn_fold(bn):
    g, b, m, v = bn
    s = g / jnp.sqrt(v + 1e-5)
    return s, b - m * s


def flow_step_forward(x_nchw, xc1_nchw, xc2_nchw, sldj, p):
    n, c, h, w = x_nchw.shape
    half = c // 2
    m = n * h * w
    bf16 = jnp.bfloat16

    x = jnp.transpose(x_nchw, (0, 2, 3, 1))
    xc1 = jnp.transpose(xc1_nchw, (0, 2, 3, 1))
    xc2 = jnp.transpose(xc2_nchw, (0, 2, 3, 1))

    # ---- ActNorm + InvConv + in_norm folded into one matmul ----
    e = jnp.exp(p['an_logs'])
    wf = e[:, None] * p['inv_w'].T                       # diag(e) @ W^T
    bfold = (p['an_bias'] * e) @ p['inv_w'].T            # (bias*e) @ W^T
    s0, t0 = _bn_fold(p['in_norm'])
    # extra columns produce bn(x_id) directly (feeds the coupling NN)
    w_ext = jnp.concatenate([wf, wf[:, half:] * s0[None, :]], axis=1)
    b_ext = jnp.concatenate([bfold, bfold[half:] * s0 + t0])

    y_ext = pallas_matmul_bias(x.reshape(m, c), w_ext, b_ext)
    x_change = y_ext[:, :half]
    x_id = y_ext[:, half:c]
    x_id_bn = y_ext[:, c:]

    sldj = sldj + (jnp.sum(p['an_logs'])
                   + jnp.linalg.slogdet(p['inv_w'])[1]) * (h * w)

    # ---- Coupling NN: [conv3x3 -> BN -> relu -> conv1x1 -> BN -> relu] fused ----
    s1, t1 = _bn_fold(p['mid_norm'])
    s2, t2 = _bn_fold(p['out_norm'])

    cat_in = jnp.concatenate([x_id_bn.reshape(n, h, w, half), xc1, xc2],
                             axis=-1)
    k_in = im2col3x3(cat_in).astype(bf16)
    xc12 = jnp.concatenate([xc1, xc2], axis=-1).reshape(m, -1).astype(bf16)

    w_cat = jnp.concatenate([p['in_conv'], p['in_cc1'], p['in_cc2']], axis=1)
    w1 = (w3x3_mat(w_cat) * s1[None, :]).astype(bf16)
    w2h = (w1x1_mat(p['mid_conv']) * s2[None, :]).astype(bf16)
    w2c = (jnp.concatenate([w1x1_mat(p['mid_cc1']),
                            w1x1_mat(p['mid_cc2'])], axis=0)
           * s2[None, :]).astype(bf16)

    h2 = pallas_nn_in_mid(k_in, xc12, w1, t1, w2h, w2c, t2)   # bf16 (m, mid)
    mid = h2.shape[1]

    # ---- out conv3x3 + coupling epilogue (fused) ----
    k_out = im2col3x3(h2.reshape(n, h, w, mid))               # bf16 (m, 9*mid)
    # permute out_conv columns so s / t are contiguous (no stride-2 slicing)
    perm = jnp.concatenate([jnp.arange(0, 2 * half, 2),
                            jnp.arange(1, 2 * half, 2)])
    w_out = w3x3_mat(p['out_conv'])[:, perm].astype(bf16)
    b_out = p['out_bias'][perm]

    xc_out, ldj_rows = pallas_out_coupling(k_out, x_change, w_out, b_out,
                                           p['coup_scale'], half)
    sldj = sldj + jnp.sum(ldj_rows.reshape(n, h * w), axis=-1)

    out = jnp.concatenate([xc_out, x_id], axis=-1).reshape(n, h, w, c)
    return jnp.transpose(out, (0, 3, 1, 2)), sldj


# ------------------------- deterministic parameters --------------------------

def make_params(key, in_ch, cond1, cond2, mid):
    half = in_ch // 2
    ks = jax.random.split(key, 16)
    nrm = lambda k, shape, s=0.05: s * jax.random.normal(k, shape, jnp.float32)

    def bn(k, ch):
        k1, k2, k3, k4 = jax.random.split(k, 4)
        return (1.0 + 0.1 * jax.random.normal(k1, (ch,), jnp.float32),
                0.1 * jax.random.normal(k2, (ch,), jnp.float32),
                0.1 * jax.random.normal(k3, (ch,), jnp.float32),
                1.0 + 0.1 * jax.random.uniform(k4, (ch,), jnp.float32))

    p = {
        'an_bias': 0.1 * jax.random.normal(ks[0], (in_ch,), jnp.float32),
        'an_logs': 0.1 * jax.random.normal(ks[1], (in_ch,), jnp.float32),
        'inv_w': jnp.linalg.qr(
            jax.random.normal(ks[2], (in_ch, in_ch), jnp.float32))[0],
        'in_norm': bn(ks[3], half),
        'in_conv': nrm(ks[4], (mid, half, 3, 3)),
        'in_cc1': nrm(ks[5], (mid, cond1, 3, 3)),
        'in_cc2': nrm(ks[6], (mid, cond2, 3, 3)),
        'mid_norm': bn(ks[7], mid),
        'mid_conv': nrm(ks[8], (mid, mid, 1, 1)),
        'mid_cc1': nrm(ks[9], (mid, cond1, 1, 1)),
        'mid_cc2': nrm(ks[10], (mid, cond2, 1, 1)),
        'out_norm': bn(ks[11], mid),
        # PyTorch zero-inits out_conv; use small random values so the kernel
        # computes something non-trivial.
        'out_conv': nrm(ks[12], (2 * half, mid, 3, 3)),
        'out_bias': 0.05 * jax.random.normal(ks[13], (2 * half,), jnp.float32),
        'coup_scale': 1.0 + 0.1 * jax.random.normal(ks[14], (half,),
                                                    jnp.float32),
    }
    return p


# --------------------------- pure-JAX reference ------------------------------

def ref_forward(x, xc1, xc2, sldj, p):
    n, c, h, w = x.shape
    half = c // 2
    hp = jax.lax.Precision.HIGHEST

    def conv(a, wt, pad):
        return jax.lax.conv_general_dilated(
            a, wt, (1, 1), [(pad, pad), (pad, pad)],
            dimension_numbers=('NCHW', 'OIHW', 'NCHW'), precision=hp)

    def bn(a, prm):
        g, b, m, v = prm
        return ((a - m[None, :, None, None])
                / jnp.sqrt(v[None, :, None, None] + 1e-5)
                * g[None, :, None, None] + b[None, :, None, None])

    x = (x + p['an_bias'][None, :, None, None]) \
        * jnp.exp(p['an_logs'])[None, :, None, None]
    sldj = sldj + jnp.sum(p['an_logs']) * h * w
    x = jnp.einsum('oi,nihw->nohw', p['inv_w'], x, precision=hp)
    sldj = sldj + jnp.linalg.slogdet(p['inv_w'])[1] * h * w

    x_change, x_id = x[:, :half], x[:, half:]
    hh = bn(x_id, p['in_norm'])
    hh = conv(hh, p['in_conv'], 1) + conv(xc1, p['in_cc1'], 1) \
        + conv(xc2, p['in_cc2'], 1)
    hh = jax.nn.relu(bn(hh, p['mid_norm']))
    hh = conv(hh, p['mid_conv'], 0) + conv(xc1, p['mid_cc1'], 0) \
        + conv(xc2, p['mid_cc2'], 0)
    hh = jax.nn.relu(bn(hh, p['out_norm']))
    st = conv(hh, p['out_conv'], 1) + p['out_bias'][None, :, None, None]
    s = p['coup_scale'][None, :, None, None] * jnp.tanh(st[:, 0::2])
    t = st[:, 1::2]
    x_change = (x_change + t) * jnp.exp(s)
    sldj = sldj + jnp.sum(s.reshape(n, -1), axis=-1)
    return jnp.concatenate([x_change, x_id], axis=1), sldj


# ----------------------------------- main ------------------------------------

if __name__ == "__main__":
    N, C, H, W = 2, 4, 16, 16
    COND1, COND2, MID = 8, 8, 32

    key = jax.random.PRNGKey(0)
    k1, k2, k3, kp = jax.random.split(key, 4)
    x = jax.random.normal(k1, (N, C, H, W), jnp.float32)
    xc1 = jax.random.normal(k2, (N, COND1, H, W), jnp.float32)
    xc2 = jax.random.normal(k3, (N, COND2, H, W), jnp.float32)
    sldj0 = jnp.zeros((N,), jnp.float32)
    params = make_params(kp, C, COND1, COND2, MID)

    fwd = jax.jit(lambda a, b, c_, d: flow_step_forward(a, b, c_, d, params))
    out_x, out_sldj = fwd(x, xc1, xc2, sldj0)
    jax.block_until_ready((out_x, out_sldj))

    ref_x, ref_sldj = ref_forward(x, xc1, xc2, sldj0, params)
    assert out_x.shape == (N, C, H, W) and out_sldj.shape == (N,)
    assert jnp.allclose(out_x, ref_x, atol=3e-2, rtol=3e-2), "x mismatch"
    assert jnp.allclose(out_sldj, ref_sldj, atol=5e-1, rtol=3e-2), "sldj mismatch"
    print("KERNEL_OK")
</pallas_src>

<mosaic_0001>
module attributes {stable_mosaic.version = 11 : i64} {
  func.func @_matmul_bias_kernel(%arg0: i32, %arg1: memref<512x4xf32, #tpu.memory_space<vmem>>, %arg2: memref<4x6xf32, #tpu.memory_space<vmem>>, %arg3: memref<1x6xf32, #tpu.memory_space<vmem>>, %arg4: memref<512x6xf32, #tpu.memory_space<vmem>>) attributes {dimension_semantics = [#tpu.dimension_semantics<parallel>], iteration_bounds = array<i64: 1>, scalar_prefetch = 0 : i64, scratch_operands = 0 : i64, tpu.core_type = #tpu.core_type<tc>, window_params = [{transform_indices = @transform_0, window_bounds = array<i64: 512, 4>}, {pipeline_mode = #tpu.pipeline_mode<synchronous>, transform_indices = @transform_1, window_bounds = array<i64: 4, 6>}, {pipeline_mode = #tpu.pipeline_mode<synchronous>, transform_indices = @transform_2, window_bounds = array<i64: 1, 6>}, {transform_indices = @transform_3, window_bounds = array<i64: 512, 6>}]} {
    %c0 = arith.constant 0 : index
    %c0_0 = arith.constant 0 : index
    %0 = vector.load %arg1[%c0, %c0_0] : memref<512x4xf32, #tpu.memory_space<vmem>>, vector<512x4xf32>
    %c0_1 = arith.constant 0 : index
    %c0_2 = arith.constant 0 : index
    %1 = vector.load %arg2[%c0_1, %c0_2] : memref<4x6xf32, #tpu.memory_space<vmem>>, vector<4x6xf32>
    %cst = arith.constant dense<0.000000e+00> : vector<512x6xf32>
    %2 = tpu.matmul %0, %1, %cst {dimension_numbers = #tpu.dot_dimension_numbers<[1], [0], [0], [1], [0, 0, 1, 1], [], []>} : vector<512x4xf32>, vector<4x6xf32>, vector<512x6xf32> -> vector<512x6xf32>
    %c0_3 = arith.constant 0 : index
    %c0_4 = arith.constant 0 : index
    %3 = vector.load %arg3[%c0_3, %c0_4] : memref<1x6xf32, #tpu.memory_space<vmem>>, vector<1x6xf32>
    %4 = vector.broadcast %3 : vector<1x6xf32> to vector<512x6xf32>
    %5 = arith.addf %2, %4 : vector<512x6xf32>
    %c0_5 = arith.constant 0 : index
    %c0_6 = arith.constant 0 : index
    %6 = vector.load %arg4[%c0_5, %c0_6] : memref<512x6xf32, #tpu.memory_space<vmem>>, vector<512x6xf32>
    tpu.vector_store %arg4[%c0_5, %c0_6], %5 {strides = array<i32>} : memref<512x6xf32, #tpu.memory_space<vmem>>, vector<512x6xf32>,
    return
  }
  func.func @transform_0(%arg0: i32) -> (i32, i32) {
    %c0_i32 = arith.constant 0 : i32
    %c0_i32_0 = arith.constant 0 : i32
    return %arg0, %c0_i32 : i32, i32
  }
  func.func @transform_1(%arg0: i32) -> (i32, i32) {
    %c0_i32 = arith.constant 0 : i32
    %c0_i32_0 = arith.constant 0 : i32
    %c0_i32_1 = arith.constant 0 : i32
    return %c0_i32, %c0_i32_0 : i32, i32
  }
  func.func @transform_2(%arg0: i32) -> (i32, i32) {
    %c0_i32 = arith.constant 0 : i32
    %c0_i32_0 = arith.constant 0 : i32
    %c0_i32_1 = arith.constant 0 : i32
    return %c0_i32, %c0_i32_0 : i32, i32
  }
  func.func @transform_3(%arg0: i32) -> (i32, i32) {
    %c0_i32 = arith.constant 0 : i32
    %c0_i32_0 = arith.constant 0 : i32
    return %arg0, %c0_i32 : i32, i32
  }
}

module attributes {stable_mosaic.version = 11 : i64} {
  func.func @_nn_in_mid_kernel(%arg0: i32, %arg1: memref<512x162xbf16, #tpu.memory_space<vmem>>, %arg2: memref<512x16xbf16, #tpu.memory_space<vmem>>, %arg3: memref<162x32xbf16, #tpu.memory_space<vmem>>, %arg4: memref<1x32xf32, #tpu.memory_space<vmem>>, %arg5: memref<32x32xbf16, #tpu.memory_space<vmem>>, %arg6: memref<16x32xbf16, #tpu.memory_space<vmem>>, %arg7: memref<1x32xf32, #tpu.memory_space<vmem>>, %arg8: memref<512x32xbf16, #tpu.memory_space<vmem>>) attributes {dimension_semantics = [#tpu.dimension_semantics<parallel>], iteration_bounds = array<i64: 1>, scalar_prefetch = 0 : i64, scratch_operands = 0 : i64, tpu.core_type = #tpu.core_type<tc>, window_params = [{transform_indices = @transform_0, window_bounds = array<i64: 512, 162>}, {transform_indices = @transform_1, window_bounds = array<i64: 512, 16>}, {pipeline_mode = #tpu.pipeline_mode<synchronous>, transform_indices = @transform_2, window_bounds = array<i64: 162, 32>}, {pipeline_mode = #tpu.pipeline_mode<synchronous>, transform_indices = @transform_3, window_bounds = array<i64: 1, 32>}, {pipeline_mode = #tpu.pipeline_mode<synchronous>, transform_indices = @transform_4, window_bounds = array<i64: 32, 32>}, {pipeline_mode = #tpu.pipeline_mode<synchronous>, transform_indices = @transform_5, window_bounds = array<i64: 16, 32>}, {pipeline_mode = #tpu.pipeline_mode<synchronous>, transform_indices = @transform_6, window_bounds = array<i64: 1, 32>}, {transform_indices = @transform_7, window_bounds = array<i64: 512, 32>}]} {
    %c0 = arith.constant 0 : index
    %c0_0 = arith.constant 0 : index
    %0 = vector.load %arg1[%c0, %c0_0] : memref<512x162xbf16, #tpu.memory_space<vmem>>, vector<512x162xbf16>
    %c0_1 = arith.constant 0 : index
    %c0_2 = arith.constant 0 : index
    %1 = vector.load %arg3[%c0_1, %c0_2] : memref<162x32xbf16, #tpu.memory_space<vmem>>, vector<162x32xbf16>
    %cst = arith.constant dense<0.000000e+00> : vector<512x32xf32>
    %2 = tpu.matmul %0, %1, %cst {dimension_numbers = #tpu.dot_dimension_numbers<[1], [0], [0], [1], [0, 0, 1, 1], [], []>} : vector<512x162xbf16>, vector<162x32xbf16>, vector<512x32xf32> -> vector<512x32xf32>
    %c0_3 = arith.constant 0 : index
    %c0_4 = arith.constant 0 : index
    %3 = vector.load %arg4[%c0_3, %c0_4] : memref<1x32xf32, #tpu.memory_space<vmem>>, vector<1x32xf32>
    %4 = vector.broadcast %3 : vector<1x32xf32> to vector<512x32xf32>
    %5 = arith.addf %2, %4 : vector<512x32xf32>
    %cst_5 = arith.constant 0.000000e+00 : f32
    %6 = vector.broadcast %cst_5 : f32 to vector<512x32xf32>
    %7 = arith.maximumf %5, %6 : vector<512x32xf32>
    %8 = arith.truncf %7 : vector<512x32xf32> to vector<512x32xbf16>
    %c0_6 = arith.constant 0 : index
    %c0_7 = arith.constant 0 : index
    %9 = vector.load %arg5[%c0_6, %c0_7] : memref<32x32xbf16, #tpu.memory_space<vmem>>, vector<32x32xbf16>
    %cst_8 = arith.constant dense<0.000000e+00> : vector<512x32xf32>
    %10 = tpu.matmul %8, %9, %cst_8 {dimension_numbers = #tpu.dot_dimension_numbers<[1], [0], [0], [1], [0, 0, 1, 1], [], []>} : vector<512x32xbf16>, vector<32x32xbf16>, vector<512x32xf32> -> vector<512x32xf32>
    %c0_9 = arith.constant 0 : index
    %c0_10 = arith.constant 0 : index
    %11 = vector.load %arg2[%c0_9, %c0_10] : memref<512x16xbf16, #tpu.memory_space<vmem>>, vector<512x16xbf16>
    %c0_11 = arith.constant 0 : index
    %c0_12 = arith.constant 0 : index
    %12 = vector.load %arg6[%c0_11, %c0_12] : memref<16x32xbf16, #tpu.memory_space<vmem>>, vector<16x32xbf16>
    %cst_13 = arith.constant dense<0.000000e+00> : vector<512x32xf32>
    %13 = tpu.matmul %11, %12, %cst_13 {dimension_numbers = #tpu.dot_dimension_numbers<[1], [0], [0], [1], [0, 0, 1, 1], [], []>} : vector<512x16xbf16>, vector<16x32xbf16>, vector<512x32xf32> -> vector<512x32xf32>
    %14 = arith.addf %10, %13 : vector<512x32xf32>
    %c0_14 = arith.constant 0 : index
    %c0_15 = arith.constant 0 : index
    %15 = vector.load %arg7[%c0_14, %c0_15] : memref<1x32xf32, #tpu.memory_space<vmem>>, vector<1x32xf32>
    %16 = vector.broadcast %15 : vector<1x32xf32> to vector<512x32xf32>
    %17 = arith.addf %14, %16 : vector<512x32xf32>
    %cst_16 = arith.constant 0.000000e+00 : f32
    %18 = vector.broadcast %cst_16 : f32 to vector<512x32xf32>
    %19 = arith.maximumf %17, %18 : vector<512x32xf32>
    %20 = arith.truncf %19 : vector<512x32xf32> to vector<512x32xbf16>
    %c0_17 = arith.constant 0 : index
    %c0_18 = arith.constant 0 : index
    %21 = vector.load %arg8[%c0_17, %c0_18] : memref<512x32xbf16, #tpu.memory_space<vmem>>, vector<512x32xbf16>
    tpu.vector_store %arg8[%c0_17, %c0_18], %20 {strides = array<i32>} : memref<512x32xbf16, #tpu.memory_space<vmem>>, vector<512x32xbf16>,
    return
  }
  func.func @transform_0(%arg0: i32) -> (i32, i32) {
    %c0_i32 = arith.constant 0 : i32
    %c0_i32_0 = arith.constant 0 : i32
    return %arg0, %c0_i32 : i32, i32
  }
  func.func @transform_1(%arg0: i32) -> (i32, i32) {
    %c0_i32 = arith.constant 0 : i32
    %c0_i32_0 = arith.constant 0 : i32
    return %arg0, %c0_i32 : i32, i32
  }
  func.func @transform_2(%arg0: i32) -> (i32, i32) {
    %c0_i32 = arith.constant 0 : i32
    %c0_i32_0 = arith.constant 0 : i32
    %c0_i32_1 = arith.constant 0 : i32
    return %c0_i32, %c0_i32_0 : i32, i32
  }
  func.func @transform_3(%arg0: i32) -> (i32, i32) {
    %c0_i32 = arith.constant 0 : i32
    %c0_i32_0 = arith.constant 0 : i32
    %c0_i32_1 = arith.constant 0 : i32
    return %c0_i32, %c0_i32_0 : i32, i32
  }
  func.func @transform_4(%arg0: i32) -> (i32, i32) {
    %c0_i32 = arith.constant 0 : i32
    %c0_i32_0 = arith.constant 0 : i32
    %c0_i32_1 = arith.constant 0 : i32
    return %c0_i32, %c0_i32_0 : i32, i32
  }
  func.func @transform_5(%arg0: i32) -> (i32, i32) {
    %c0_i32 = arith.constant 0 : i32
    %c0_i32_0 = arith.constant 0 : i32
    %c0_i32_1 = arith.constant 0 : i32
    return %c0_i32, %c0_i32_0 : i32, i32
  }
  func.func @transform_6(%arg0: i32) -> (i32, i32) {
    %c0_i32 = arith.constant 0 : i32
    %c0_i32_0 = arith.constant 0 : i32
    %c0_i32_1 = arith.constant 0 : i32
    return %c0_i32, %c0_i32_0 : i32, i32
  }
  func.func @transform_7(%arg0: i32) -> (i32, i32) {
    %c0_i32 = arith.constant 0 : i32
    %c0_i32_0 = arith.constant 0 : i32
    return %arg0, %c0_i32 : i32, i32
  }
}

module attributes {stable_mosaic.version = 11 : i64} {
  func.func @_out_coupling_kernel(%arg0: i32, %arg1: memref<512x288xbf16, #tpu.memory_space<vmem>>, %arg2: memref<512x2xf32, #tpu.memory_space<vmem>>, %arg3: memref<288x4xbf16, #tpu.memory_space<vmem>>, %arg4: memref<1x4xf32, #tpu.memory_space<vmem>>, %arg5: memref<1x2xf32, #tpu.memory_space<vmem>>, %arg6: memref<512x2xf32, #tpu.memory_space<vmem>>, %arg7: memref<512x1xf32, #tpu.memory_space<vmem>>) attributes {dimension_semantics = [#tpu.dimension_semantics<parallel>], iteration_bounds = array<i64: 1>, scalar_prefetch = 0 : i64, scratch_operands = 0 : i64, tpu.core_type = #tpu.core_type<tc>, window_params = [{transform_indices = @transform_0, window_bounds = array<i64: 512, 288>}, {transform_indices = @transform_1, window_bounds = array<i64: 512, 2>}, {pipeline_mode = #tpu.pipeline_mode<synchronous>, transform_indices = @transform_2, window_bounds = array<i64: 288, 4>}, {pipeline_mode = #tpu.pipeline_mode<synchronous>, transform_indices = @transform_3, window_bounds = array<i64: 1, 4>}, {pipeline_mode = #tpu.pipeline_mode<synchronous>, transform_indices = @transform_4, window_bounds = array<i64: 1, 2>}, {transform_indices = @transform_5, window_bounds = array<i64: 512, 2>}, {transform_indices = @transform_6, window_bounds = array<i64: 512, 1>}]} {
    %c0 = arith.constant 0 : index
    %c0_0 = arith.constant 0 : index
    %0 = vector.load %arg1[%c0, %c0_0] : memref<512x288xbf16, #tpu.memory_space<vmem>>, vector<512x288xbf16>
    %c0_1 = arith.constant 0 : index
    %c0_2 = arith.constant 0 : index
    %1 = vector.load %arg3[%c0_1, %c0_2] : memref<288x4xbf16, #tpu.memory_space<vmem>>, vector<288x4xbf16>
    %cst = arith.constant dense<0.000000e+00> : vector<512x4xf32>
    %2 = tpu.matmul %0, %1, %cst {dimension_numbers = #tpu.dot_dimension_numbers<[1], [0], [0], [1], [0, 0, 1, 1], [], []>} : vector<512x288xbf16>, vector<288x4xbf16>, vector<512x4xf32> -> vector<512x4xf32>
    %c0_3 = arith.constant 0 : index
    %c0_4 = arith.constant 0 : index
    %3 = vector.load %arg4[%c0_3, %c0_4] : memref<1x4xf32, #tpu.memory_space<vmem>>, vector<1x4xf32>
    %4 = vector.broadcast %3 : vector<1x4xf32> to vector<512x4xf32>
    %5 = arith.addf %2, %4 : vector<512x4xf32>
    %6 = vector.extract_strided_slice %5 {offsets = [0, 0], sizes = [512, 2], strides = [1, 1]} : vector<512x4xf32> to vector<512x2xf32>
    %7 = vector.extract_strided_slice %5 {offsets = [0, 2], sizes = [512, 2], strides = [1, 1]} : vector<512x4xf32> to vector<512x2xf32>
    %c0_5 = arith.constant 0 : index
    %c0_6 = arith.constant 0 : index
    %8 = vector.load %arg5[%c0_5, %c0_6] : memref<1x2xf32, #tpu.memory_space<vmem>>, vector<1x2xf32>
    %9 = math.tanh %6 : vector<512x2xf32>
    %10 = vector.broadcast %8 : vector<1x2xf32> to vector<512x2xf32>
    %11 = arith.mulf %10, %9 : vector<512x2xf32>
    %c0_7 = arith.constant 0 : index
    %c0_8 = arith.constant 0 : index
    %12 = vector.load %arg2[%c0_7, %c0_8] : memref<512x2xf32, #tpu.memory_space<vmem>>, vector<512x2xf32>
    %13 = arith.addf %12, %7 : vector<512x2xf32>
    %14 = math.exp %11 : vector<512x2xf32>
    %15 = arith.mulf %13, %14 : vector<512x2xf32>
    %c0_9 = arith.constant 0 : index
    %c0_10 = arith.constant 0 : index
    %16 = vector.load %arg6[%c0_9, %c0_10] : memref<512x2xf32, #tpu.memory_space<vmem>>, vector<512x2xf32>
    tpu.vector_store %arg6[%c0_9, %c0_10], %15 {strides = array<i32>} : memref<512x2xf32, #tpu.memory_space<vmem>>, vector<512x2xf32>,
    %cst_11 = arith.constant dense<0.000000e+00> : vector<512xf32>
    %17 = vector.multi_reduction <add>, %11, %cst_11 [1] : vector<512x2xf32> to vector<512xf32>
    %18 = vector.shape_cast %17 : vector<512xf32> to vector<512x1xf32>
    %c0_12 = arith.constant 0 : index
    %c0_13 = arith.constant 0 : index
    %19 = vector.load %arg7[%c0_12, %c0_13] : memref<512x1xf32, #tpu.memory_space<vmem>>, vector<512x1xf32>
    tpu.vector_store %arg7[%c0_12, %c0_13], %18 {strides = array<i32>} : memref<512x1xf32, #tpu.memory_space<vmem>>, vector<512x1xf32>,
    return
  }
  func.func @transform_0(%arg0: i32) -> (i32, i32) {
    %c0_i32 = arith.constant 0 : i32
    %c0_i32_0 = arith.constant 0 : i32
    return %arg0, %c0_i32 : i32, i32
  }
  func.func @transform_1(%arg0: i32) -> (i32, i32) {
    %c0_i32 = arith.constant 0 : i32
    %c0_i32_0 = arith.constant 0 : i32
    return %arg0, %c0_i32 : i32, i32
  }
  func.func @transform_2(%arg0: i32) -> (i32, i32) {
    %c0_i32 = arith.constant 0 : i32
    %c0_i32_0 = arith.constant 0 : i32
    %c0_i32_1 = arith.constant 0 : i32
    return %c0_i32, %c0_i32_0 : i32, i32
  }
  func.func @transform_3(%arg0: i32) -> (i32, i32) {
    %c0_i32 = arith.constant 0 : i32
    %c0_i32_0 = arith.constant 0 : i32
    %c0_i32_1 = arith.constant 0 : i32
    return %c0_i32, %c0_i32_0 : i32, i32
  }
  func.func @transform_4(%arg0: i32) -> (i32, i32) {
    %c0_i32 = arith.constant 0 : i32
    %c0_i32_0 = arith.constant 0 : i32
    %c0_i32_1 = arith.constant 0 : i32
    return %c0_i32, %c0_i32_0 : i32, i32
  }
  func.func @transform_5(%arg0: i32) -> (i32, i32) {
    %c0_i32 = arith.constant 0 : i32
    %c0_i32_0 = arith.constant 0 : i32
    return %arg0, %c0_i32 : i32, i32
  }
  func.func @transform_6(%arg0: i32) -> (i32, i32) {
    %c0_i32 = arith.constant 0 : i32
    %c0_i32_0 = arith.constant 0 : i32
    return %arg0, %c0_i32 : i32, i32
  }
}

</mosaic_0001>

<llo_original>
// kernel: _lambda_.3
$region0: #{_lambda_.3}
  #allocation0 [shape = 'u32[]', space=smem, size = 0x4, offset = 0x4, fixed_abs, tag = 'smem constant byte address 0x4 - core index']
  #allocation1 [shape = 'u32[144,128]{1,0:T(1,128)}', space=vmem, size = 0x12000, scoped, tag = 'internal scratch']
  %s0 = inlined_call_operand.vmem [shape: f32[512,4], index: 0, kind: input, shape index: {}]
  %s1 = inlined_call_operand.vmem [shape: f32[4,6], index: 1, kind: input, shape index: {}]
  %s2 = inlined_call_operand.vmem [shape: f32[1,6], index: 2, kind: input, shape index: {}]
  %s3 = inlined_call_operand.vmem [shape: f32[512,6], index: 3, kind: output, shape index: {}]
  %s4 = sld [smem:[#allocation0]]
  $region22: #{_lambda_.3} parent=0
    _
  %s6 = ssub.s32 1, %s4
  %s7 = scalar_select 0, %s6, %s4
  // Predicated region
  $region2: #{_lambda_.3} parent=0 // pred_check
    _
  $region3: #{_lambda_.3} parent=0 // pred_check_branch
    %9 = sbr.rel (0) target = $region5
  $region4: #{_lambda_.3} parent=0 // pred_region
    _
  $region5: #{_lambda_.3} parent=0 // pred_fallthru
    _
  // Predicated region
  $region6: #{_lambda_.3} parent=0 // pred_check
    _
  $region7: #{_lambda_.3} parent=0 // pred_check_branch
    %11 = sbr.rel (0) target = $region9
  $region8: #{_lambda_.3} parent=0 // pred_region
    _
  $region9: #{_lambda_.3} parent=0 // pred_fallthru
    _
  // Predicated region
  $region10: #{_lambda_.3} parent=0 // pred_check
    _
  $region11: #{_lambda_.3} parent=0 // pred_check_branch
    %13 = sbr.rel (0) target = $region13
  $region12: #{_lambda_.3} parent=0 // pred_region
    _
  $region13: #{_lambda_.3} parent=0 // pred_fallthru
    _
  %v14 = vld [vmem:[%s0] sm:$0xff]
  %v15 = vld [vmem:[%s0 + $0x8] sm:$0xff]
  %v16 = vld [vmem:[%s0 + $0x10] sm:$0xff]
  %v17 = vld [vmem:[%s0 + $0x18] sm:$0xff]
  %v18 = vld [vmem:[%s0 + $0x20] sm:$0xff]
  %v19 = vld [vmem:[%s0 + $0x28] sm:$0xff]
  %v20 = vld [vmem:[%s0 + $0x30] sm:$0xff]
  %v21 = vld [vmem:[%s0 + $0x38] sm:$0xff]
  %v22 = vld [vmem:[%s0 + $0x40] sm:$0xff]
  %v23 = vld [vmem:[%s0 + $0x48] sm:$0xff]
  %v24 = vld [vmem:[%s0 + $0x50] sm:$0xff]
  %v25 = vld [vmem:[%s0 + $0x58] sm:$0xff]
  %v26 = vld [vmem:[%s0 + $0x60] sm:$0xff]
  %v27 = vld [vmem:[%s0 + $0x68] sm:$0xff]
  %v28 = vld [vmem:[%s0 + $0x70] sm:$0xff]
  %v29 = vld [vmem:[%s0 + $0x78] sm:$0xff]
  %v30 = vld [vmem:[%s0 + $0x80] sm:$0xff]
  %v31 = vld [vmem:[%s0 + $0x88] sm:$0xff]
  %v32 = vld [vmem:[%s0 + $0x90] sm:$0xff]
  %v33 = vld [vmem:[%s0 + $0x98] sm:$0xff]
  %v34 = vld [vmem:[%s0 + $0xa0] sm:$0xff]
  %v35 = vld [vmem:[%s0 + $0xa8] sm:$0xff]
  %v36 = vld [vmem:[%s0 + $0xb0] sm:$0xff]
  %v37 = vld [vmem:[%s0 + $0xb8] sm:$0xff]
  %v38 = vld [vmem:[%s0 + $0xc0] sm:$0xff]
  %v39 = vld [vmem:[%s0 + $0xc8] sm:$0xff]
  %v40 = vld [vmem:[%s0 + $0xd0] sm:$0xff]
  %v41 = vld [vmem:[%s0 + $0xd8] sm:$0xff]
  %v42 = vld [vmem:[%s0 + $0xe0] sm:$0xff]
  %v43 = vld [vmem:[%s0 + $0xe8] sm:$0xff]
  %v44 = vld [vmem:[%s0 + $0xf0] sm:$0xff]
  %v45 = vld [vmem:[%s0 + $0xf8] sm:$0xff]
  %v46 = vld [vmem:[%s0 + $0x100] sm:$0xff]
  %v47 = vld [vmem:[%s0 + $0x108] sm:$0xff]
  %v48 = vld [vmem:[%s0 + $0x110] sm:$0xff]
  %v49 = vld [vmem:[%s0 + $0x118] sm:$0xff]
  %v50 = vld [vmem:[%s0 + $0x120] sm:$0xff]
  %v51 = vld [vmem:[%s0 + $0x128] sm:$0xff]
  %v52 = vld [vmem:[%s0 + $0x130] sm:$0xff]
  %v53 = vld [vmem:[%s0 + $0x138] sm:$0xff]
  %v54 = vld [vmem:[%s0 + $0x140] sm:$0xff]
  %v55 = vld [vmem:[%s0 + $0x148] sm:$0xff]
  %v56 = vld [vmem:[%s0 + $0x150] sm:$0xff]
  %v57 = vld [vmem:[%s0 + $0x158] sm:$0xff]
  %v58 = vld [vmem:[%s0 + $0x160] sm:$0xff]
  %v59 = vld [vmem:[%s0 + $0x168] sm:$0xff]
  %v60 = vld [vmem:[%s0 + $0x170] sm:$0xff]
  %v61 = vld [vmem:[%s0 + $0x178] sm:$0xff]
  %v62 = vld [vmem:[%s0 + $0x180] sm:$0xff]
  %v63 = vld [vmem:[%s0 + $0x188] sm:$0xff]
  %v64 = vld [vmem:[%s0 + $0x190] sm:$0xff]
  %v65 = vld [vmem:[%s0 + $0x198] sm:$0xff]
  %v66 = vld [vmem:[%s0 + $0x1a0] sm:$0xff]
  %v67 = vld [vmem:[%s0 + $0x1a8] sm:$0xff]
  %v68 = vld [vmem:[%s0 + $0x1b0] sm:$0xff]
  %v69 = vld [vmem:[%s0 + $0x1b8] sm:$0xff]
  %v70 = vld [vmem:[%s0 + $0x1c0] sm:$0xff]
  %v71 = vld [vmem:[%s0 + $0x1c8] sm:$0xff]
  %v72 = vld [vmem:[%s0 + $0x1d0] sm:$0xff]
  %v73 = vld [vmem:[%s0 + $0x1d8] sm:$0xff]
  %v74 = vld [vmem:[%s0 + $0x1e0] sm:$0xff]
  %v75 = vld [vmem:[%s0 + $0x1e8] sm:$0xff]
  %v76 = vld [vmem:[%s0 + $0x1f0] sm:$0xff]
  %v77 = vld [vmem:[%s0 + $0x1f8] sm:$0xff]
  %v78 = vld [vmem:[%s1] sm:$0xf]
  %v79 = vld [vmem:[%s2] sm:$0x1]
  %v81 = vlaneseq
  %v82 = vshrl.u32 %v81, 7
  %v83 = vsub.s32 0, %v82
  %v84 = vrot.slane %v79, %v83
  %vm86 = vcmask 31744
  %v88 = vsel %vm86, %v14, 0
  %v91 = vsel %vm86, %v15, 0
  %v94 = vsel %vm86, %v16, 0
  %v97 = vsel %vm86, %v17, 0
  %v100 = vsel %vm86, %v18, 0
  %v103 = vsel %vm86, %v19, 0
  %v106 = vsel %vm86, %v20, 0
  %v109 = vsel %vm86, %v21, 0
  %v112 = vsel %vm86, %v22, 0
  %v115 = vsel %vm86, %v23, 0
  %v118 = vsel %vm86, %v24, 0
  %v121 = vsel %vm86, %v25, 0
  %v124 = vsel %vm86, %v26, 0
  %v127 = vsel %vm86, %v27, 0
  %v130 = vsel %vm86, %v28, 0
  %v133 = vsel %vm86, %v29, 0
  %v136 = vsel %vm86, %v30, 0
  %v139 = vsel %vm86, %v31, 0
  %v142 = vsel %vm86, %v32, 0
  %v145 = vsel %vm86, %v33, 0
  %v148 = vsel %vm86, %v34, 0
  %v151 = vsel %vm86, %v35, 0
  %v154 = vsel %vm86, %v36, 0
  %v157 = vsel %vm86, %v37, 0
  %v160 = vsel %vm86, %v38, 0
  %v163 = vsel %vm86, %v39, 0
  %v166 = vsel %vm86, %v40, 0
  %v169 = vsel %vm86, %v41, 0
  %v172 = vsel %vm86, %v42, 0
  %v175 = vsel %vm86, %v43, 0
  %v178 = vsel %vm86, %v44, 0
  %v181 = vsel %vm86, %v45, 0
  %v184 = vsel %vm86, %v46, 0
  %v187 = vsel %vm86, %v47, 0
  %v190 = vsel %vm86, %v48, 0
  %v193 = vsel %vm86, %v49, 0
  %v196 = vsel %vm86, %v50, 0
  %v199 = vsel %vm86, %v51, 0
  %v202 = vsel %vm86, %v52, 0
  %v205 = vsel %vm86, %v53, 0
  %v208 = vsel %vm86, %v54, 0
  %v211 = vsel %vm86, %v55, 0
  %v214 = vsel %vm86, %v56, 0
  %v217 = vsel %vm86, %v57, 0
  %v220 = vsel %vm86, %v58, 0
  %v223 = vsel %vm86, %v59, 0
  %v226 = vsel %vm86, %v60, 0
  %v229 = vsel %vm86, %v61, 0
  %v232 = vsel %vm86, %v62, 0
  %v235 = vsel %vm86, %v63, 0
  %v238 = vsel %vm86, %v64, 0
  %v241 = vsel %vm86, %v65, 0
  %v244 = vsel %vm86, %v66, 0
  %v247 = vsel %vm86, %v67, 0
  %v250 = vsel %vm86, %v68, 0
  %v253 = vsel %vm86, %v69, 0
  %v256 = vsel %vm86, %v70, 0
  %v259 = vsel %vm86, %v71, 0
  %v262 = vsel %vm86, %v72, 0
  %v265 = vsel %vm86, %v73, 0
  %v268 = vsel %vm86, %v74, 0
  %v271 = vsel %vm86, %v75, 0
  %v274 = vsel %vm86, %v76, 0
  %v277 = vsel %vm86, %v77, 0
  %vm279 = vcmask 1043456
  %v281 = vsel %vm279, %v78, 0
  %283 = vmatprep.subr.mxu0 0.0
  %284 = vmatpush1.msra.mxu0 %v281
  %285 = vmatprep.subr.mxu0 0.0
  %286 = vmatpush1.msra.mxu0 0.0
  %287 = vmatprep.subr.mxu0 0.0
  %288 = vmatpush1.msra.mxu0 0.0
  %289 = vmatprep.subr.mxu0 0.0
  %290 = vmatpush1.msra.mxu0 0.0
  %291 = vmatprep.subr.mxu0 0.0
  %292 = vmatpush1.msra.mxu0 0.0
  %293 = vmatprep.subr.mxu0 0.0
  %294 = vmatpush1.msra.mxu0 0.0
  %295 = vmatprep.subr.mxu0 0.0
  %296 = vmatpush1.msra.mxu0 0.0
  %297 = vmatprep.subr.mxu0 0.0
  %298 = vmatpush1.msra.mxu0 0.0
  %299 = vmatprep.subr.mxu0 0.0
  %300 = vmatpush1.msra.mxu0 0.0
  %301 = vmatprep.subr.mxu0 0.0
  %302 = vmatpush1.msra.mxu0 0.0
  %303 = vmatprep.subr.mxu0 0.0
  %304 = vmatpush1.msra.mxu0 0.0
  %305 = vmatprep.subr.mxu0 0.0
  %306 = vmatpush1.msra.mxu0 0.0
  %307 = vmatprep.subr.mxu0 0.0
  %308 = vmatpush1.msra.mxu0 0.0
  %309 = vmatprep.subr.mxu0 0.0
  %310 = vmatpush1.msra.mxu0 0.0
  %311 = vmatprep.subr.mxu0 0.0
  %312 = vmatpush1.msra.mxu0 0.0
  %313 = vmatprep.subr.mxu0 0.0
  %314 = vmatpush1.msra.mxu0 0.0
  %315 = vmatprep.subr.mxu0 0.0
  %316 = vmatpush1.msra.mxu0 0.0
  %317 = vmatprep.subr.mxu0 0.0
  %318 = vmatpush1.msra.mxu0 0.0
  %319 = vmatprep.subr.mxu0 0.0
  %320 = vmatpush1.msra.mxu0 0.0
  %321 = vmatprep.subr.mxu0 0.0
  %322 = vmatpush1.msra.mxu0 0.0
  %323 = vmatprep.subr.mxu0 0.0
  %324 = vmatpush1.msra.mxu0 0.0
  %325 = vmatprep.subr.mxu0 0.0
  %326 = vmatpush1.msra.mxu0 0.0
  %327 = vmatprep.subr.mxu0 0.0
  %328 = vmatpush1.msra.mxu0 0.0
  %329 = vmatprep.subr.mxu0 0.0
  %330 = vmatpush1.msra.mxu0 0.0
  %331 = vmatprep.subr.mxu0 0.0
  %332 = vmatpush1.msra.mxu0 0.0
  %333 = vmatprep.subr.mxu0 0.0
  %334 = vmatpush1.msra.mxu0 0.0
  %335 = vmatprep.subr.mxu0 0.0
  %336 = vmatpush1.msra.mxu0 0.0
  %337 = vmatprep.subr.mxu0 0.0
  %338 = vmatpush1.msra.mxu0 0.0
  %339 = vmatprep.subr.mxu0 0.0
  %340 = vmatpush1.msra.mxu0 0.0
  %341 = vmatprep.subr.mxu0 0.0
  %342 = vmatpush1.msra.mxu0 0.0
  %343 = vmatprep.subr.mxu0 0.0
  %344 = vmatpush1.msra.mxu0 0.0
  %345 = vmatprep.subr.mxu0 0.0
  %346 = vmatpush1.msra.mxu0 0.0
  %347 = vmatprep.mubr.f32.mxu0 0.0
  %348 = vmatmul.mubr.f32.gmra.mrb[0].mxu0 %v88
  %v349 = vpop.f32.mrb[0].mxu0
  %v350 = vadd.f32 %v84, %v349
  %v351 = vpop.f32.mrb[0].mxu0
  %352 = vmatprep.mubr.f32.mxu0 0.0
  %353 = vmatmul.mubr.f32.gmra.mrb[0].mxu0 %v91
  %v354 = vpop.f32.mrb[0].mxu0
  %v355 = vadd.f32 %v84, %v354
  %v356 = vpop.f32.mrb[0].mxu0
  %357 = vmatprep.mubr.f32.mxu0 0.0
  %358 = vmatmul.mubr.f32.gmra.mrb[0].mxu0 %v94
  %v359 = vpop.f32.mrb[0].mxu0
  %v360 = vadd.f32 %v84, %v359
  %v361 = vpop.f32.mrb[0].mxu0
  %362 = vmatprep.mubr.f32.mxu0 0.0
  %363 = vmatmul.mubr.f32.gmra.mrb[0].mxu0 %v97
  %v364 = vpop.f32.mrb[0].mxu0
  %v365 = vadd.f32 %v84, %v364
  %v366 = vpop.f32.mrb[0].mxu0
  %367 = vmatprep.mubr.f32.mxu0 0.0
  %368 = vmatmul.mubr.f32.gmra.mrb[0].mxu0 %v100
  %v369 = vpop.f32.mrb[0].mxu0
  %v370 = vadd.f32 %v84, %v369
  %v371 = vpop.f32.mrb[0].mxu0
  %372 = vmatprep.mubr.f32.mxu0 0.0
  %373 = vmatmul.mubr.f32.gmra.mrb[0].mxu0 %v103
  %v374 = vpop.f32.mrb[0].mxu0
  %v375 = vadd.f32 %v84, %v374
  %v376 = vpop.f32.mrb[0].mxu0
  %377 = vmatprep.mubr.f32.mxu0 0.0
  %378 = vmatmul.mubr.f32.gmra.mrb[0].mxu0 %v106
  %v379 = vpop.f32.mrb[0].mxu0
  %v380 = vadd.f32 %v84, %v379
  %v381 = vpop.f32.mrb[0].mxu0
  %382 = vmatprep.mubr.f32.mxu0 0.0
  %383 = vmatmul.mubr.f32.gmra.mrb[0].mxu0 %v109
  %v384 = vpop.f32.mrb[0].mxu0
  %v385 = vadd.f32 %v84, %v384
  %v386 = vpop.f32.mrb[0].mxu0
  %387 = vmatprep.mubr.f32.mxu0 0.0
  %388 = vmatmul.mubr.f32.gmra.mrb[0].mxu0 %v112
  %v389 = vpop.f32.mrb[0].mxu0
  %v390 = vadd.f32 %v84, %v389
  %v391 = vpop.f32.mrb[0].mxu0
  %392 = vmatprep.mubr.f32.mxu0 0.0
  %393 = vmatmul.mubr.f32.gmra.mrb[0].mxu0 %v115
  %v394 = vpop.f32.mrb[0].mxu0
  %v395 = vadd.f32 %v84, %v394
  %v396 = vpop.f32.mrb[0].mxu0
  %397 = vmatprep.mubr.f32.mxu0 0.0
  %398 = vmatmul.mubr.f32.gmra.mrb[0].mxu0 %v118
  %v399 = vpop.f32.mrb[0].mxu0
  %v400 = vadd.f32 %v84, %v399
  %v401 = vpop.f32.mrb[0].mxu0
  %402 = vmatprep.mubr.f32.mxu0 0.0
  %403 = vmatmul.mubr.f32.gmra.mrb[0].mxu0 %v121
  %v404 = vpop.f32.mrb[0].mxu0
  %v405 = vadd.f32 %v84, %v404
  %v406 = vpop.f32.mrb[0].mxu0
  %407 = vmatprep.mubr.f32.mxu0 0.0
  %408 = vmatmul.mubr.f32.gmra.mrb[0].mxu0 %v124
  %v409 = vpop.f32.mrb[0].mxu0
  %v410 = vadd.f32 %v84, %v409
  %v411 = vpop.f32.mrb[0].mxu0
  %412 = vmatprep.mubr.f32.mxu0 0.0
  %413 = vmatmul.mubr.f32.gmra.mrb[0].mxu0 %v127
  %v414 = vpop.f32.mrb[0].mxu0
  %v415 = vadd.f32 %v84, %v414
  %v416 = vpop.f32.mrb[0].mxu0
  %417 = vmatprep.mubr.f32.mxu0 0.0
  %418 = vmatmul.mubr.f32.gmra.mrb[0].mxu0 %v130
  %v419 = vpop.f32.mrb[0].mxu0
  %v420 = vadd.f32 %v84, %v419
  %v421 = vpop.f32.mrb[0].mxu0
  %422 = vmatprep.mubr.f32.mxu0 0.0
  %423 = vmatmul.mubr.f32.gmra.mrb[0].mxu0 %v133
  %v424 = vpop.f32.mrb[0].mxu0
  %v425 = vadd.f32 %v84, %v424
  %v426 = vpop.f32.mrb[0].mxu0
  %427 = vmatprep.mubr.f32.mxu0 0.0
  %428 = vmatmul.mubr.f32.gmra.mrb[0].mxu0 %v136
  %v429 = vpop.f32.mrb[0].mxu0
  %v430 = vadd.f32 %v84, %v429
  %v431 = vpop.f32.mrb[0].mxu0
  %432 = vmatprep.mubr.f32.mxu0 0.0
  %433 = vmatmul.mubr.f32.gmra.mrb[0].mxu0 %v139
  %v434 = vpop.f32.mrb[0].mxu0
  %v435 = vadd.f32 %v84, %v434
  %v436 = vpop.f32.mrb[0].mxu0
  %437 = vmatprep.mubr.f32.mxu0 0.0
  %438 = vmatmul.mubr.f32.gmra.mrb[0].mxu0 %v142
  %v439 = vpop.f32.mrb[0].mxu0
  %v440 = vadd.f32 %v84, %v439
  %v441 = vpop.f32.mrb[0].mxu0
  %442 = vmatprep.mubr.f32.mxu0 0.0
  %443 = vmatmul.mubr.f32.gmra.mrb[0].mxu0 %v145
  %v444 = vpop.f32.mrb[0].mxu0
  %v445 = vadd.f32 %v84, %v444
  %v446 = vpop.f32.mrb[0].mxu0
  %447 = vmatprep.mubr.f32.mxu0 0.0
  %448 = vmatmul.mubr.f32.gmra.mrb[0].mxu0 %v148
  %v449 = vpop.f32.mrb[0].mxu0
  %v450 = vadd.f32 %v84, %v449
  %v451 = vpop.f32.mrb[0].mxu0
  %452 = vmatprep.mubr.f32.mxu0 0.0
  %453 = vmatmul.mubr.f32.gmra.mrb[0].mxu0 %v151
  %v454 = vpop.f32.mrb[0].mxu0
  %v455 = vadd.f32 %v84, %v454
  %v456 = vpop.f32.mrb[0].mxu0
  %457 = vmatprep.mubr.f32.mxu0 0.0
  %458 = vmatmul.mubr.f32.gmra.mrb[0].mxu0 %v154
  %v459 = vpop.f32.mrb[0].mxu0
  %v460 = vadd.f32 %v84, %v459
  %v461 = vpop.f32.mrb[0].mxu0
  %462 = vmatprep.mubr.f32.mxu0 0.0
  %463 = vmatmul.mubr.f32.gmra.mrb[0].mxu0 %v157
  %v464 = vpop.f32.mrb[0].mxu0
  %v465 = vadd.f32 %v84, %v464
  %v466 = vpop.f32.mrb[0].mxu0
  %467 = vmatprep.mubr.f32.mxu0 0.0
  %468 = vmatmul.mubr.f32.gmra.mrb[0].mxu0 %v160
  %v469 = vpop.f32.mrb[0].mxu0
  %v470 = vadd.f32 %v84, %v469
  %v471 = vpop.f32.mrb[0].mxu0
  %472 = vmatprep.mubr.f32.mxu0 0.0
  %473 = vmatmul.mubr.f32.gmra.mrb[0].mxu0 %v163
  %v474 = vpop.f32.mrb[0].mxu0
  %v475 = vadd.f32 %v84, %v474
  %v476 = vpop.f32.mrb[0].mxu0
  %477 = vmatprep.mubr.f32.mxu0 0.0
  %478 = vmatmul.mubr.f32.gmra.mrb[0].mxu0 %v166
  %v479 = vpop.f32.mrb[0].mxu0
  %v480 = vadd.f32 %v84, %v479
  %v481 = vpop.f32.mrb[0].mxu0
  %482 = vmatprep.mubr.f32.mxu0 0.0
  %483 = vmatmul.mubr.f32.gmra.mrb[0].mxu0 %v169
  %v484 = vpop.f32.mrb[0].mxu0
  %v485 = vadd.f32 %v84, %v484
  %v486 = vpop.f32.mrb[0].mxu0
  %487 = vmatprep.mubr.f32.mxu0 0.0
  %488 = vmatmul.mubr.f32.gmra.mrb[0].mxu0 %v172
  %v489 = vpop.f32.mrb[0].mxu0
  %v490 = vadd.f32 %v84, %v489
  %v491 = vpop.f32.mrb[0].mxu0
  %492 = vmatprep.mubr.f32.mxu0 0.0
  %493 = vmatmul.mubr.f32.gmra.mrb[0].mxu0 %v175
  %v494 = vpop.f32.mrb[0].mxu0
  %v495 = vadd.f32 %v84, %v494
  %v496 = vpop.f32.mrb[0].mxu0
  %497 = vmatprep.mubr.f32.mxu0 0.0
  %498 = vmatmul.mubr.f32.gmra.mrb[0].mxu0 %v178
  %v499 = vpop.f32.mrb[0].mxu0
  %v500 = vadd.f32 %v84, %v499
  %v501 = vpop.f32.mrb[0].mxu0
  %502 = vmatprep.mubr.f32.mxu0 0.0
  %503 = vmatmul.mubr.f32.gmra.mrb[0].mxu0 %v181
  %v504 = vpop.f32.mrb[0].mxu0
  %v505 = vadd.f32 %v84, %v504
  %v506 = vpop.f32.mrb[0].mxu0
  %507 = vmatprep.mubr.f32.mxu0 0.0
  %508 = vmatmul.mubr.f32.gmra.mrb[0].mxu0 %v184
  %v509 = vpop.f32.mrb[0].mxu0
  %v510 = vadd.f32 %v84, %v509
  %v511 = vpop.f32.mrb[0].mxu0
  %512 = vmatprep.mubr.f32.mxu0 0.0
  %513 = vmatmul.mubr.f32.gmra.mrb[0].mxu0 %v187
  %v514 = vpop.f32.mrb[0].mxu0
  %v515 = vadd.f32 %v84, %v514
  %v516 = vpop.f32.mrb[0].mxu0
  %517 = vmatprep.mubr.f32.mxu0 0.0
  %518 = vmatmul.mubr.f32.gmra.mrb[0].mxu0 %v190
  %v519 = vpop.f32.mrb[0].mxu0
  %v520 = vadd.f32 %v84, %v519
  %v521 = vpop.f32.mrb[0].mxu0
  %522 = vmatprep.mubr.f32.mxu0 0.0
  %523 = vmatmul.mubr.f32.gmra.mrb[0].mxu0 %v193
  %v524 = vpop.f32.mrb[0].mxu0
  %v525 = vadd.f32 %v84, %v524
  %v526 = vpop.f32.mrb[0].mxu0
  %527 = vmatprep.mubr.f32.mxu0 0.0
  %528 = vmatmul.mubr.f32.gmra.mrb[0].mxu0 %v196
  %v529 = vpop.f32.mrb[0].mxu0
  %v530 = vadd.f32 %v84, %v529
  %v531 = vpop.f32.mrb[0].mxu0
  %532 = vmatprep.mubr.f32.mxu0 0.0
  %533 = vmatmul.mubr.f32.gmra.mrb[0].mxu0 %v199
  %v534 = vpop.f32.mrb[0].mxu0
  %v535 = vadd.f32 %v84, %v534
  %v536 = vpop.f32.mrb[0].mxu0
  %537 = vmatprep.mubr.f32.mxu0 0.0
  %538 = vmatmul.mubr.f32.gmra.mrb[0].mxu0 %v202
  %v539 = vpop.f32.mrb[0].mxu0
  %v540 = vadd.f32 %v84, %v539
  %v541 = vpop.f32.mrb[0].mxu0
  %542 = vmatprep.mubr.f32.mxu0 0.0
  %543 = vmatmul.mubr.f32.gmra.mrb[0].mxu0 %v205
  %v544 = vpop.f32.mrb[0].mxu0
  %v545 = vadd.f32 %v84, %v544
  %v546 = vpop.f32.mrb[0].mxu0
  %547 = vmatprep.mubr.f32.mxu0 0.0
  %548 = vmatmul.mubr.f32.gmra.mrb[0].mxu0 %v208
  %v549 = vpop.f32.mrb[0].mxu0
  %v550 = vadd.f32 %v84, %v549
  %v551 = vpop.f32.mrb[0].mxu0
  %552 = vmatprep.mubr.f32.mxu0 0.0
  %553 = vmatmul.mubr.f32.gmra.mrb[0].mxu0 %v211
  %v554 = vpop.f32.mrb[0].mxu0
  %v555 = vadd.f32 %v84, %v554
  %v556 = vpop.f32.mrb[0].mxu0
  %557 = vmatprep.mubr.f32.mxu0 0.0
  %558 = vmatmul.mubr.f32.gmra.mrb[0].mxu0 %v214
  %v559 = vpop.f32.mrb[0].mxu0
  %v560 = vadd.f32 %v84, %v559
  %v561 = vpop.f32.mrb[0].mxu0
  %562 = vmatprep.mubr.f32.mxu0 0.0
  %563 = vmatmul.mubr.f32.gmra.mrb[0].mxu0 %v217
  %v564 = vpop.f32.mrb[0].mxu0
  %v565 = vadd.f32 %v84, %v564
  %v566 = vpop.f32.mrb[0].mxu0
  %567 = vmatprep.mubr.f32.mxu0 0.0
  %568 = vmatmul.mubr.f32.gmra.mrb[0].mxu0 %v220
  %v569 = vpop.f32.mrb[0].mxu0
  %v570 = vadd.f32 %v84, %v569
  %v571 = vpop.f32.mrb[0].mxu0
  %572 = vmatprep.mubr.f32.mxu0 0.0
  %573 = vmatmul.mubr.f32.gmra.mrb[0].mxu0 %v223
  %v574 = vpop.f32.mrb[0].mxu0
  %v575 = vadd.f32 %v84, %v574
  %v576 = vpop.f32.mrb[0].mxu0
  %577 = vmatprep.mubr.f32.mxu0 0.0
  %578 = vmatmul.mubr.f32.gmra.mrb[0].mxu0 %v226
  %v579 = vpop.f32.mrb[0].mxu0
  %v580 = vadd.f32 %v84, %v579
  %v581 = vpop.f32.mrb[0].mxu0
  %582 = vmatprep.mubr.f32.mxu0 0.0
  %583 = vmatmul.mubr.f32.gmra.mrb[0].mxu0 %v229
  %v584 = vpop.f32.mrb[0].mxu0
  %v585 = vadd.f32 %v84, %v584
  %v586 = vpop.f32.mrb[0].mxu0
  %587 = vmatprep.mubr.f32.mxu0 0.0
  %588 = vmatmul.mubr.f32.gmra.mrb[0].mxu0 %v232
  %v589 = vpop.f32.mrb[0].mxu0
  %v590 = vadd.f32 %v84, %v589
  %v591 = vpop.f32.mrb[0].mxu0
  %592 = vmatprep.mubr.f32.mxu0 0.0
  %593 = vmatmul.mubr.f32.gmra.mrb[0].mxu0 %v235
  %v594 = vpop.f32.mrb[0].mxu0
  %v595 = vadd.f32 %v84, %v594
  %v596 = vpop.f32.mrb[0].mxu0
  %597 = vmatprep.mubr.f32.mxu0 0.0
  %598 = vmatmul.mubr.f32.gmra.mrb[0].mxu0 %v238
  %v599 = vpop.f32.mrb[0].mxu0
  %v600 = vadd.f32 %v84, %v599
  %v601 = vpop.f32.mrb[0].mxu0
  %602 = vmatprep.mubr.f32.mxu0 0.0
  %603 = vmatmul.mubr.f32.gmra.mrb[0].mxu0 %v241
  %v604 = vpop.f32.mrb[0].mxu0
  %v605 = vadd.f32 %v84, %v604
  %v606 = vpop.f32.mrb[0].mxu0
  %607 = vmatprep.mubr.f32.mxu0 0.0
  %608 = vmatmul.mubr.f32.gmra.mrb[0].mxu0 %v244
  %v609 = vpop.f32.mrb[0].mxu0
  %v610 = vadd.f32 %v84, %v609
  %v611 = vpop.f32.mrb[0].mxu0
  %612 = vmatprep.mubr.f32.mxu0 0.0
  %613 = vmatmul.mubr.f32.gmra.mrb[0].mxu0 %v247
  %v614 = vpop.f32.mrb[0].mxu0
  %v615 = vadd.f32 %v84, %v614
  %v616 = vpop.f32.mrb[0].mxu0
  %617 = vmatprep.mubr.f32.mxu0 0.0
  %618 = vmatmul.mubr.f32.gmra.mrb[0].mxu0 %v250
  %v619 = vpop.f32.mrb[0].mxu0
  %v620 = vadd.f32 %v84, %v619
  %v621 = vpop.f32.mrb[0].mxu0
  %622 = vmatprep.mubr.f32.mxu0 0.0
  %623 = vmatmul.mubr.f32.gmra.mrb[0].mxu0 %v253
  %v624 = vpop.f32.mrb[0].mxu0
  %v625 = vadd.f32 %v84, %v624
  %v626 = vpop.f32.mrb[0].mxu0
  %627 = vmatprep.mubr.f32.mxu0 0.0
  %628 = vmatmul.mubr.f32.gmra.mrb[0].mxu0 %v256
  %v629 = vpop.f32.mrb[0].mxu0
  %v630 = vadd.f32 %v84, %v629
  %v631 = vpop.f32.mrb[0].mxu0
  %632 = vmatprep.mubr.f32.mxu0 0.0
  %633 = vmatmul.mubr.f32.gmra.mrb[0].mxu0 %v259
  %v634 = vpop.f32.mrb[0].mxu0
  %v635 = vadd.f32 %v84, %v634
  %v636 = vpop.f32.mrb[0].mxu0
  %637 = vmatprep.mubr.f32.mxu0 0.0
  %638 = vmatmul.mubr.f32.gmra.mrb[0].mxu0 %v262
  %v639 = vpop.f32.mrb[0].mxu0
  %v640 = vadd.f32 %v84, %v639
  %v641 = vpop.f32.mrb[0].mxu0
  %642 = vmatprep.mubr.f32.mxu0 0.0
  %643 = vmatmul.mubr.f32.gmra.mrb[0].mxu0 %v265
  %v644 = vpop.f32.mrb[0].mxu0
  %v645 = vadd.f32 %v84, %v644
  %v646 = vpop.f32.mrb[0].mxu0
  %647 = vmatprep.mubr.f32.mxu0 0.0
  %648 = vmatmul.mubr.f32.gmra.mrb[0].mxu0 %v268
  %v649 = vpop.f32.mrb[0].mxu0
  %v650 = vadd.f32 %v84, %v649
  %v651 = vpop.f32.mrb[0].mxu0
  %652 = vmatprep.mubr.f32.mxu0 0.0
  %653 = vmatmul.mubr.f32.gmra.mrb[0].mxu0 %v271
  %v654 = vpop.f32.mrb[0].mxu0
  %v655 = vadd.f32 %v84, %v654
  %v656 = vpop.f32.mrb[0].mxu0
  %657 = vmatprep.mubr.f32.mxu0 0.0
  %658 = vmatmul.mubr.f32.gmra.mrb[0].mxu0 %v274
  %v659 = vpop.f32.mrb[0].mxu0
  %v660 = vadd.f32 %v84, %v659
  %v661 = vpop.f32.mrb[0].mxu0
  %662 = vmatprep.mubr.f32.mxu0 0.0
  %663 = vmatmul.mubr.f32.gmra.mrb[0].mxu0 %v277
  %v664 = vpop.f32.mrb[0].mxu0
  %v665 = vadd.f32 %v84, %v664
  %v666 = vpop.f32.mrb[0].mxu0
  %667 = vdwg.mxu0
  %vm668 = vcmask 48128
  %669 = vst.msk [vmem:[%s3] sm:$0xff] %vm668, %v350
  %670 = vst.msk [vmem:[%s3 + $0x8] sm:$0xff] %vm668, %v355
  %671 = vst.msk [vmem:[%s3 + $0x10] sm:$0xff] %vm668, %v360
  %672 = vst.msk [vmem:[%s3 + $0x18] sm:$0xff] %vm668, %v365
  %673 = vst.msk [vmem:[%s3 + $0x20] sm:$0xff] %vm668, %v370
  %674 = vst.msk [vmem:[%s3 + $0x28] sm:$0xff] %vm668, %v375
  %675 = vst.msk [vmem:[%s3 + $0x30] sm:$0xff] %vm668, %v380
  %676 = vst.msk [vmem:[%s3 + $0x38] sm:$0xff] %vm668, %v385
  %677 = vst.msk [vmem:[%s3 + $0x40] sm:$0xff] %vm668, %v390
  %678 = vst.msk [vmem:[%s3 + $0x48] sm:$0xff] %vm668, %v395
  %679 = vst.msk [vmem:[%s3 + $0x50] sm:$0xff] %vm668, %v400
  %680 = vst.msk [vmem:[%s3 + $0x58] sm:$0xff] %vm668, %v405
  %681 = vst.msk [vmem:[%s3 + $0x60] sm:$0xff] %vm668, %v410
  %682 = vst.msk [vmem:[%s3 + $0x68] sm:$0xff] %vm668, %v415
  %683 = vst.msk [vmem:[%s3 + $0x70] sm:$0xff] %vm668, %v420
  %684 = vst.msk [vmem:[%s3 + $0x78] sm:$0xff] %vm668, %v425
  %685 = vst.msk [vmem:[%s3 + $0x80] sm:$0xff] %vm668, %v430
  %686 = vst.msk [vmem:[%s3 + $0x88] sm:$0xff] %vm668, %v435
  %687 = vst.msk [vmem:[%s3 + $0x90] sm:$0xff] %vm668, %v440
  %688 = vst.msk [vmem:[%s3 + $0x98] sm:$0xff] %vm668, %v445
  %689 = vst.msk [vmem:[%s3 + $0xa0] sm:$0xff] %vm668, %v450
  %690 = vst.msk [vmem:[%s3 + $0xa8] sm:$0xff] %vm668, %v455
  %691 = vst.msk [vmem:[%s3 + $0xb0] sm:$0xff] %vm668, %v460
  %692 = vst.msk [vmem:[%s3 + $0xb8] sm:$0xff] %vm668, %v465
  %693 = vst.msk [vmem:[%s3 + $0xc0] sm:$0xff] %vm668, %v470
  %694 = vst.msk [vmem:[%s3 + $0xc8] sm:$0xff] %vm668, %v475
  %695 = vst.msk [vmem:[%s3 + $0xd0] sm:$0xff] %vm668, %v480
  %696 = vst.msk [vmem:[%s3 + $0xd8] sm:$0xff] %vm668, %v485
  %697 = vst.msk [vmem:[%s3 + $0xe0] sm:$0xff] %vm668, %v490
  %698 = vst.msk [vmem:[%s3 + $0xe8] sm:$0xff] %vm668, %v495
  %699 = vst.msk [vmem:[%s3 + $0xf0] sm:$0xff] %vm668, %v500
  %700 = vst.msk [vmem:[%s3 + $0xf8] sm:$0xff] %vm668, %v505
  %701 = vst.msk [vmem:[%s3 + $0x100] sm:$0xff] %vm668, %v510
  %702 = vst.msk [vmem:[%s3 + $0x108] sm:$0xff] %vm668, %v515
  %703 = vst.msk [vmem:[%s3 + $0x110] sm:$0xff] %vm668, %v520
  %704 = vst.msk [vmem:[%s3 + $0x118] sm:$0xff] %vm668, %v525
  %705 = vst.msk [vmem:[%s3 + $0x120] sm:$0xff] %vm668, %v530
  %706 = vst.msk [vmem:[%s3 + $0x128] sm:$0xff] %vm668, %v535
  %707 = vst.msk [vmem:[%s3 + $0x130] sm:$0xff] %vm668, %v540
  %708 = vst.msk [vmem:[%s3 + $0x138] sm:$0xff] %vm668, %v545
  %709 = vst.msk [vmem:[%s3 + $0x140] sm:$0xff] %vm668, %v550
  %710 = vst.msk [vmem:[%s3 + $0x148] sm:$0xff] %vm668, %v555
  %711 = vst.msk [vmem:[%s3 + $0x150] sm:$0xff] %vm668, %v560
  %712 = vst.msk [vmem:[%s3 + $0x158] sm:$0xff] %vm668, %v565
  %713 = vst.msk [vmem:[%s3 + $0x160] sm:$0xff] %vm668, %v570
  %714 = vst.msk [vmem:[%s3 + $0x168] sm:$0xff] %vm668, %v575
  %715 = vst.msk [vmem:[%s3 + $0x170] sm:$0xff] %vm668, %v580
  %716 = vst.msk [vmem:[%s3 + $0x178] sm:$0xff] %vm668, %v585
  %717 = vst.msk [vmem:[%s3 + $0x180] sm:$0xff] %vm668, %v590
  %718 = vst.msk [vmem:[%s3 + $0x188] sm:$0xff] %vm668, %v595
  %719 = vst.msk [vmem:[%s3 + $0x190] sm:$0xff] %vm668, %v600
  %720 = vst.msk [vmem:[%s3 + $0x198] sm:$0xff] %vm668, %v605
  %721 = vst.msk [vmem:[%s3 + $0x1a0] sm:$0xff] %vm668, %v610
  %722 = vst.msk [vmem:[%s3 + $0x1a8] sm:$0xff] %vm668, %v615
  %723 = vst.msk [vmem:[%s3 + $0x1b0] sm:$0xff] %vm668, %v620
  %724 = vst.msk [vmem:[%s3 + $0x1b8] sm:$0xff] %vm668, %v625
  %725 = vst.msk [vmem:[%s3 + $0x1c0] sm:$0xff] %vm668, %v630
  %726 = vst.msk [vmem:[%s3 + $0x1c8] sm:$0xff] %vm668, %v635
  %727 = vst.msk [vmem:[%s3 + $0x1d0] sm:$0xff] %vm668, %v640
  %728 = vst.msk [vmem:[%s3 + $0x1d8] sm:$0xff] %vm668, %v645
  %729 = vst.msk [vmem:[%s3 + $0x1e0] sm:$0xff] %vm668, %v650
  %730 = vst.msk [vmem:[%s3 + $0x1e8] sm:$0xff] %vm668, %v655
  %731 = vst.msk [vmem:[%s3 + $0x1f0] sm:$0xff] %vm668, %v660
  %732 = vst.msk [vmem:[%s3 + $0x1f8] sm:$0xff] %vm668, %v665
  // Predicated region
  $region14: #{_lambda_.3} parent=0 // pred_check
    _
  $region15: #{_lambda_.3} parent=0 // pred_check_branch
    %734 = sbr.rel (0) target = $region17
  $region16: #{_lambda_.3} parent=0 // pred_region
    _
  $region17: #{_lambda_.3} parent=0 // pred_fallthru
    _
  // Predicated region
  $region18: #{_lambda_.3} parent=0 // pred_check
    _
  $region19: #{_lambda_.3} parent=0 // pred_check_branch
    %736 = sbr.rel (0) target = $region21
  $region20: #{_lambda_.3} parent=0 // pred_region
    _
  $region21: #{_lambda_.3} parent=0 // pred_fallthru
    _

// kernel: _lambda_.4
$region0: #{_lambda_.4}
  #allocation0 [shape = 'u32[]', space=smem, size = 0x4, offset = 0x4, fixed_abs, tag = 'smem constant byte address 0x4 - core index']
  #allocation1 [shape = 'u32[144,128]{1,0:T(1,128)}', space=vmem, size = 0x12000, scoped, tag = 'internal scratch']
  %s0 = inlined_call_operand.vmem [shape: bf16[512,162], index: 0, kind: input, shape index: {}]
  %s1 = inlined_call_operand.vmem [shape: bf16[512,16], index: 1, kind: input, shape index: {}]
  %s2 = inlined_call_operand.vmem [shape: bf16[162,32], index: 2, kind: input, shape index: {}]
  %s3 = inlined_call_operand.vmem [shape: f32[1,32], index: 3, kind: input, shape index: {}]
  %s4 = inlined_call_operand.vmem [shape: bf16[32,32], index: 4, kind: input, shape index: {}]
  %s5 = inlined_call_operand.vmem [shape: bf16[16,32], index: 5, kind: input, shape index: {}]
  %s6 = inlined_call_operand.vmem [shape: f32[1,32], index: 6, kind: input, shape index: {}]
  %s7 = inlined_call_operand.vmem [shape: bf16[512,32], index: 7, kind: output, shape index: {}]
  %s8 = sld [smem:[#allocation0]]
  $region38: #{_lambda_.4} parent=0
    _
  %s10 = ssub.s32 1, %s8
  %s11 = scalar_select 0, %s10, %s8
  // Predicated region
  $region2: #{_lambda_.4} parent=0 // pred_check
    _
  $region3: #{_lambda_.4} parent=0 // pred_check_branch
    %13 = sbr.rel (0) target = $region5
  $region4: #{_lambda_.4} parent=0 // pred_region
    _
  $region5: #{_lambda_.4} parent=0 // pred_fallthru
    _
  // Predicated region
  $region6: #{_lambda_.4} parent=0 // pred_check
    _
  $region7: #{_lambda_.4} parent=0 // pred_check_branch
    %15 = sbr.rel (0) target = $region9
  $region8: #{_lambda_.4} parent=0 // pred_region
    _
  $region9: #{_lambda_.4} parent=0 // pred_fallthru
    _
  // Predicated region
  $region10: #{_lambda_.4} parent=0 // pred_check
    _
  $region11: #{_lambda_.4} parent=0 // pred_check_branch
    %17 = sbr.rel (0) target = $region13
  $region12: #{_lambda_.4} parent=0 // pred_region
    _
  $region13: #{_lambda_.4} parent=0 // pred_fallthru
    _
  // Predicated region
  $region14: #{_lambda_.4} parent=0 // pred_check
    _
  $region15: #{_lambda_.4} parent=0 // pred_check_branch
    %19 = sbr.rel (0) target = $region17
  $region16: #{_lambda_.4} parent=0 // pred_region
    _
  $region17: #{_lambda_.4} parent=0 // pred_fallthru
    _
  // Predicated region
  $region18: #{_lambda_.4} parent=0 // pred_check
    _
  $region19: #{_lambda_.4} parent=0 // pred_check_branch
    %21 = sbr.rel (0) target = $region21
  $region20: #{_lambda_.4} parent=0 // pred_region
    _
  $region21: #{_lambda_.4} parent=0 // pred_fallthru
    _
  // Predicated region
  $region22: #{_lambda_.4} parent=0 // pred_check
    _
  $region23: #{_lambda_.4} parent=0 // pred_check_branch
    %23 = sbr.rel (0) target = $region25
  $region24: #{_lambda_.4} parent=0 // pred_region
    _
  $region25: #{_lambda_.4} parent=0 // pred_fallthru
    _
  // Predicated region
  $region26: #{_lambda_.4} parent=0 // pred_check
    _
  $region27: #{_lambda_.4} parent=0 // pred_check_branch
    %25 = sbr.rel (0) target = $region29
  $region28: #{_lambda_.4} parent=0 // pred_region
    _
  $region29: #{_lambda_.4} parent=0 // pred_fallthru
    _
  %v27 = vld [vmem:[%s0] sm:$0xff]
  %v28 = vld [vmem:[%s0 + $0x8] sm:$0xff]
  %v29 = vld [vmem:[%s0 + $0x10] sm:$0xff]
  %v30 = vld [vmem:[%s0 + $0x18] sm:$0xff]
  %v31 = vld [vmem:[%s0 + $0x20] sm:$0xff]
  %v32 = vld [vmem:[%s0 + $0x28] sm:$0xff]
  %v33 = vld [vmem:[%s0 + $0x30] sm:$0xff]
  %v34 = vld [vmem:[%s0 + $0x38] sm:$0xff]
  %v35 = vld [vmem:[%s0 + $0x40] sm:$0xff]
  %v36 = vld [vmem:[%s0 + $0x48] sm:$0xff]
  %v37 = vld [vmem:[%s0 + $0x50] sm:$0xff]
  %v38 = vld [vmem:[%s0 + $0x58] sm:$0xff]
  %v39 = vld [vmem:[%s0 + $0x60] sm:$0xff]
  %v40 = vld [vmem:[%s0 + $0x68] sm:$0xff]
  %v41 = vld [vmem:[%s0 + $0x70] sm:$0xff]
  %v42 = vld [vmem:[%s0 + $0x78] sm:$0xff]
  %v43 = vld [vmem:[%s0 + $0x80] sm:$0xff]
  %v44 = vld [vmem:[%s0 + $0x88] sm:$0xff]
  %v45 = vld [vmem:[%s0 + $0x90] sm:$0xff]
  %v46 = vld [vmem:[%s0 + $0x98] sm:$0xff]
  %v47 = vld [vmem:[%s0 + $0xa0] sm:$0xff]
  %v48 = vld [vmem:[%s0 + $0xa8] sm:$0xff]
  %v49 = vld [vmem:[%s0 + $0xb0] sm:$0xff]
  %v50 = vld [vmem:[%s0 + $0xb8] sm:$0xff]
  %v51 = vld [vmem:[%s0 + $0xc0] sm:$0xff]
  %v52 = vld [vmem:[%s0 + $0xc8] sm:$0xff]
  %v53 = vld [vmem:[%s0 + $0xd0] sm:$0xff]
  %v54 = vld [vmem:[%s0 + $0xd8] sm:$0xff]
  %v55 = vld [vmem:[%s0 + $0xe0] sm:$0xff]
  %v56 = vld [vmem:[%s0 + $0xe8] sm:$0xff]
  %v57 = vld [vmem:[%s0 + $0xf0] sm:$0xff]
  %v58 = vld [vmem:[%s0 + $0xf8] sm:$0xff]
  %v59 = vld [vmem:[%s0 + $0x100] sm:$0xff]
  %v60 = vld [vmem:[%s0 + $0x108] sm:$0xff]
  %v61 = vld [vmem:[%s0 + $0x110] sm:$0xff]
  %v62 = vld [vmem:[%s0 + $0x118] sm:$0xff]
  %v63 = vld [vmem:[%s0 + $0x120] sm:$0xff]
  %v64 = vld [vmem:[%s0 + $0x128] sm:$0xff]
  %v65 = vld [vmem:[%s0 + $0x130] sm:$0xff]
  %v66 = vld [vmem:[%s0 + $0x138] sm:$0xff]
  %v67 = vld [vmem:[%s0 + $0x140] sm:$0xff]
  %v68 = vld [vmem:[%s0 + $0x148] sm:$0xff]
  %v69 = vld [vmem:[%s0 + $0x150] sm:$0xff]
  %v70 = vld [vmem:[%s0 + $0x158] sm:$0xff]
  %v71 = vld [vmem:[%s0 + $0x160] sm:$0xff]
  %v72 = vld [vmem:[%s0 + $0x168] sm:$0xff]
  %v73 = vld [vmem:[%s0 + $0x170] sm:$0xff]
  %v74 = vld [vmem:[%s0 + $0x178] sm:$0xff]
  %v75 = vld [vmem:[%s0 + $0x180] sm:$0xff]
  %v76 = vld [vmem:[%s0 + $0x188] sm:$0xff]
  %v77 = vld [vmem:[%s0 + $0x190] sm:$0xff]
  %v78 = vld [vmem:[%s0 + $0x198] sm:$0xff]
  %v79 = vld [vmem:[%s0 + $0x1a0] sm:$0xff]
  %v80 = vld [vmem:[%s0 + $0x1a8] sm:$0xff]
  %v81 = vld [vmem:[%s0 + $0x1b0] sm:$0xff]
  %v82 = vld [vmem:[%s0 + $0x1b8] sm:$0xff]
  %v83 = vld [vmem:[%s0 + $0x1c0] sm:$0xff]
  %v84 = vld [vmem:[%s0 + $0x1c8] sm:$0xff]
  %v85 = vld [vmem:[%s0 + $0x1d0] sm:$0xff]
  %v86 = vld [vmem:[%s0 + $0x1d8] sm:$0xff]
  %v87 = vld [vmem:[%s0 + $0x1e0] sm:$0xff]
  %v88 = vld [vmem:[%s0 + $0x1e8] sm:$0xff]
  %v89 = vld [vmem:[%s0 + $0x1f0] sm:$0xff]
  %v90 = vld [vmem:[%s0 + $0x1f8] sm:$0xff]
  %v91 = vld [vmem:[%s2] sm:$0xf]
  %v92 = vld [vmem:[%s2 + $0x4] sm:$0xf]
  %v93 = vld [vmem:[%s2 + $0x8] sm:$0xf]
  %v94 = vld [vmem:[%s2 + $0xc] sm:$0xf]
  %v95 = vld [vmem:[%s2 + $0x10] sm:$0xf]
  %v96 = vld [vmem:[%s2 + $0x14] sm:$0xf]
  %v97 = vld [vmem:[%s2 + $0x18] sm:$0xf]
  %v98 = vld [vmem:[%s2 + $0x1c] sm:$0xf]
  %v99 = vld [vmem:[%s2 + $0x20] sm:$0xf]
  %v100 = vld [vmem:[%s2 + $0x24] sm:$0xf]
  %v101 = vld [vmem:[%s2 + $0x28] sm:$0xf]
  %v102 = vld [vmem:[%s2 + $0x2c] sm:$0xf]
  %v103 = vld [vmem:[%s2 + $0x30] sm:$0xf]
  %v104 = vld [vmem:[%s2 + $0x34] sm:$0xf]
  %v105 = vld [vmem:[%s2 + $0x38] sm:$0xf]
  %v106 = vld [vmem:[%s2 + $0x3c] sm:$0xf]
  %v107 = vld [vmem:[%s2 + $0x40] sm:$0xf]
  %v108 = vld [vmem:[%s2 + $0x44] sm:$0xf]
  %v109 = vld [vmem:[%s2 + $0x48] sm:$0xf]
  %v110 = vld [vmem:[%s2 + $0x4c] sm:$0xf]
  %v111 = vld [vmem:[%s2 + $0x50] sm:$0x1]
  %v112 = vld [vmem:[%s3] sm:$0x1]
  %v114 = vlaneseq
  %v115 = vshrl.u32 %v114, 7
  %v116 = vsub.s32 0, %v115
  %v117 = vrot.slane %v112, %v116
  %v183 = vunpack.c.l.b16 %v27
  %v184 = vunpack.c.h.b16 %v27
  %v185 = vunpack.c.l.b16 %v28
  %v186 = vunpack.c.h.b16 %v28
  %v187 = vunpack.c.l.b16 %v29
  %v188 = vunpack.c.h.b16 %v29
  %v189 = vunpack.c.l.b16 %v30
  %v190 = vunpack.c.h.b16 %v30
  %v191 = vunpack.c.l.b16 %v31
  %v192 = vunpack.c.h.b16 %v31
  %v193 = vunpack.c.l.b16 %v32
  %v194 = vunpack.c.h.b16 %v32
  %v195 = vunpack.c.l.b16 %v33
  %v196 = vunpack.c.h.b16 %v33
  %v197 = vunpack.c.l.b16 %v34
  %v198 = vunpack.c.h.b16 %v34
  %v199 = vunpack.c.l.b16 %v35
  %v200 = vunpack.c.h.b16 %v35
  %v201 = vunpack.c.l.b16 %v36
  %v202 = vunpack.c.h.b16 %v36
  %v203 = vunpack.c.l.b16 %v37
  %v204 = vunpack.c.h.b16 %v37
  %v205 = vunpack.c.l.b16 %v38
  %v206 = vunpack.c.h.b16 %v38
  %v207 = vunpack.c.l.b16 %v39
  %v208 = vunpack.c.h.b16 %v39
  %v209 = vunpack.c.l.b16 %v40
  %v210 = vunpack.c.h.b16 %v40
  %v211 = vunpack.c.l.b16 %v41
  %v212 = vunpack.c.h.b16 %v41
  %v213 = vunpack.c.l.b16 %v42
  %v214 = vunpack.c.h.b16 %v42
  %v215 = vunpack.c.l.b16 %v43
  %v216 = vunpack.c.h.b16 %v43
  %v217 = vunpack.c.l.b16 %v44
  %v218 = vunpack.c.h.b16 %v44
  %v219 = vunpack.c.l.b16 %v45
  %v220 = vunpack.c.h.b16 %v45
  %v221 = vunpack.c.l.b16 %v46
  %v222 = vunpack.c.h.b16 %v46
  %v223 = vunpack.c.l.b16 %v47
  %v224 = vunpack.c.h.b16 %v47
  %v225 = vunpack.c.l.b16 %v48
  %v226 = vunpack.c.h.b16 %v48
  %v227 = vunpack.c.l.b16 %v49
  %v228 = vunpack.c.h.b16 %v49
  %v229 = vunpack.c.l.b16 %v50
  %v230 = vunpack.c.h.b16 %v50
  %v231 = vunpack.c.l.b16 %v51
  %v232 = vunpack.c.h.b16 %v51
  %v233 = vunpack.c.l.b16 %v52
  %v234 = vunpack.c.h.b16 %v52
  %v235 = vunpack.c.l.b16 %v53
  %v236 = vunpack.c.h.b16 %v53
  %v237 = vunpack.c.l.b16 %v54
  %v238 = vunpack.c.h.b16 %v54
  %v239 = vunpack.c.l.b16 %v55
  %v240 = vunpack.c.h.b16 %v55
  %v241 = vunpack.c.l.b16 %v56
  %v242 = vunpack.c.h.b16 %v56
  %v243 = vunpack.c.l.b16 %v57
  %v244 = vunpack.c.h.b16 %v57
  %v245 = vunpack.c.l.b16 %v58
  %v246 = vunpack.c.h.b16 %v58
  %v247 = vunpack.c.l.b16 %v59
  %v248 = vunpack.c.h.b16 %v59
  %v249 = vunpack.c.l.b16 %v60
  %v250 = vunpack.c.h.b16 %v60
  %v251 = vunpack.c.l.b16 %v61
  %v252 = vunpack.c.h.b16 %v61
  %v253 = vunpack.c.l.b16 %v62
  %v254 = vunpack.c.h.b16 %v62
  %v255 = vunpack.c.l.b16 %v63
  %v256 = vunpack.c.h.b16 %v63
  %v257 = vunpack.c.l.b16 %v64
  %v258 = vunpack.c.h.b16 %v64
  %v259 = vunpack.c.l.b16 %v65
  %v260 = vunpack.c.h.b16 %v65
  %v261 = vunpack.c.l.b16 %v66
  %v262 = vunpack.c.h.b16 %v66
  %v263 = vunpack.c.l.b16 %v67
  %v264 = vunpack.c.h.b16 %v67
  %v265 = vunpack.c.l.b16 %v68
  %v266 = vunpack.c.h.b16 %v68
  %v267 = vunpack.c.l.b16 %v69
  %v268 = vunpack.c.h.b16 %v69
  %v269 = vunpack.c.l.b16 %v70
  %v270 = vunpack.c.h.b16 %v70
  %v271 = vunpack.c.l.b16 %v71
  %v272 = vunpack.c.h.b16 %v71
  %v273 = vunpack.c.l.b16 %v72
  %v274 = vunpack.c.h.b16 %v72
  %v275 = vunpack.c.l.b16 %v73
  %v276 = vunpack.c.h.b16 %v73
  %v277 = vunpack.c.l.b16 %v74
  %v278 = vunpack.c.h.b16 %v74
  %v279 = vunpack.c.l.b16 %v75
  %v280 = vunpack.c.h.b16 %v75
  %v281 = vunpack.c.l.b16 %v76
  %v282 = vunpack.c.h.b16 %v76
  %v283 = vunpack.c.l.b16 %v77
  %v284 = vunpack.c.h.b16 %v77
  %v285 = vunpack.c.l.b16 %v78
  %v286 = vunpack.c.h.b16 %v78
  %v287 = vunpack.c.l.b16 %v79
  %v288 = vunpack.c.h.b16 %v79
  %v289 = vunpack.c.l.b16 %v80
  %v290 = vunpack.c.h.b16 %v80
  %v291 = vunpack.c.l.b16 %v81
  %v292 = vunpack.c.h.b16 %v81
  %v293 = vunpack.c.l.b16 %v82
  %v294 = vunpack.c.h.b16 %v82
  %v295 = vunpack.c.l.b16 %v83
  %v296 = vunpack.c.h.b16 %v83
  %v297 = vunpack.c.l.b16 %v84
  %v298 = vunpack.c.h.b16 %v84
  %v299 = vunpack.c.l.b16 %v85
  %v300 = vunpack.c.h.b16 %v85
  %v301 = vunpack.c.l.b16 %v86
  %v302 = vunpack.c.h.b16 %v86
  %v303 = vunpack.c.l.b16 %v87
  %v304 = vunpack.c.h.b16 %v87
  %v305 = vunpack.c.l.b16 %v88
  %v306 = vunpack.c.h.b16 %v88
  %v307 = vunpack.c.l.b16 %v89
  %v308 = vunpack.c.h.b16 %v89
  %v309 = vunpack.c.l.b16 %v90
  %v310 = vunpack.c.h.b16 %v90
  %v311 = vpack.c.b16 %v185, %v183
  %v312 = vpack.c.b16 %v186, %v184
  %v313 = vpack.c.b16 %v189, %v187
  %v314 = vpack.c.b16 %v190, %v188
  %v315 = vpack.c.b16 %v193, %v191
  %v316 = vpack.c.b16 %v194, %v192
  %v317 = vpack.c.b16 %v197, %v195
  %v318 = vpack.c.b16 %v198, %v196
  %v319 = vpack.c.b16 %v201, %v199
  %v320 = vpack.c.b16 %v202, %v200
  %v321 = vpack.c.b16 %v205, %v203
  %v322 = vpack.c.b16 %v206, %v204
  %v323 = vpack.c.b16 %v209, %v207
  %v324 = vpack.c.b16 %v210, %v208
  %v325 = vpack.c.b16 %v213, %v211
  %v326 = vpack.c.b16 %v214, %v212
  %v327 = vpack.c.b16 %v217, %v215
  %v328 = vpack.c.b16 %v218, %v216
  %v329 = vpack.c.b16 %v221, %v219
  %v330 = vpack.c.b16 %v222, %v220
  %v331 = vpack.c.b16 %v225, %v223
  %v332 = vpack.c.b16 %v226, %v224
  %v333 = vpack.c.b16 %v229, %v227
  %v334 = vpack.c.b16 %v230, %v228
  %v335 = vpack.c.b16 %v233, %v231
  %v336 = vpack.c.b16 %v234, %v232
  %v337 = vpack.c.b16 %v237, %v235
  %v338 = vpack.c.b16 %v238, %v236
  %v339 = vpack.c.b16 %v241, %v239
  %v340 = vpack.c.b16 %v242, %v240
  %v341 = vpack.c.b16 %v245, %v243
  %v342 = vpack.c.b16 %v246, %v244
  %v343 = vpack.c.b16 %v249, %v247
  %v344 = vpack.c.b16 %v250, %v248
  %v345 = vpack.c.b16 %v253, %v251
  %v346 = vpack.c.b16 %v254, %v252
  %v347 = vpack.c.b16 %v257, %v255
  %v348 = vpack.c.b16 %v258, %v256
  %v349 = vpack.c.b16 %v261, %v259
  %v350 = vpack.c.b16 %v262, %v260
  %v351 = vpack.c.b16 %v265, %v263
  %v352 = vpack.c.b16 %v266, %v264
  %v353 = vpack.c.b16 %v269, %v267
  %v354 = vpack.c.b16 %v270, %v268
  %v355 = vpack.c.b16 %v273, %v271
  %v356 = vpack.c.b16 %v274, %v272
  %v357 = vpack.c.b16 %v277, %v275
  %v358 = vpack.c.b16 %v278, %v276
  %v359 = vpack.c.b16 %v281, %v279
  %v360 = vpack.c.b16 %v282, %v280
  %v361 = vpack.c.b16 %v285, %v283
  %v362 = vpack.c.b16 %v286, %v284
  %v363 = vpack.c.b16 %v289, %v287
  %v364 = vpack.c.b16 %v290, %v288
  %v365 = vpack.c.b16 %v293, %v291
  %v366 = vpack.c.b16 %v294, %v292
  %v367 = vpack.c.b16 %v297, %v295
  %v368 = vpack.c.b16 %v298, %v296
  %v369 = vpack.c.b16 %v301, %v299
  %v370 = vpack.c.b16 %v302, %v300
  %v371 = vpack.c.b16 %v305, %v303
  %v372 = vpack.c.b16 %v306, %v304
  %v373 = vpack.c.b16 %v309, %v307
  %v374 = vpack.c.b16 %v310, %v308
  %v428 = vunpack.c.l.b16 %v91
  %v429 = vunpack.c.l.b16 %v92
  %v430 = vunpack.c.l.b16 %v93
  %v431 = vunpack.c.l.b16 %v94
  %v432 = vunpack.c.l.b16 %v95
  %v433 = vunpack.c.l.b16 %v96
  %v434 = vunpack.c.l.b16 %v97
  %v435 = vunpack.c.l.b16 %v98
  %v436 = vunpack.c.l.b16 %v99
  %v437 = vunpack.c.l.b16 %v100
  %v438 = vunpack.c.l.b16 %v101
  %v439 = vunpack.c.l.b16 %v102
  %v440 = vunpack.c.l.b16 %v103
  %v441 = vunpack.c.l.b16 %v104
  %v442 = vunpack.c.l.b16 %v105
  %v443 = vunpack.c.l.b16 %v106
  %v444 = vunpack.c.l.b16 %v107
  %v445 = vunpack.c.l.b16 %v108
  %v446 = vunpack.c.l.b16 %v109
  %v447 = vunpack.c.l.b16 %v110
  %v448 = vunpack.c.l.b16 %v111
  %v449 = vpack.c.b16 %v429, %v428
  %v450 = vpack.c.b16 %v431, %v430
  %v451 = vpack.c.b16 %v433, %v432
  %v452 = vpack.c.b16 %v435, %v434
  %v453 = vpack.c.b16 %v437, %v436
  %v454 = vpack.c.b16 %v439, %v438
  %v455 = vpack.c.b16 %v441, %v440
  %v456 = vpack.c.b16 %v443, %v442
  %v457 = vpack.c.b16 %v445, %v444
  %v458 = vpack.c.b16 %v447, %v446
  %v459 = vpack.c.b16 %v448, %v448
  %vm470 = vcmask 277504
  %v472 = vsel %vm470, %v312, 0
  %v475 = vsel %vm470, %v314, 0
  %v478 = vsel %vm470, %v316, 0
  %v481 = vsel %vm470, %v318, 0
  %v484 = vsel %vm470, %v320, 0
  %v487 = vsel %vm470, %v322, 0
  %v490 = vsel %vm470, %v324, 0
  %v493 = vsel %vm470, %v326, 0
  %v496 = vsel %vm470, %v328, 0
  %v499 = vsel %vm470, %v330, 0
  %v502 = vsel %vm470, %v332, 0
  %v505 = vsel %vm470, %v334, 0
  %v508 = vsel %vm470, %v336, 0
  %v511 = vsel %vm470, %v338, 0
  %v514 = vsel %vm470, %v340, 0
  %v517 = vsel %vm470, %v342, 0
  %v520 = vsel %vm470, %v344, 0
  %v523 = vsel %vm470, %v346, 0
  %v526 = vsel %vm470, %v348, 0
  %v529 = vsel %vm470, %v350, 0
  %v532 = vsel %vm470, %v352, 0
  %v535 = vsel %vm470, %v354, 0
  %v538 = vsel %vm470, %v356, 0
  %v541 = vsel %vm470, %v358, 0
  %v544 = vsel %vm470, %v360, 0
  %v547 = vsel %vm470, %v362, 0
  %v550 = vsel %vm470, %v364, 0
  %v553 = vsel %vm470, %v366, 0
  %v556 = vsel %vm470, %v368, 0
  %v559 = vsel %vm470, %v370, 0
  %v562 = vsel %vm470, %v372, 0
  %v565 = vsel %vm470, %v374, 0
  %vm567 = vcmask 1040384
  %v569 = vsel %vm567, %v459, 0
  %571 = vmatprep.subr.bf16.mxu0 0
  %572 = vmatpush1.bf16.msra.mxu0 %v449
  %573 = vmatprep.subr.bf16.mxu0 0
  %574 = vmatpush1.bf16.msra.mxu0 %v450
  %575 = vmatprep.subr.bf16.mxu0 0
  %576 = vmatpush1.bf16.msra.mxu0 %v451
  %577 = vmatprep.subr.bf16.mxu0 0
  %578 = vmatpush1.bf16.msra.mxu0 %v452
  %579 = vmatprep.subr.bf16.mxu0 0
  %580 = vmatpush1.bf16.msra.mxu0 %v453
  %581 = vmatprep.subr.bf16.mxu0 0
  %582 = vmatpush1.bf16.msra.mxu0 %v454
  %583 = vmatprep.subr.bf16.mxu0 0
  %584 = vmatpush1.bf16.msra.mxu0 %v455
  %585 = vmatprep.subr.bf16.mxu0 0
  %586 = vmatpush1.bf16.msra.mxu0 %v456
  %587 = vmatprep.subr.bf16.mxu0 0
  %588 = vmatpush1.bf16.msra.mxu0 %v457
  %589 = vmatprep.subr.bf16.mxu0 0
  %590 = vmatpush1.bf16.msra.mxu0 %v458
  %591 = vmatprep.subr.bf16.mxu0 0
  %592 = vmatpush1.bf16.msra.mxu0 %v569
  %593 = vmatprep.subr.bf16.mxu0 0
  %594 = vmatpush1.bf16.msra.mxu0 0
  %595 = vmatprep.subr.bf16.mxu0 0
  %596 = vmatpush1.bf16.msra.mxu0 0
  %597 = vmatprep.subr.bf16.mxu0 0
  %598 = vmatpush1.bf16.msra.mxu0 0
  %599 = vmatprep.subr.bf16.mxu0 0
  %600 = vmatpush1.bf16.msra.mxu0 0
  %601 = vmatprep.subr.bf16.mxu0 0
  %602 = vmatpush1.bf16.msra.mxu0 0
  %603 = vmatprep.mubr.bf16.mxu0 %v472
  %604 = vmatmul.mubr.bf16.gmra.mrb[0].mxu0 %v311
  %v605 = vpop.f32.mrb[0].mxu0
  %v606 = vadd.f32 %v117, %v605
  %v607 = vpop.f32.mrb[0].mxu0
  %v608 = vpop.f32.mrb[0].mxu0
  %v609 = vadd.f32 %v117, %v608
  %v610 = vpop.f32.mrb[0].mxu0
  %611 = vmatprep.mubr.bf16.mxu0 %v475
  %612 = vmatmul.mubr.bf16.gmra.mrb[0].mxu0 %v313
  %v613 = vpop.f32.mrb[0].mxu0
  %v614 = vadd.f32 %v117, %v613
  %v615 = vpop.f32.mrb[0].mxu0
  %v616 = vpop.f32.mrb[0].mxu0
  %v617 = vadd.f32 %v117, %v616
  %v618 = vpop.f32.mrb[0].mxu0
  %619 = vmatprep.mubr.bf16.mxu0 %v478
  %620 = vmatmul.mubr.bf16.gmra.mrb[0].mxu0 %v315
  %v621 = vpop.f32.mrb[0].mxu0
  %v622 = vadd.f32 %v117, %v621
  %v623 = vpop.f32.mrb[0].mxu0
  %v624 = vpop.f32.mrb[0].mxu0
  %v625 = vadd.f32 %v117, %v624
  %v626 = vpop.f32.mrb[0].mxu0
  %627 = vmatprep.mubr.bf16.mxu0 %v481
  %628 = vmatmul.mubr.bf16.gmra.mrb[0].mxu0 %v317
  %v629 = vpop.f32.mrb[0].mxu0
  %v630 = vadd.f32 %v117, %v629
  %v631 = vpop.f32.mrb[0].mxu0
  %v632 = vpop.f32.mrb[0].mxu0
  %v633 = vadd.f32 %v117, %v632
  %v634 = vpop.f32.mrb[0].mxu0
  %635 = vmatprep.mubr.bf16.mxu0 %v484
  %636 = vmatmul.mubr.bf16.gmra.mrb[0].mxu0 %v319
  %v637 = vpop.f32.mrb[0].mxu0
  %v638 = vadd.f32 %v117, %v637
  %v639 = vpop.f32.mrb[0].mxu0
  %v640 = vpop.f32.mrb[0].mxu0
  %v641 = vadd.f32 %v117, %v640
  %v642 = vpop.f32.mrb[0].mxu0
  %643 = vmatprep.mubr.bf16.mxu0 %v487
  %644 = vmatmul.mubr.bf16.gmra.mrb[0].mxu0 %v321
  %v645 = vpop.f32.mrb[0].mxu0
  %v646 = vadd.f32 %v117, %v645
  %v647 = vpop.f32.mrb[0].mxu0
  %v648 = vpop.f32.mrb[0].mxu0
  %v649 = vadd.f32 %v117, %v648
  %v650 = vpop.f32.mrb[0].mxu0
  %651 = vmatprep.mubr.bf16.mxu0 %v490
  %652 = vmatmul.mubr.bf16.gmra.mrb[0].mxu0 %v323
  %v653 = vpop.f32.mrb[0].mxu0
  %v654 = vadd.f32 %v117, %v653
  %v655 = vpop.f32.mrb[0].mxu0
  %v656 = vpop.f32.mrb[0].mxu0
  %v657 = vadd.f32 %v117, %v656
  %v658 = vpop.f32.mrb[0].mxu0
  %659 = vmatprep.mubr.bf16.mxu0 %v493
  %660 = vmatmul.mubr.bf16.gmra.mrb[0].mxu0 %v325
  %v661 = vpop.f32.mrb[0].mxu0
  %v662 = vadd.f32 %v117, %v661
  %v663 = vpop.f32.mrb[0].mxu0
  %v664 = vpop.f32.mrb[0].mxu0
  %v665 = vadd.f32 %v117, %v664
  %v666 = vpop.f32.mrb[0].mxu0
  %667 = vmatprep.mubr.bf16.mxu0 %v496
  %668 = vmatmul.mubr.bf16.gmra.mrb[0].mxu0 %v327
  %v669 = vpop.f32.mrb[0].mxu0
  %v670 = vadd.f32 %v117, %v669
  %v671 = vpop.f32.mrb[0].mxu0
  %v672 = vpop.f32.mrb[0].mxu0
  %v673 = vadd.f32 %v117, %v672
  %v674 = vpop.f32.mrb[0].mxu0
  %675 = vmatprep.mubr.bf16.mxu0 %v499
  %676 = vmatmul.mubr.bf16.gmra.mrb[0].mxu0 %v329
  %v677 = vpop.f32.mrb[0].mxu0
  %v678 = vadd.f32 %v117, %v677
  %v679 = vpop.f32.mrb[0].mxu0
  %v680 = vpop.f32.mrb[0].mxu0
  %v681 = vadd.f32 %v117, %v680
  %v682 = vpop.f32.mrb[0].mxu0
  %683 = vmatprep.mubr.bf16.mxu0 %v502
  %684 = vmatmul.mubr.bf16.gmra.mrb[0].mxu0 %v331
  %v685 = vpop.f32.mrb[0].mxu0
  %v686 = vadd.f32 %v117, %v685
  %v687 = vpop.f32.mrb[0].mxu0
  %v688 = vpop.f32.mrb[0].mxu0
  %v689 = vadd.f32 %v117, %v688
  %v690 = vpop.f32.mrb[0].mxu0
  %691 = vmatprep.mubr.bf16.mxu0 %v505
  %692 = vmatmul.mubr.bf16.gmra.mrb[0].mxu0 %v333
  %v693 = vpop.f32.mrb[0].mxu0
  %v694 = vadd.f32 %v117, %v693
  %v695 = vpop.f32.mrb[0].mxu0
  %v696 = vpop.f32.mrb[0].mxu0
  %v697 = vadd.f32 %v117, %v696
  %v698 = vpop.f32.mrb[0].mxu0
  %699 = vmatprep.mubr.bf16.mxu0 %v508
  %700 = vmatmul.mubr.bf16.gmra.mrb[0].mxu0 %v335
  %v701 = vpop.f32.mrb[0].mxu0
  %v702 = vadd.f32 %v117, %v701
  %v703 = vpop.f32.mrb[0].mxu0
  %v704 = vpop.f32.mrb[0].mxu0
  %v705 = vadd.f32 %v117, %v704
  %v706 = vpop.f32.mrb[0].mxu0
  %707 = vmatprep.mubr.bf16.mxu0 %v511
  %708 = vmatmul.mubr.bf16.gmra.mrb[0].mxu0 %v337
  %v709 = vpop.f32.mrb[0].mxu0
  %v710 = vadd.f32 %v117, %v709
  %v711 = vpop.f32.mrb[0].mxu0
  %v712 = vpop.f32.mrb[0].mxu0
  %v713 = vadd.f32 %v117, %v712
  %v714 = vpop.f32.mrb[0].mxu0
  %715 = vmatprep.mubr.bf16.mxu0 %v514
  %716 = vmatmul.mubr.bf16.gmra.mrb[0].mxu0 %v339
  %v717 = vpop.f32.mrb[0].mxu0
  %v718 = vadd.f32 %v117, %v717
  %v719 = vpop.f32.mrb[0].mxu0
  %v720 = vpop.f32.mrb[0].mxu0
  %v721 = vadd.f32 %v117, %v720
  %v722 = vpop.f32.mrb[0].mxu0
  %723 = vmatprep.mubr.bf16.mxu0 %v517
  %724 = vmatmul.mubr.bf16.gmra.mrb[0].mxu0 %v341
  %v725 = vpop.f32.mrb[0].mxu0
  %v726 = vadd.f32 %v117, %v725
  %v727 = vpop.f32.mrb[0].mxu0
  %v728 = vpop.f32.mrb[0].mxu0
  %v729 = vadd.f32 %v117, %v728
  %v730 = vpop.f32.mrb[0].mxu0
  %731 = vmatprep.mubr.bf16.mxu0 %v520
  %732 = vmatmul.mubr.bf16.gmra.mrb[0].mxu0 %v343
  %v733 = vpop.f32.mrb[0].mxu0
  %v734 = vadd.f32 %v117, %v733
  %v735 = vpop.f32.mrb[0].mxu0
  %v736 = vpop.f32.mrb[0].mxu0
  %v737 = vadd.f32 %v117, %v736
  %v738 = vpop.f32.mrb[0].mxu0
  %739 = vmatprep.mubr.bf16.mxu0 %v523
  %740 = vmatmul.mubr.bf16.gmra.mrb[0].mxu0 %v345
  %v741 = vpop.f32.mrb[0].mxu0
  %v742 = vadd.f32 %v117, %v741
  %v743 = vpop.f32.mrb[0].mxu0
  %v744 = vpop.f32.mrb[0].mxu0
  %v745 = vadd.f32 %v117, %v744
  %v746 = vpop.f32.mrb[0].mxu0
  %747 = vmatprep.mubr.bf16.mxu0 %v526
  %748 = vmatmul.mubr.bf16.gmra.mrb[0].mxu0 %v347
  %v749 = vpop.f32.mrb[0].mxu0
  %v750 = vadd.f32 %v117, %v749
  %v751 = vpop.f32.mrb[0].mxu0
  %v752 = vpop.f32.mrb[0].mxu0
  %v753 = vadd.f32 %v117, %v752
  %v754 = vpop.f32.mrb[0].mxu0
  %755 = vmatprep.mubr.bf16.mxu0 %v529
  %756 = vmatmul.mubr.bf16.gmra.mrb[0].mxu0 %v349
  %v757 = vpop.f32.mrb[0].mxu0
  %v758 = vadd.f32 %v117, %v757
  %v759 = vpop.f32.mrb[0].mxu0
  %v760 = vpop.f32.mrb[0].mxu0
  %v761 = vadd.f32 %v117, %v760
  %v762 = vpop.f32.mrb[0].mxu0
  %763 = vmatprep.mubr.bf16.mxu0 %v532
  %764 = vmatmul.mubr.bf16.gmra.mrb[0].mxu0 %v351
  %v765 = vpop.f32.mrb[0].mxu0
  %v766 = vadd.f32 %v117, %v765
  %v767 = vpop.f32.mrb[0].mxu0
  %v768 = vpop.f32.mrb[0].mxu0
  %v769 = vadd.f32 %v117, %v768
  %v770 = vpop.f32.mrb[0].mxu0
  %771 = vmatprep.mubr.bf16.mxu0 %v535
  %772 = vmatmul.mubr.bf16.gmra.mrb[0].mxu0 %v353
  %v773 = vpop.f32.mrb[0].mxu0
  %v774 = vadd.f32 %v117, %v773
  %v775 = vpop.f32.mrb[0].mxu0
  %v776 = vpop.f32.mrb[0].mxu0
  %v777 = vadd.f32 %v117, %v776
  %v778 = vpop.f32.mrb[0].mxu0
  %779 = vmatprep.mubr.bf16.mxu0 %v538
  %780 = vmatmul.mubr.bf16.gmra.mrb[0].mxu0 %v355
  %v781 = vpop.f32.mrb[0].mxu0
  %v782 = vadd.f32 %v117, %v781
  %v783 = vpop.f32.mrb[0].mxu0
  %v784 = vpop.f32.mrb[0].mxu0
  %v785 = vadd.f32 %v117, %v784
  %v786 = vpop.f32.mrb[0].mxu0
  %787 = vmatprep.mubr.bf16.mxu0 %v541
  %788 = vmatmul.mubr.bf16.gmra.mrb[0].mxu0 %v357
  %v789 = vpop.f32.mrb[0].mxu0
  %v790 = vadd.f32 %v117, %v789
  %v791 = vpop.f32.mrb[0].mxu0
  %v792 = vpop.f32.mrb[0].mxu0
  %v793 = vadd.f32 %v117, %v792
  %v794 = vpop.f32.mrb[0].mxu0
  %795 = vmatprep.mubr.bf16.mxu0 %v544
  %796 = vmatmul.mubr.bf16.gmra.mrb[0].mxu0 %v359
  %v797 = vpop.f32.mrb[0].mxu0
  %v798 = vadd.f32 %v117, %v797
  %v799 = vpop.f32.mrb[0].mxu0
  %v800 = vpop.f32.mrb[0].mxu0
  %v801 = vadd.f32 %v117, %v800
  %v802 = vpop.f32.mrb[0].mxu0
  %803 = vmatprep.mubr.bf16.mxu0 %v547
  %804 = vmatmul.mubr.bf16.gmra.mrb[0].mxu0 %v361
  %v805 = vpop.f32.mrb[0].mxu0
  %v806 = vadd.f32 %v117, %v805
  %v807 = vpop.f32.mrb[0].mxu0
  %v808 = vpop.f32.mrb[0].mxu0
  %v809 = vadd.f32 %v117, %v808
  %v810 = vpop.f32.mrb[0].mxu0
  %811 = vmatprep.mubr.bf16.mxu0 %v550
  %812 = vmatmul.mubr.bf16.gmra.mrb[0].mxu0 %v363
  %v813 = vpop.f32.mrb[0].mxu0
  %v814 = vadd.f32 %v117, %v813
  %v815 = vpop.f32.mrb[0].mxu0
  %v816 = vpop.f32.mrb[0].mxu0
  %v817 = vadd.f32 %v117, %v816
  %v818 = vpop.f32.mrb[0].mxu0
  %819 = vmatprep.mubr.bf16.mxu0 %v553
  %820 = vmatmul.mubr.bf16.gmra.mrb[0].mxu0 %v365
  %v821 = vpop.f32.mrb[0].mxu0
  %v822 = vadd.f32 %v117, %v821
  %v823 = vpop.f32.mrb[0].mxu0
  %v824 = vpop.f32.mrb[0].mxu0
  %v825 = vadd.f32 %v117, %v824
  %v826 = vpop.f32.mrb[0].mxu0
  %827 = vmatprep.mubr.bf16.mxu0 %v556
  %828 = vmatmul.mubr.bf16.gmra.mrb[0].mxu0 %v367
  %v829 = vpop.f32.mrb[0].mxu0
  %v830 = vadd.f32 %v117, %v829
  %v831 = vpop.f32.mrb[0].mxu0
  %v832 = vpop.f32.mrb[0].mxu0
  %v833 = vadd.f32 %v117, %v832
  %v834 = vpop.f32.mrb[0].mxu0
  %835 = vmatprep.mubr.bf16.mxu0 %v559
  %836 = vmatmul.mubr.bf16.gmra.mrb[0].mxu0 %v369
  %v837 = vpop.f32.mrb[0].mxu0
  %v838 = vadd.f32 %v117, %v837
  %v839 = vpop.f32.mrb[0].mxu0
  %v840 = vpop.f32.mrb[0].mxu0
  %v841 = vadd.f32 %v117, %v840
  %v842 = vpop.f32.mrb[0].mxu0
  %843 = vmatprep.mubr.bf16.mxu0 %v562
  %844 = vmatmul.mubr.bf16.gmra.mrb[0].mxu0 %v371
  %v845 = vpop.f32.mrb[0].mxu0
  %v846 = vadd.f32 %v117, %v845
  %v847 = vpop.f32.mrb[0].mxu0
  %v848 = vpop.f32.mrb[0].mxu0
  %v849 = vadd.f32 %v117, %v848
  %v850 = vpop.f32.mrb[0].mxu0
  %851 = vmatprep.mubr.bf16.mxu0 %v565
  %852 = vmatmul.mubr.bf16.gmra.mrb[0].mxu0 %v373
  %v853 = vpop.f32.mrb[0].mxu0
  %v854 = vadd.f32 %v117, %v853
  %v855 = vpop.f32.mrb[0].mxu0
  %v856 = vpop.f32.mrb[0].mxu0
  %v857 = vadd.f32 %v117, %v856
  %v858 = vpop.f32.mrb[0].mxu0
  %859 = vdwg.mxu0
  %v860 = vmax.f32 %v606, 0.0
  %v861 = vmax.f32 %v609, 0.0
  %v862 = vmax.f32 %v614, 0.0
  %v863 = vmax.f32 %v617, 0.0
  %v864 = vmax.f32 %v622, 0.0
  %v865 = vmax.f32 %v625, 0.0
  %v866 = vmax.f32 %v630, 0.0
  %v867 = vmax.f32 %v633, 0.0
  %v868 = vmax.f32 %v638, 0.0
  %v869 = vmax.f32 %v641, 0.0
  %v870 = vmax.f32 %v646, 0.0
  %v871 = vmax.f32 %v649, 0.0
  %v872 = vmax.f32 %v654, 0.0
  %v873 = vmax.f32 %v657, 0.0
  %v874 = vmax.f32 %v662, 0.0
  %v875 = vmax.f32 %v665, 0.0
  %v876 = vmax.f32 %v670, 0.0
  %v877 = vmax.f32 %v673, 0.0
  %v878 = vmax.f32 %v678, 0.0
  %v879 = vmax.f32 %v681, 0.0
  %v880 = vmax.f32 %v686, 0.0
  %v881 = vmax.f32 %v689, 0.0
  %v882 = vmax.f32 %v694, 0.0
  %v883 = vmax.f32 %v697, 0.0
  %v884 = vmax.f32 %v702, 0.0
  %v885 = vmax.f32 %v705, 0.0
  %v886 = vmax.f32 %v710, 0.0
  %v887 = vmax.f32 %v713, 0.0
  %v888 = vmax.f32 %v718, 0.0
  %v889 = vmax.f32 %v721, 0.0
  %v890 = vmax.f32 %v726, 0.0
  %v891 = vmax.f32 %v729, 0.0
  %v892 = vmax.f32 %v734, 0.0
  %v893 = vmax.f32 %v737, 0.0
  %v894 = vmax.f32 %v742, 0.0
  %v895 = vmax.f32 %v745, 0.0
  %v896 = vmax.f32 %v750, 0.0
  %v897 = vmax.f32 %v753, 0.0
  %v898 = vmax.f32 %v758, 0.0
  %v899 = vmax.f32 %v761, 0.0
  %v900 = vmax.f32 %v766, 0.0
  %v901 = vmax.f32 %v769, 0.0
  %v902 = vmax.f32 %v774, 0.0
  %v903 = vmax.f32 %v777, 0.0
  %v904 = vmax.f32 %v782, 0.0
  %v905 = vmax.f32 %v785, 0.0
  %v906 = vmax.f32 %v790, 0.0
  %v907 = vmax.f32 %v793, 0.0
  %v908 = vmax.f32 %v798, 0.0
  %v909 = vmax.f32 %v801, 0.0
  %v910 = vmax.f32 %v806, 0.0
  %v911 = vmax.f32 %v809, 0.0
  %v912 = vmax.f32 %v814, 0.0
  %v913 = vmax.f32 %v817, 0.0
  %v914 = vmax.f32 %v822, 0.0
  %v915 = vmax.f32 %v825, 0.0
  %v916 = vmax.f32 %v830, 0.0
  %v917 = vmax.f32 %v833, 0.0
  %v918 = vmax.f32 %v838, 0.0
  %v919 = vmax.f32 %v841, 0.0
  %v920 = vmax.f32 %v846, 0.0
  %v921 = vmax.f32 %v849, 0.0
  %v922 = vmax.f32 %v854, 0.0
  %v923 = vmax.f32 %v857, 0.0
  %v924 = vpack.c.bf16 %v861, %v860
  %v925 = vpack.c.bf16 %v863, %v862
  %v926 = vpack.c.bf16 %v865, %v864
  %v927 = vpack.c.bf16 %v867, %v866
  %v928 = vpack.c.bf16 %v869, %v868
  %v929 = vpack.c.bf16 %v871, %v870
  %v930 = vpack.c.bf16 %v873, %v872
  %v931 = vpack.c.bf16 %v875, %v874
  %v932 = vpack.c.bf16 %v877, %v876
  %v933 = vpack.c.bf16 %v879, %v878
  %v934 = vpack.c.bf16 %v881, %v880
  %v935 = vpack.c.bf16 %v883, %v882
  %v936 = vpack.c.bf16 %v885, %v884
  %v937 = vpack.c.bf16 %v887, %v886
  %v938 = vpack.c.bf16 %v889, %v888
  %v939 = vpack.c.bf16 %v891, %v890
  %v940 = vpack.c.bf16 %v893, %v892
  %v941 = vpack.c.bf16 %v895, %v894
  %v942 = vpack.c.bf16 %v897, %v896
  %v943 = vpack.c.bf16 %v899, %v898
  %v944 = vpack.c.bf16 %v901, %v900
  %v945 = vpack.c.bf16 %v903, %v902
  %v946 = vpack.c.bf16 %v905, %v904
  %v947 = vpack.c.bf16 %v907, %v906
  %v948 = vpack.c.bf16 %v909, %v908
  %v949 = vpack.c.bf16 %v911, %v910
  %v950 = vpack.c.bf16 %v913, %v912
  %v951 = vpack.c.bf16 %v915, %v914
  %v952 = vpack.c.bf16 %v917, %v916
  %v953 = vpack.c.bf16 %v919, %v918
  %v954 = vpack.c.bf16 %v921, %v920
  %v955 = vpack.c.bf16 %v923, %v922
  %v956 = vld [vmem:[%s4] sm:$0xf]
  %v957 = vld [vmem:[%s4 + $0x4] sm:$0xf]
  %v958 = vld [vmem:[%s4 + $0x8] sm:$0xf]
  %v959 = vld [vmem:[%s4 + $0xc] sm:$0xf]
  %v960 = vld [vmem:[%s1] sm:$0xf]
  %v961 = vld [vmem:[%s1 + $0x4] sm:$0xf]
  %v962 = vld [vmem:[%s1 + $0x8] sm:$0xf]
  %v963 = vld [vmem:[%s1 + $0xc] sm:$0xf]
  %v964 = vld [vmem:[%s1 + $0x10] sm:$0xf]
  %v965 = vld [vmem:[%s1 + $0x14] sm:$0xf]
  %v966 = vld [vmem:[%s1 + $0x18] sm:$0xf]
  %v967 = vld [vmem:[%s1 + $0x1c] sm:$0xf]
  %v968 = vld [vmem:[%s1 + $0x20] sm:$0xf]
  %v969 = vld [vmem:[%s1 + $0x24] sm:$0xf]
  %v970 = vld [vmem:[%s1 + $0x28] sm:$0xf]
  %v971 = vld [vmem:[%s1 + $0x2c] sm:$0xf]
  %v972 = vld [vmem:[%s1 + $0x30] sm:$0xf]
  %v973 = vld [vmem:[%s1 + $0x34] sm:$0xf]
  %v974 = vld [vmem:[%s1 + $0x38] sm:$0xf]
  %v975 = vld [vmem:[%s1 + $0x3c] sm:$0xf]
  %v976 = vld [vmem:[%s1 + $0x40] sm:$0xf]
  %v977 = vld [vmem:[%s1 + $0x44] sm:$0xf]
  %v978 = vld [vmem:[%s1 + $0x48] sm:$0xf]
  %v979 = vld [vmem:[%s1 + $0x4c] sm:$0xf]
  %v980 = vld [vmem:[%s1 + $0x50] sm:$0xf]
  %v981 = vld [vmem:[%s1 + $0x54] sm:$0xf]
  %v982 = vld [vmem:[%s1 + $0x58] sm:$0xf]
  %v983 = vld [vmem:[%s1 + $0x5c] sm:$0xf]
  %v984 = vld [vmem:[%s1 + $0x60] sm:$0xf]
  %v985 = vld [vmem:[%s1 + $0x64] sm:$0xf]
  %v986 = vld [vmem:[%s1 + $0x68] sm:$0xf]
  %v987 = vld [vmem:[%s1 + $0x6c] sm:$0xf]
  %v988 = vld [vmem:[%s1 + $0x70] sm:$0xf]
  %v989 = vld [vmem:[%s1 + $0x74] sm:$0xf]
  %v990 = vld [vmem:[%s1 + $0x78] sm:$0xf]
  %v991 = vld [vmem:[%s1 + $0x7c] sm:$0xf]
  %v992 = vld [vmem:[%s1 + $0x80] sm:$0xf]
  %v993 = vld [vmem:[%s1 + $0x84] sm:$0xf]
  %v994 = vld [vmem:[%s1 + $0x88] sm:$0xf]
  %v995 = vld [vmem:[%s1 + $0x8c] sm:$0xf]
  %v996 = vld [vmem:[%s1 + $0x90] sm:$0xf]
  %v997 = vld [vmem:[%s1 + $0x94] sm:$0xf]
  %v998 = vld [vmem:[%s1 + $0x98] sm:$0xf]
  %v999 = vld [vmem:[%s1 + $0x9c] sm:$0xf]
  %v1000 = vld [vmem:[%s1 + $0xa0] sm:$0xf]
  %v1001 = vld [vmem:[%s1 + $0xa4] sm:$0xf]
  %v1002 = vld [vmem:[%s1 + $0xa8] sm:$0xf]
  %v1003 = vld [vmem:[%s1 + $0xac] sm:$0xf]
  %v1004 = vld [vmem:[%s1 + $0xb0] sm:$0xf]
  %v1005 = vld [vmem:[%s1 + $0xb4] sm:$0xf]
  %v1006 = vld [vmem:[%s1 + $0xb8] sm:$0xf]
  %v1007 = vld [vmem:[%s1 + $0xbc] sm:$0xf]
  %v1008 = vld [vmem:[%s1 + $0xc0] sm:$0xf]
  %v1009 = vld [vmem:[%s1 + $0xc4] sm:$0xf]
  %v1010 = vld [vmem:[%s1 + $0xc8] sm:$0xf]
  %v1011 = vld [vmem:[%s1 + $0xcc] sm:$0xf]
  %v1012 = vld [vmem:[%s1 + $0xd0] sm:$0xf]
  %v1013 = vld [vmem:[%s1 + $0xd4] sm:$0xf]
  %v1014 = vld [vmem:[%s1 + $0xd8] sm:$0xf]
  %v1015 = vld [vmem:[%s1 + $0xdc] sm:$0xf]
  %v1016 = vld [vmem:[%s1 + $0xe0] sm:$0xf]
  %v1017 = vld [vmem:[%s1 + $0xe4] sm:$0xf]
  %v1018 = vld [vmem:[%s1 + $0xe8] sm:$0xf]
  %v1019 = vld [vmem:[%s1 + $0xec] sm:$0xf]
  %v1020 = vld [vmem:[%s1 + $0xf0] sm:$0xf]
  %v1021 = vld [vmem:[%s1 + $0xf4] sm:$0xf]
  %v1022 = vld [vmem:[%s1 + $0xf8] sm:$0xf]
  %v1023 = vld [vmem:[%s1 + $0xfc] sm:$0xf]
  %v1024 = vld [vmem:[%s5] sm:$0xf]
  %v1025 = vld [vmem:[%s5 + $0x4] sm:$0xf]
  %v1090 = vunpack.c.l.b16 %v960
  %v1091 = vunpack.c.l.b16 %v961
  %v1092 = vunpack.c.l.b16 %v962
  %v1093 = vunpack.c.l.b16 %v963
  %v1094 = vunpack.c.l.b16 %v964
  %v1095 = vunpack.c.l.b16 %v965
  %v1096 = vunpack.c.l.b16 %v966
  %v1097 = vunpack.c.l.b16 %v967
  %v1098 = vunpack.c.l.b16 %v968
  %v1099 = vunpack.c.l.b16 %v969
  %v1100 = vunpack.c.l.b16 %v970
  %v1101 = vunpack.c.l.b16 %v971
  %v1102 = vunpack.c.l.b16 %v972
  %v1103 = vunpack.c.l.b16 %v973
  %v1104 = vunpack.c.l.b16 %v974
  %v1105 = vunpack.c.l.b16 %v975
  %v1106 = vunpack.c.l.b16 %v976
  %v1107 = vunpack.c.l.b16 %v977
  %v1108 = vunpack.c.l.b16 %v978
  %v1109 = vunpack.c.l.b16 %v979
  %v1110 = vunpack.c.l.b16 %v980
  %v1111 = vunpack.c.l.b16 %v981
  %v1112 = vunpack.c.l.b16 %v982
  %v1113 = vunpack.c.l.b16 %v983
  %v1114 = vunpack.c.l.b16 %v984
  %v1115 = vunpack.c.l.b16 %v985
  %v1116 = vunpack.c.l.b16 %v986
  %v1117 = vunpack.c.l.b16 %v987
  %v1118 = vunpack.c.l.b16 %v988
  %v1119 = vunpack.c.l.b16 %v989
  %v1120 = vunpack.c.l.b16 %v990
  %v1121 = vunpack.c.l.b16 %v991
  %v1122 = vunpack.c.l.b16 %v992
  %v1123 = vunpack.c.l.b16 %v993
  %v1124 = vunpack.c.l.b16 %v994
  %v1125 = vunpack.c.l.b16 %v995
  %v1126 = vunpack.c.l.b16 %v996
  %v1127 = vunpack.c.l.b16 %v997
  %v1128 = vunpack.c.l.b16 %v998
  %v1129 = vunpack.c.l.b16 %v999
  %v1130 = vunpack.c.l.b16 %v1000
  %v1131 = vunpack.c.l.b16 %v1001
  %v1132 = vunpack.c.l.b16 %v1002
  %v1133 = vunpack.c.l.b16 %v1003
  %v1134 = vunpack.c.l.b16 %v1004
  %v1135 = vunpack.c.l.b16 %v1005
  %v1136 = vunpack.c.l.b16 %v1006
  %v1137 = vunpack.c.l.b16 %v1007
  %v1138 = vunpack.c.l.b16 %v1008
  %v1139 = vunpack.c.l.b16 %v1009
  %v1140 = vunpack.c.l.b16 %v1010
  %v1141 = vunpack.c.l.b16 %v1011
  %v1142 = vunpack.c.l.b16 %v1012
  %v1143 = vunpack.c.l.b16 %v1013
  %v1144 = vunpack.c.l.b16 %v1014
  %v1145 = vunpack.c.l.b16 %v1015
  %v1146 = vunpack.c.l.b16 %v1016
  %v1147 = vunpack.c.l.b16 %v1017
  %v1148 = vunpack.c.l.b16 %v1018
  %v1149 = vunpack.c.l.b16 %v1019
  %v1150 = vunpack.c.l.b16 %v1020
  %v1151 = vunpack.c.l.b16 %v1021
  %v1152 = vunpack.c.l.b16 %v1022
  %v1153 = vunpack.c.l.b16 %v1023
  %v1154 = vpack.c.b16 %v1091, %v1090
  %v1155 = vpack.c.b16 %v1093, %v1092
  %v1156 = vpack.c.b16 %v1095, %v1094
  %v1157 = vpack.c.b16 %v1097, %v1096
  %v1158 = vpack.c.b16 %v1099, %v1098
  %v1159 = vpack.c.b16 %v1101, %v1100
  %v1160 = vpack.c.b16 %v1103, %v1102
  %v1161 = vpack.c.b16 %v1105, %v1104
  %v1162 = vpack.c.b16 %v1107, %v1106
  %v1163 = vpack.c.b16 %v1109, %v1108
  %v1164 = vpack.c.b16 %v1111, %v1110
  %v1165 = vpack.c.b16 %v1113, %v1112
  %v1166 = vpack.c.b16 %v1115, %v1114
  %v1167 = vpack.c.b16 %v1117, %v1116
  %v1168 = vpack.c.b16 %v1119, %v1118
  %v1169 = vpack.c.b16 %v1121, %v1120
  %v1170 = vpack.c.b16 %v1123, %v1122
  %v1171 = vpack.c.b16 %v1125, %v1124
  %v1172 = vpack.c.b16 %v1127, %v1126
  %v1173 = vpack.c.b16 %v1129, %v1128
  %v1174 = vpack.c.b16 %v1131, %v1130
  %v1175 = vpack.c.b16 %v1133, %v1132
  %v1176 = vpack.c.b16 %v1135, %v1134
  %v1177 = vpack.c.b16 %v1137, %v1136
  %v1178 = vpack.c.b16 %v1139, %v1138
  %v1179 = vpack.c.b16 %v1141, %v1140
  %v1180 = vpack.c.b16 %v1143, %v1142
  %v1181 = vpack.c.b16 %v1145, %v1144
  %v1182 = vpack.c.b16 %v1147, %v1146
  %v1183 = vpack.c.b16 %v1149, %v1148
  %v1184 = vpack.c.b16 %v1151, %v1150
  %v1185 = vpack.c.b16 %v1153, %v1152
  %v1188 = vunpack.c.l.b16 %v1024
  %v1189 = vunpack.c.l.b16 %v1025
  %v1190 = vpack.c.b16 %v1189, %v1188
  %vm1192 = vcmask 130048
  %v1194 = vsel %vm1192, %v1154, 0
  %v1197 = vsel %vm1192, %v1155, 0
  %v1200 = vsel %vm1192, %v1156, 0
  %v1203 = vsel %vm1192, %v1157, 0
  %v1206 = vsel %vm1192, %v1158, 0
  %v1209 = vsel %vm1192, %v1159, 0
  %v1212 = vsel %vm1192, %v1160, 0
  %v1215 = vsel %vm1192, %v1161, 0
  %v1218 = vsel %vm1192, %v1162, 0
  %v1221 = vsel %vm1192, %v1163, 0
  %v1224 = vsel %vm1192, %v1164, 0
  %v1227 = vsel %vm1192, %v1165, 0
  %v1230 = vsel %vm1192, %v1166, 0
  %v1233 = vsel %vm1192, %v1167, 0
  %v1236 = vsel %vm1192, %v1168, 0
  %v1239 = vsel %vm1192, %v1169, 0
  %v1242 = vsel %vm1192, %v1170, 0
  %v1245 = vsel %vm1192, %v1171, 0
  %v1248 = vsel %vm1192, %v1172, 0
  %v1251 = vsel %vm1192, %v1173, 0
  %v1254 = vsel %vm1192, %v1174, 0
  %v1257 = vsel %vm1192, %v1175, 0
  %v1260 = vsel %vm1192, %v1176, 0
  %v1263 = vsel %vm1192, %v1177, 0
  %v1266 = vsel %vm1192, %v1178, 0
  %v1269 = vsel %vm1192, %v1179, 0
  %v1272 = vsel %vm1192, %v1180, 0
  %v1275 = vsel %vm1192, %v1181, 0
  %v1278 = vsel %vm1192, %v1182, 0
  %v1281 = vsel %vm1192, %v1183, 0
  %v1284 = vsel %vm1192, %v1184, 0
  %v1287 = vsel %vm1192, %v1185, 0
  %1289 = vmatprep.subr.bf16.mxu0 0
  %1290 = vmatpush1.bf16.msra.mxu0 %v1190
  %1291 = vmatprep.subr.bf16.mxu0 0
  %1292 = vmatpush1.bf16.msra.mxu0 0
  %1293 = vmatprep.subr.bf16.mxu0 0
  %1294 = vmatpush1.bf16.msra.mxu0 0
  %1295 = vmatprep.subr.bf16.mxu0 0
  %1296 = vmatpush1.bf16.msra.mxu0 0
  %1297 = vmatprep.subr.bf16.mxu0 0
  %1298 = vmatpush1.bf16.msra.mxu0 0
  %1299 = vmatprep.subr.bf16.mxu0 0
  %1300 = vmatpush1.bf16.msra.mxu0 0
  %1301 = vmatprep.subr.bf16.mxu0 0
  %1302 = vmatpush1.bf16.msra.mxu0 0
  %1303 = vmatprep.subr.bf16.mxu0 0
  %1304 = vmatpush1.bf16.msra.mxu0 0
  %1305 = vmatprep.subr.bf16.mxu0 0
  %1306 = vmatpush1.bf16.msra.mxu0 0
  %1307 = vmatprep.subr.bf16.mxu0 0
  %1308 = vmatpush1.bf16.msra.mxu0 0
  %1309 = vmatprep.subr.bf16.mxu0 0
  %1310 = vmatpush1.bf16.msra.mxu0 0
  %1311 = vmatprep.subr.bf16.mxu0 0
  %1312 = vmatpush1.bf16.msra.mxu0 0
  %1313 = vmatprep.subr.bf16.mxu0 0
  %1314 = vmatpush1.bf16.msra.mxu0 0
  %1315 = vmatprep.subr.bf16.mxu0 0
  %1316 = vmatpush1.bf16.msra.mxu0 0
  %1317 = vmatprep.subr.bf16.mxu0 0
  %1318 = vmatpush1.bf16.msra.mxu0 0
  %1319 = vmatprep.subr.bf16.mxu0 0
  %1320 = vmatpush1.bf16.msra.mxu0 0
  %1321 = vmatprep.mubr.bf16.mxu0 0
  %1322 = vmatmul.mubr.bf16.gmra.mrb[0].mxu0 %v1194
  %v1323 = vpop.f32.mrb[0].mxu0
  %v1324 = vadd.f32 0.0, %v1323
  %v1325 = vpop.f32.mrb[0].mxu0
  %v1326 = vpop.f32.mrb[0].mxu0
  %v1327 = vadd.f32 0.0, %v1326
  %v1328 = vpop.f32.mrb[0].mxu0
  %1329 = vmatprep.mubr.bf16.mxu0 0
  %1330 = vmatmul.mubr.bf16.gmra.mrb[0].mxu0 %v1197
  %v1331 = vpop.f32.mrb[0].mxu0
  %v1332 = vadd.f32 0.0, %v1331
  %v1333 = vpop.f32.mrb[0].mxu0
  %v1334 = vpop.f32.mrb[0].mxu0
  %v1335 = vadd.f32 0.0, %v1334
  %v1336 = vpop.f32.mrb[0].mxu0
  %1337 = vmatprep.mubr.bf16.mxu0 0
  %1338 = vmatmul.mubr.bf16.gmra.mrb[0].mxu0 %v1200
  %v1339 = vpop.f32.mrb[0].mxu0
  %v1340 = vadd.f32 0.0, %v1339
  %v1341 = vpop.f32.mrb[0].mxu0
  %v1342 = vpop.f32.mrb[0].mxu0
  %v1343 = vadd.f32 0.0, %v1342
  %v1344 = vpop.f32.mrb[0].mxu0
  %1345 = vmatprep.mubr.bf16.mxu0 0
  %1346 = vmatmul.mubr.bf16.gmra.mrb[0].mxu0 %v1203
  %v1347 = vpop.f32.mrb[0].mxu0
  %v1348 = vadd.f32 0.0, %v1347
  %v1349 = vpop.f32.mrb[0].mxu0
  %v1350 = vpop.f32.mrb[0].mxu0
  %v1351 = vadd.f32 0.0, %v1350
  %v1352 = vpop.f32.mrb[0].mxu0
  %1353 = vmatprep.mubr.bf16.mxu0 0
  %1354 = vmatmul.mubr.bf16.gmra.mrb[0].mxu0 %v1206
  %v1355 = vpop.f32.mrb[0].mxu0
  %v1356 = vadd.f32 0.0, %v1355
  %v1357 = vpop.f32.mrb[0].mxu0
  %v1358 = vpop.f32.mrb[0].mxu0
  %v1359 = vadd.f32 0.0, %v1358
  %v1360 = vpop.f32.mrb[0].mxu0
  %1361 = vmatprep.mubr.bf16.mxu0 0
  %1362 = vmatmul.mubr.bf16.gmra.mrb[0].mxu0 %v1209
  %v1363 = vpop.f32.mrb[0].mxu0
  %v1364 = vadd.f32 0.0, %v1363
  %v1365 = vpop.f32.mrb[0].mxu0
  %v1366 = vpop.f32.mrb[0].mxu0
  %v1367 = vadd.f32 0.0, %v1366
  %v1368 = vpop.f32.mrb[0].mxu0
  %1369 = vmatprep.mubr.bf16.mxu0 0
  %1370 = vmatmul.mubr.bf16.gmra.mrb[0].mxu0 %v1212
  %v1371 = vpop.f32.mrb[0].mxu0
  %v1372 = vadd.f32 0.0, %v1371
  %v1373 = vpop.f32.mrb[0].mxu0
  %v1374 = vpop.f32.mrb[0].mxu0
  %v1375 = vadd.f32 0.0, %v1374
  %v1376 = vpop.f32.mrb[0].mxu0
  %1377 = vmatprep.mubr.bf16.mxu0 0
  %1378 = vmatmul.mubr.bf16.gmra.mrb[0].mxu0 %v1215
  %v1379 = vpop.f32.mrb[0].mxu0
  %v1380 = vadd.f32 0.0, %v1379
  %v1381 = vpop.f32.mrb[0].mxu0
  %v1382 = vpop.f32.mrb[0].mxu0
  %v1383 = vadd.f32 0.0, %v1382
  %v1384 = vpop.f32.mrb[0].mxu0
  %1385 = vmatprep.mubr.bf16.mxu0 0
  %1386 = vmatmul.mubr.bf16.gmra.mrb[0].mxu0 %v1218
  %v1387 = vpop.f32.mrb[0].mxu0
  %v1388 = vadd.f32 0.0, %v1387
  %v1389 = vpop.f32.mrb[0].mxu0
  %v1390 = vpop.f32.mrb[0].mxu0
  %v1391 = vadd.f32 0.0, %v1390
  %v1392 = vpop.f32.mrb[0].mxu0
  %1393 = vmatprep.mubr.bf16.mxu0 0
  %1394 = vmatmul.mubr.bf16.gmra.mrb[0].mxu0 %v1221
  %v1395 = vpop.f32.mrb[0].mxu0
  %v1396 = vadd.f32 0.0, %v1395
  %v1397 = vpop.f32.mrb[0].mxu0
  %v1398 = vpop.f32.mrb[0].mxu0
  %v1399 = vadd.f32 0.0, %v1398
  %v1400 = vpop.f32.mrb[0].mxu0
  %1401 = vmatprep.mubr.bf16.mxu0 0
  %1402 = vmatmul.mubr.bf16.gmra.mrb[0].mxu0 %v1224
  %v1403 = vpop.f32.mrb[0].mxu0
  %v1404 = vadd.f32 0.0, %v1403
  %v1405 = vpop.f32.mrb[0].mxu0
  %v1406 = vpop.f32.mrb[0].mxu0
  %v1407 = vadd.f32 0.0, %v1406
  %v1408 = vpop.f32.mrb[0].mxu0
  %1409 = vmatprep.mubr.bf16.mxu0 0
  %1410 = vmatmul.mubr.bf16.gmra.mrb[0].mxu0 %v1227
  %v1411 = vpop.f32.mrb[0].mxu0
  %v1412 = vadd.f32 0.0, %v1411
  %v1413 = vpop.f32.mrb[0].mxu0
  %v1414 = vpop.f32.mrb[0].mxu0
  %v1415 = vadd.f32 0.0, %v1414
  %v1416 = vpop.f32.mrb[0].mxu0
  %1417 = vmatprep.mubr.bf16.mxu0 0
  %1418 = vmatmul.mubr.bf16.gmra.mrb[0].mxu0 %v1230
  %v1419 = vpop.f32.mrb[0].mxu0
  %v1420 = vadd.f32 0.0, %v1419
  %v1421 = vpop.f32.mrb[0].mxu0
  %v1422 = vpop.f32.mrb[0].mxu0
  %v1423 = vadd.f32 0.0, %v1422
  %v1424 = vpop.f32.mrb[0].mxu0
  %1425 = vmatprep.mubr.bf16.mxu0 0
  %1426 = vmatmul.mubr.bf16.gmra.mrb[0].mxu0 %v1233
  %v1427 = vpop.f32.mrb[0].mxu0
  %v1428 = vadd.f32 0.0, %v1427
  %v1429 = vpop.f32.mrb[0].mxu0
  %v1430 = vpop.f32.mrb[0].mxu0
  %v1431 = vadd.f32 0.0, %v1430
  %v1432 = vpop.f32.mrb[0].mxu0
  %1433 = vmatprep.mubr.bf16.mxu0 0
  %1434 = vmatmul.mubr.bf16.gmra.mrb[0].mxu0 %v1236
  %v1435 = vpop.f32.mrb[0].mxu0
  %v1436 = vadd.f32 0.0, %v1435
  %v1437 = vpop.f32.mrb[0].mxu0
  %v1438 = vpop.f32.mrb[0].mxu0
  %v1439 = vadd.f32 0.0, %v1438
  %v1440 = vpop.f32.mrb[0].mxu0
  %1441 = vmatprep.mubr.bf16.mxu0 0
  %1442 = vmatmul.mubr.bf16.gmra.mrb[0].mxu0 %v1239
  %v1443 = vpop.f32.mrb[0].mxu0
  %v1444 = vadd.f32 0.0, %v1443
  %v1445 = vpop.f32.mrb[0].mxu0
  %v1446 = vpop.f32.mrb[0].mxu0
  %v1447 = vadd.f32 0.0, %v1446
  %v1448 = vpop.f32.mrb[0].mxu0
  %1449 = vmatprep.mubr.bf16.mxu0 0
  %1450 = vmatmul.mubr.bf16.gmra.mrb[0].mxu0 %v1242
  %v1451 = vpop.f32.mrb[0].mxu0
  %v1452 = vadd.f32 0.0, %v1451
  %v1453 = vpop.f32.mrb[0].mxu0
  %v1454 = vpop.f32.mrb[0].mxu0
  %v1455 = vadd.f32 0.0, %v1454
  %v1456 = vpop.f32.mrb[0].mxu0
  %1457 = vmatprep.mubr.bf16.mxu0 0
  %1458 = vmatmul.mubr.bf16.gmra.mrb[0].mxu0 %v1245
  %v1459 = vpop.f32.mrb[0].mxu0
  %v1460 = vadd.f32 0.0, %v1459
  %v1461 = vpop.f32.mrb[0].mxu0
  %v1462 = vpop.f32.mrb[0].mxu0
  %v1463 = vadd.f32 0.0, %v1462
  %v1464 = vpop.f32.mrb[0].mxu0
  %1465 = vmatprep.mubr.bf16.mxu0 0
  %1466 = vmatmul.mubr.bf16.gmra.mrb[0].mxu0 %v1248
  %v1467 = vpop.f32.mrb[0].mxu0
  %v1468 = vadd.f32 0.0, %v1467
  %v1469 = vpop.f32.mrb[0].mxu0
  %v1470 = vpop.f32.mrb[0].mxu0
  %v1471 = vadd.f32 0.0, %v1470
  %v1472 = vpop.f32.mrb[0].mxu0
  %1473 = vmatprep.mubr.bf16.mxu0 0
  %1474 = vmatmul.mubr.bf16.gmra.mrb[0].mxu0 %v1251
  %v1475 = vpop.f32.mrb[0].mxu0
  %v1476 = vadd.f32 0.0, %v1475
  %v1477 = vpop.f32.mrb[0].mxu0
  %v1478 = vpop.f32.mrb[0].mxu0
  %v1479 = vadd.f32 0.0, %v1478
  %v1480 = vpop.f32.mrb[0].mxu0
  %1481 = vmatprep.mubr.bf16.mxu0 0
  %1482 = vmatmul.mubr.bf16.gmra.mrb[0].mxu0 %v1254
  %v1483 = vpop.f32.mrb[0].mxu0
  %v1484 = vadd.f32 0.0, %v1483
  %v1485 = vpop.f32.mrb[0].mxu0
  %v1486 = vpop.f32.mrb[0].mxu0
  %v1487 = vadd.f32 0.0, %v1486
  %v1488 = vpop.f32.mrb[0].mxu0
  %1489 = vmatprep.mubr.bf16.mxu0 0
  %1490 = vmatmul.mubr.bf16.gmra.mrb[0].mxu0 %v1257
  %v1491 = vpop.f32.mrb[0].mxu0
  %v1492 = vadd.f32 0.0, %v1491
  %v1493 = vpop.f32.mrb[0].mxu0
  %v1494 = vpop.f32.mrb[0].mxu0
  %v1495 = vadd.f32 0.0, %v1494
  %v1496 = vpop.f32.mrb[0].mxu0
  %1497 = vmatprep.mubr.bf16.mxu0 0
  %1498 = vmatmul.mubr.bf16.gmra.mrb[0].mxu0 %v1260
  %v1499 = vpop.f32.mrb[0].mxu0
  %v1500 = vadd.f32 0.0, %v1499
  %v1501 = vpop.f32.mrb[0].mxu0
  %v1502 = vpop.f32.mrb[0].mxu0
  %v1503 = vadd.f32 0.0, %v1502
  %v1504 = vpop.f32.mrb[0].mxu0
  %1505 = vmatprep.mubr.bf16.mxu0 0
  %1506 = vmatmul.mubr.bf16.gmra.mrb[0].mxu0 %v1263
  %v1507 = vpop.f32.mrb[0].mxu0
  %v1508 = vadd.f32 0.0, %v1507
  %v1509 = vpop.f32.mrb[0].mxu0
  %v1510 = vpop.f32.mrb[0].mxu0
  %v1511 = vadd.f32 0.0, %v1510
  %v1512 = vpop.f32.mrb[0].mxu0
  %1513 = vmatprep.mubr.bf16.mxu0 0
  %1514 = vmatmul.mubr.bf16.gmra.mrb[0].mxu0 %v1266
  %v1515 = vpop.f32.mrb[0].mxu0
  %v1516 = vadd.f32 0.0, %v1515
  %v1517 = vpop.f32.mrb[0].mxu0
  %v1518 = vpop.f32.mrb[0].mxu0
  %v1519 = vadd.f32 0.0, %v1518
  %v1520 = vpop.f32.mrb[0].mxu0
  %1521 = vmatprep.mubr.bf16.mxu0 0
  %1522 = vmatmul.mubr.bf16.gmra.mrb[0].mxu0 %v1269
  %v1523 = vpop.f32.mrb[0].mxu0
  %v1524 = vadd.f32 0.0, %v1523
  %v1525 = vpop.f32.mrb[0].mxu0
  %v1526 = vpop.f32.mrb[0].mxu0
  %v1527 = vadd.f32 0.0, %v1526
  %v1528 = vpop.f32.mrb[0].mxu0
  %1529 = vmatprep.mubr.bf16.mxu0 0
  %1530 = vmatmul.mubr.bf16.gmra.mrb[0].mxu0 %v1272
  %v1531 = vpop.f32.mrb[0].mxu0
  %v1532 = vadd.f32 0.0, %v1531
  %v1533 = vpop.f32.mrb[0].mxu0
  %v1534 = vpop.f32.mrb[0].mxu0
  %v1535 = vadd.f32 0.0, %v1534
  %v1536 = vpop.f32.mrb[0].mxu0
  %1537 = vmatprep.mubr.bf16.mxu0 0
  %1538 = vmatmul.mubr.bf16.gmra.mrb[0].mxu0 %v1275
  %v1539 = vpop.f32.mrb[0].mxu0
  %v1540 = vadd.f32 0.0, %v1539
  %v1541 = vpop.f32.mrb[0].mxu0
  %v1542 = vpop.f32.mrb[0].mxu0
  %v1543 = vadd.f32 0.0, %v1542
  %v1544 = vpop.f32.mrb[0].mxu0
  %1545 = vmatprep.mubr.bf16.mxu0 0
  %1546 = vmatmul.mubr.bf16.gmra.mrb[0].mxu0 %v1278
  %v1547 = vpop.f32.mrb[0].mxu0
  %v1548 = vadd.f32 0.0, %v1547
  %v1549 = vpop.f32.mrb[0].mxu0
  %v1550 = vpop.f32.mrb[0].mxu0
  %v1551 = vadd.f32 0.0, %v1550
  %v1552 = vpop.f32.mrb[0].mxu0
  %1553 = vmatprep.mubr.bf16.mxu0 0
  %1554 = vmatmul.mubr.bf16.gmra.mrb[0].mxu0 %v1281
  %v1555 = vpop.f32.mrb[0].mxu0
  %v1556 = vadd.f32 0.0, %v1555
  %v1557 = vpop.f32.mrb[0].mxu0
  %v1558 = vpop.f32.mrb[0].mxu0
  %v1559 = vadd.f32 0.0, %v1558
  %v1560 = vpop.f32.mrb[0].mxu0
  %1561 = vmatprep.mubr.bf16.mxu0 0
  %1562 = vmatmul.mubr.bf16.gmra.mrb[0].mxu0 %v1284
  %v1563 = vpop.f32.mrb[0].mxu0
  %v1564 = vadd.f32 0.0, %v1563
  %v1565 = vpop.f32.mrb[0].mxu0
  %v1566 = vpop.f32.mrb[0].mxu0
  %v1567 = vadd.f32 0.0, %v1566
  %v1568 = vpop.f32.mrb[0].mxu0
  %1569 = vmatprep.mubr.bf16.mxu0 0
  %1570 = vmatmul.mubr.bf16.gmra.mrb[0].mxu0 %v1287
  %v1571 = vpop.f32.mrb[0].mxu0
  %v1572 = vadd.f32 0.0, %v1571
  %v1573 = vpop.f32.mrb[0].mxu0
  %v1574 = vpop.f32.mrb[0].mxu0
  %v1575 = vadd.f32 0.0, %v1574
  %v1576 = vpop.f32.mrb[0].mxu0
  %1577 = vdwg.mxu0
  %v1582 = vunpack.c.l.b16 %v956
  %v1583 = vunpack.c.l.b16 %v957
  %v1584 = vunpack.c.l.b16 %v958
  %v1585 = vunpack.c.l.b16 %v959
  %v1586 = vpack.c.b16 %v1583, %v1582
  %v1587 = vpack.c.b16 %v1585, %v1584
  %vm1590 = vcmask 261120
  %v1592 = vsel %vm1590, %v924, 0
  %v1595 = vsel %vm1590, %v925, 0
  %v1598 = vsel %vm1590, %v926, 0
  %v1601 = vsel %vm1590, %v927, 0
  %v1604 = vsel %vm1590, %v928, 0
  %v1607 = vsel %vm1590, %v929, 0
  %v1610 = vsel %vm1590, %v930, 0
  %v1613 = vsel %vm1590, %v931, 0
  %v1616 = vsel %vm1590, %v932, 0
  %v1619 = vsel %vm1590, %v933, 0
  %v1622 = vsel %vm1590, %v934, 0
  %v1625 = vsel %vm1590, %v935, 0
  %v1628 = vsel %vm1590, %v936, 0
  %v1631 = vsel %vm1590, %v937, 0
  %v1634 = vsel %vm1590, %v938, 0
  %v1637 = vsel %vm1590, %v939, 0
  %v1640 = vsel %vm1590, %v940, 0
  %v1643 = vsel %vm1590, %v941, 0
  %v1646 = vsel %vm1590, %v942, 0
  %v1649 = vsel %vm1590, %v943, 0
  %v1652 = vsel %vm1590, %v944, 0
  %v1655 = vsel %vm1590, %v945, 0
  %v1658 = vsel %vm1590, %v946, 0
  %v1661 = vsel %vm1590, %v947, 0
  %v1664 = vsel %vm1590, %v948, 0
  %v1667 = vsel %vm1590, %v949, 0
  %v1670 = vsel %vm1590, %v950, 0
  %v1673 = vsel %vm1590, %v951, 0
  %v1676 = vsel %vm1590, %v952, 0
  %v1679 = vsel %vm1590, %v953, 0
  %v1682 = vsel %vm1590, %v954, 0
  %v1685 = vsel %vm1590, %v955, 0
  %1687 = vmatprep.subr.bf16.mxu0 0
  %1688 = vmatpush1.bf16.msra.mxu0 %v1586
  %1689 = vmatprep.subr.bf16.mxu0 0
  %1690 = vmatpush1.bf16.msra.mxu0 %v1587
  %1691 = vmatprep.subr.bf16.mxu0 0
  %1692 = vmatpush1.bf16.msra.mxu0 0
  %1693 = vmatprep.subr.bf16.mxu0 0
  %1694 = vmatpush1.bf16.msra.mxu0 0
  %1695 = vmatprep.subr.bf16.mxu0 0
  %1696 = vmatpush1.bf16.msra.mxu0 0
  %1697 = vmatprep.subr.bf16.mxu0 0
  %1698 = vmatpush1.bf16.msra.mxu0 0
  %1699 = vmatprep.subr.bf16.mxu0 0
  %1700 = vmatpush1.bf16.msra.mxu0 0
  %1701 = vmatprep.subr.bf16.mxu0 0
  %1702 = vmatpush1.bf16.msra.mxu0 0
  %1703 = vmatprep.subr.bf16.mxu0 0
  %1704 = vmatpush1.bf16.msra.mxu0 0
  %1705 = vmatprep.subr.bf16.mxu0 0
  %1706 = vmatpush1.bf16.msra.mxu0 0
  %1707 = vmatprep.subr.bf16.mxu0 0
  %1708 = vmatpush1.bf16.msra.mxu0 0
  %1709 = vmatprep.subr.bf16.mxu0 0
  %1710 = vmatpush1.bf16.msra.mxu0 0
  %1711 = vmatprep.subr.bf16.mxu0 0
  %1712 = vmatpush1.bf16.msra.mxu0 0
  %1713 = vmatprep.subr.bf16.mxu0 0
  %1714 = vmatpush1.bf16.msra.mxu0 0
  %1715 = vmatprep.subr.bf16.mxu0 0
  %1716 = vmatpush1.bf16.msra.mxu0 0
  %1717 = vmatprep.subr.bf16.mxu0 0
  %1718 = vmatpush1.bf16.msra.mxu0 0
  %1719 = vmatprep.mubr.bf16.mxu0 0
  %1720 = vmatmul.mubr.bf16.gmra.mrb[0].mxu0 %v1592
  %v1721 = vpop.f32.mrb[0].mxu0
  %v1722 = vadd.f32 %v1324, %v1721
  %v1723 = vpop.f32.mrb[0].mxu0
  %v1724 = vpop.f32.mrb[0].mxu0
  %v1725 = vadd.f32 %v1327, %v1724
  %v1726 = vpop.f32.mrb[0].mxu0
  %1727 = vmatprep.mubr.bf16.mxu0 0
  %1728 = vmatmul.mubr.bf16.gmra.mrb[0].mxu0 %v1595
  %v1729 = vpop.f32.mrb[0].mxu0
  %v1730 = vadd.f32 %v1332, %v1729
  %v1731 = vpop.f32.mrb[0].mxu0
  %v1732 = vpop.f32.mrb[0].mxu0
  %v1733 = vadd.f32 %v1335, %v1732
  %v1734 = vpop.f32.mrb[0].mxu0
  %1735 = vmatprep.mubr.bf16.mxu0 0
  %1736 = vmatmul.mubr.bf16.gmra.mrb[0].mxu0 %v1598
  %v1737 = vpop.f32.mrb[0].mxu0
  %v1738 = vadd.f32 %v1340, %v1737
  %v1739 = vpop.f32.mrb[0].mxu0
  %v1740 = vpop.f32.mrb[0].mxu0
  %v1741 = vadd.f32 %v1343, %v1740
  %v1742 = vpop.f32.mrb[0].mxu0
  %1743 = vmatprep.mubr.bf16.mxu0 0
  %1744 = vmatmul.mubr.bf16.gmra.mrb[0].mxu0 %v1601
  %v1745 = vpop.f32.mrb[0].mxu0
  %v1746 = vadd.f32 %v1348, %v1745
  %v1747 = vpop.f32.mrb[0].mxu0
  %v1748 = vpop.f32.mrb[0].mxu0
  %v1749 = vadd.f32 %v1351, %v1748
  %v1750 = vpop.f32.mrb[0].mxu0
  %1751 = vmatprep.mubr.bf16.mxu0 0
  %1752 = vmatmul.mubr.bf16.gmra.mrb[0].mxu0 %v1604
  %v1753 = vpop.f32.mrb[0].mxu0
  %v1754 = vadd.f32 %v1356, %v1753
  %v1755 = vpop.f32.mrb[0].mxu0
  %v1756 = vpop.f32.mrb[0].mxu0
  %v1757 = vadd.f32 %v1359, %v1756
  %v1758 = vpop.f32.mrb[0].mxu0
  %1759 = vmatprep.mubr.bf16.mxu0 0
  %1760 = vmatmul.mubr.bf16.gmra.mrb[0].mxu0 %v1607
  %v1761 = vpop.f32.mrb[0].mxu0
  %v1762 = vadd.f32 %v1364, %v1761
  %v1763 = vpop.f32.mrb[0].mxu0
  %v1764 = vpop.f32.mrb[0].mxu0
  %v1765 = vadd.f32 %v1367, %v1764
  %v1766 = vpop.f32.mrb[0].mxu0
  %1767 = vmatprep.mubr.bf16.mxu0 0
  %1768 = vmatmul.mubr.bf16.gmra.mrb[0].mxu0 %v1610
  %v1769 = vpop.f32.mrb[0].mxu0
  %v1770 = vadd.f32 %v1372, %v1769
  %v1771 = vpop.f32.mrb[0].mxu0
  %v1772 = vpop.f32.mrb[0].mxu0
  %v1773 = vadd.f32 %v1375, %v1772
  %v1774 = vpop.f32.mrb[0].mxu0
  %1775 = vmatprep.mubr.bf16.mxu0 0
  %1776 = vmatmul.mubr.bf16.gmra.mrb[0].mxu0 %v1613
  %v1777 = vpop.f32.mrb[0].mxu0
  %v1778 = vadd.f32 %v1380, %v1777
  %v1779 = vpop.f32.mrb[0].mxu0
  %v1780 = vpop.f32.mrb[0].mxu0
  %v1781 = vadd.f32 %v1383, %v1780
  %v1782 = vpop.f32.mrb[0].mxu0
  %1783 = vmatprep.mubr.bf16.mxu0 0
  %1784 = vmatmul.mubr.bf16.gmra.mrb[0].mxu0 %v1616
  %v1785 = vpop.f32.mrb[0].mxu0
  %v1786 = vadd.f32 %v1388, %v1785
  %v1787 = vpop.f32.mrb[0].mxu0
  %v1788 = vpop.f32.mrb[0].mxu0
  %v1789 = vadd.f32 %v1391, %v1788
  %v1790 = vpop.f32.mrb[0].mxu0
  %1791 = vmatprep.mubr.bf16.mxu0 0
  %1792 = vmatmul.mubr.bf16.gmra.mrb[0].mxu0 %v1619
  %v1793 = vpop.f32.mrb[0].mxu0
  %v1794 = vadd.f32 %v1396, %v1793
  %v1795 = vpop.f32.mrb[0].mxu0
  %v1796 = vpop.f32.mrb[0].mxu0
  %v1797 = vadd.f32 %v1399, %v1796
  %v1798 = vpop.f32.mrb[0].mxu0
  %1799 = vmatprep.mubr.bf16.mxu0 0
  %1800 = vmatmul.mubr.bf16.gmra.mrb[0].mxu0 %v1622
  %v1801 = vpop.f32.mrb[0].mxu0
  %v1802 = vadd.f32 %v1404, %v1801
  %v1803 = vpop.f32.mrb[0].mxu0
  %v1804 = vpop.f32.mrb[0].mxu0
  %v1805 = vadd.f32 %v1407, %v1804
  %v1806 = vpop.f32.mrb[0].mxu0
  %1807 = vmatprep.mubr.bf16.mxu0 0
  %1808 = vmatmul.mubr.bf16.gmra.mrb[0].mxu0 %v1625
  %v1809 = vpop.f32.mrb[0].mxu0
  %v1810 = vadd.f32 %v1412, %v1809
  %v1811 = vpop.f32.mrb[0].mxu0
  %v1812 = vpop.f32.mrb[0].mxu0
  %v1813 = vadd.f32 %v1415, %v1812
  %v1814 = vpop.f32.mrb[0].mxu0
  %1815 = vmatprep.mubr.bf16.mxu0 0
  %1816 = vmatmul.mubr.bf16.gmra.mrb[0].mxu0 %v1628
  %v1817 = vpop.f32.mrb[0].mxu0
  %v1818 = vadd.f32 %v1420, %v1817
  %v1819 = vpop.f32.mrb[0].mxu0
  %v1820 = vpop.f32.mrb[0].mxu0
  %v1821 = vadd.f32 %v1423, %v1820
  %v1822 = vpop.f32.mrb[0].mxu0
  %1823 = vmatprep.mubr.bf16.mxu0 0
  %1824 = vmatmul.mubr.bf16.gmra.mrb[0].mxu0 %v1631
  %v1825 = vpop.f32.mrb[0].mxu0
  %v1826 = vadd.f32 %v1428, %v1825
  %v1827 = vpop.f32.mrb[0].mxu0
  %v1828 = vpop.f32.mrb[0].mxu0
  %v1829 = vadd.f32 %v1431, %v1828
  %v1830 = vpop.f32.mrb[0].mxu0
  %1831 = vmatprep.mubr.bf16.mxu0 0
  %1832 = vmatmul.mubr.bf16.gmra.mrb[0].mxu0 %v1634
  %v1833 = vpop.f32.mrb[0].mxu0
  %v1834 = vadd.f32 %v1436, %v1833
  %v1835 = vpop.f32.mrb[0].mxu0
  %v1836 = vpop.f32.mrb[0].mxu0
  %v1837 = vadd.f32 %v1439, %v1836
  %v1838 = vpop.f32.mrb[0].mxu0
  %1839 = vmatprep.mubr.bf16.mxu0 0
  %1840 = vmatmul.mubr.bf16.gmra.mrb[0].mxu0 %v1637
  %v1841 = vpop.f32.mrb[0].mxu0
  %v1842 = vadd.f32 %v1444, %v1841
  %v1843 = vpop.f32.mrb[0].mxu0
  %v1844 = vpop.f32.mrb[0].mxu0
  %v1845 = vadd.f32 %v1447, %v1844
  %v1846 = vpop.f32.mrb[0].mxu0
  %1847 = vmatprep.mubr.bf16.mxu0 0
  %1848 = vmatmul.mubr.bf16.gmra.mrb[0].mxu0 %v1640
  %v1849 = vpop.f32.mrb[0].mxu0
  %v1850 = vadd.f32 %v1452, %v1849
  %v1851 = vpop.f32.mrb[0].mxu0
  %v1852 = vpop.f32.mrb[0].mxu0
  %v1853 = vadd.f32 %v1455, %v1852
  %v1854 = vpop.f32.mrb[0].mxu0
  %1855 = vmatprep.mubr.bf16.mxu0 0
  %1856 = vmatmul.mubr.bf16.gmra.mrb[0].mxu0 %v1643
  %v1857 = vpop.f32.mrb[0].mxu0
  %v1858 = vadd.f32 %v1460, %v1857
  %v1859 = vpop.f32.mrb[0].mxu0
  %v1860 = vpop.f32.mrb[0].mxu0
  %v1861 = vadd.f32 %v1463, %v1860
  %v1862 = vpop.f32.mrb[0].mxu0
  %1863 = vmatprep.mubr.bf16.mxu0 0
  %1864 = vmatmul.mubr.bf16.gmra.mrb[0].mxu0 %v1646
  %v1865 = vpop.f32.mrb[0].mxu0
  %v1866 = vadd.f32 %v1468, %v1865
  %v1867 = vpop.f32.mrb[0].mxu0
  %v1868 = vpop.f32.mrb[0].mxu0
  %v1869 = vadd.f32 %v1471, %v1868
  %v1870 = vpop.f32.mrb[0].mxu0
  %1871 = vmatprep.mubr.bf16.mxu0 0
  %1872 = vmatmul.mubr.bf16.gmra.mrb[0].mxu0 %v1649
  %v1873 = vpop.f32.mrb[0].mxu0
  %v1874 = vadd.f32 %v1476, %v1873
  %v1875 = vpop.f32.mrb[0].mxu0
  %v1876 = vpop.f32.mrb[0].mxu0
  %v1877 = vadd.f32 %v1479, %v1876
  %v1878 = vpop.f32.mrb[0].mxu0
  %1879 = vmatprep.mubr.bf16.mxu0 0
  %1880 = vmatmul.mubr.bf16.gmra.mrb[0].mxu0 %v1652
  %v1881 = vpop.f32.mrb[0].mxu0
  %v1882 = vadd.f32 %v1484, %v1881
  %v1883 = vpop.f32.mrb[0].mxu0
  %v1884 = vpop.f32.mrb[0].mxu0
  %v1885 = vadd.f32 %v1487, %v1884
  %v1886 = vpop.f32.mrb[0].mxu0
  %1887 = vmatprep.mubr.bf16.mxu0 0
  %1888 = vmatmul.mubr.bf16.gmra.mrb[0].mxu0 %v1655
  %v1889 = vpop.f32.mrb[0].mxu0
  %v1890 = vadd.f32 %v1492, %v1889
  %v1891 = vpop.f32.mrb[0].mxu0
  %v1892 = vpop.f32.mrb[0].mxu0
  %v1893 = vadd.f32 %v1495, %v1892
  %v1894 = vpop.f32.mrb[0].mxu0
  %1895 = vmatprep.mubr.bf16.mxu0 0
  %1896 = vmatmul.mubr.bf16.gmra.mrb[0].mxu0 %v1658
  %v1897 = vpop.f32.mrb[0].mxu0
  %v1898 = vadd.f32 %v1500, %v1897
  %v1899 = vpop.f32.mrb[0].mxu0
  %v1900 = vpop.f32.mrb[0].mxu0
  %v1901 = vadd.f32 %v1503, %v1900
  %v1902 = vpop.f32.mrb[0].mxu0
  %1903 = vmatprep.mubr.bf16.mxu0 0
  %1904 = vmatmul.mubr.bf16.gmra.mrb[0].mxu0 %v1661
  %v1905 = vpop.f32.mrb[0].mxu0
  %v1906 = vadd.f32 %v1508, %v1905
  %v1907 = vpop.f32.mrb[0].mxu0
  %v1908 = vpop.f32.mrb[0].mxu0
  %v1909 = vadd.f32 %v1511, %v1908
  %v1910 = vpop.f32.mrb[0].mxu0
  %1911 = vmatprep.mubr.bf16.mxu0 0
  %1912 = vmatmul.mubr.bf16.gmra.mrb[0].mxu0 %v1664
  %v1913 = vpop.f32.mrb[0].mxu0
  %v1914 = vadd.f32 %v1516, %v1913
  %v1915 = vpop.f32.mrb[0].mxu0
  %v1916 = vpop.f32.mrb[0].mxu0
  %v1917 = vadd.f32 %v1519, %v1916
  %v1918 = vpop.f32.mrb[0].mxu0
  %1919 = vmatprep.mubr.bf16.mxu0 0
  %1920 = vmatmul.mubr.bf16.gmra.mrb[0].mxu0 %v1667
  %v1921 = vpop.f32.mrb[0].mxu0
  %v1922 = vadd.f32 %v1524, %v1921
  %v1923 = vpop.f32.mrb[0].mxu0
  %v1924 = vpop.f32.mrb[0].mxu0
  %v1925 = vadd.f32 %v1527, %v1924
  %v1926 = vpop.f32.mrb[0].mxu0
  %1927 = vmatprep.mubr.bf16.mxu0 0
  %1928 = vmatmul.mubr.bf16.gmra.mrb[0].mxu0 %v1670
  %v1929 = vpop.f32.mrb[0].mxu0
  %v1930 = vadd.f32 %v1532, %v1929
  %v1931 = vpop.f32.mrb[0].mxu0
  %v1932 = vpop.f32.mrb[0].mxu0
  %v1933 = vadd.f32 %v1535, %v1932
  %v1934 = vpop.f32.mrb[0].mxu0
  %1935 = vmatprep.mubr.bf16.mxu0 0
  %1936 = vmatmul.mubr.bf16.gmra.mrb[0].mxu0 %v1673
  %v1937 = vpop.f32.mrb[0].mxu0
  %v1938 = vadd.f32 %v1540, %v1937
  %v1939 = vpop.f32.mrb[0].mxu0
  %v1940 = vpop.f32.mrb[0].mxu0
  %v1941 = vadd.f32 %v1543, %v1940
  %v1942 = vpop.f32.mrb[0].mxu0
  %1943 = vmatprep.mubr.bf16.mxu0 0
  %1944 = vmatmul.mubr.bf16.gmra.mrb[0].mxu0 %v1676
  %v1945 = vpop.f32.mrb[0].mxu0
  %v1946 = vadd.f32 %v1548, %v1945
  %v1947 = vpop.f32.mrb[0].mxu0
  %v1948 = vpop.f32.mrb[0].mxu0
  %v1949 = vadd.f32 %v1551, %v1948
  %v1950 = vpop.f32.mrb[0].mxu0
  %1951 = vmatprep.mubr.bf16.mxu0 0
  %1952 = vmatmul.mubr.bf16.gmra.mrb[0].mxu0 %v1679
  %v1953 = vpop.f32.mrb[0].mxu0
  %v1954 = vadd.f32 %v1556, %v1953
  %v1955 = vpop.f32.mrb[0].mxu0
  %v1956 = vpop.f32.mrb[0].mxu0
  %v1957 = vadd.f32 %v1559, %v1956
  %v1958 = vpop.f32.mrb[0].mxu0
  %1959 = vmatprep.mubr.bf16.mxu0 0
  %1960 = vmatmul.mubr.bf16.gmra.mrb[0].mxu0 %v1682
  %v1961 = vpop.f32.mrb[0].mxu0
  %v1962 = vadd.f32 %v1564, %v1961
  %v1963 = vpop.f32.mrb[0].mxu0
  %v1964 = vpop.f32.mrb[0].mxu0
  %v1965 = vadd.f32 %v1567, %v1964
  %v1966 = vpop.f32.mrb[0].mxu0
  %1967 = vmatprep.mubr.bf16.mxu0 0
  %1968 = vmatmul.mubr.bf16.gmra.mrb[0].mxu0 %v1685
  %v1969 = vpop.f32.mrb[0].mxu0
  %v1970 = vadd.f32 %v1572, %v1969
  %v1971 = vpop.f32.mrb[0].mxu0
  %v1972 = vpop.f32.mrb[0].mxu0
  %v1973 = vadd.f32 %v1575, %v1972
  %v1974 = vpop.f32.mrb[0].mxu0
  %1975 = vdwg.mxu0
  %v1976 = vld [vmem:[%s6] sm:$0x1]
  %v1978 = vlaneseq
  %v1979 = vshrl.u32 %v1978, 7
  %v1980 = vsub.s32 0, %v1979
  %v1981 = vrot.slane %v1976, %v1980
  %v1983 = vadd.f32 %v1722, %v1981
  %v1984 = vadd.f32 %v1725, %v1981
  %v1985 = vadd.f32 %v1730, %v1981
  %v1986 = vadd.f32 %v1733, %v1981
  %v1987 = vadd.f32 %v1738, %v1981
  %v1988 = vadd.f32 %v1741, %v1981
  %v1989 = vadd.f32 %v1746, %v1981
  %v1990 = vadd.f32 %v1749, %v1981
  %v1991 = vadd.f32 %v1754, %v1981
  %v1992 = vadd.f32 %v1757, %v1981
  %v1993 = vadd.f32 %v1762, %v1981
  %v1994 = vadd.f32 %v1765, %v1981
  %v1995 = vadd.f32 %v1770, %v1981
  %v1996 = vadd.f32 %v1773, %v1981
  %v1997 = vadd.f32 %v1778, %v1981
  %v1998 = vadd.f32 %v1781, %v1981
  %v1999 = vadd.f32 %v1786, %v1981
  %v2000 = vadd.f32 %v1789, %v1981
  %v2001 = vadd.f32 %v1794, %v1981
  %v2002 = vadd.f32 %v1797, %v1981
  %v2003 = vadd.f32 %v1802, %v1981
  %v2004 = vadd.f32 %v1805, %v1981
  %v2005 = vadd.f32 %v1810, %v1981
  %v2006 = vadd.f32 %v1813, %v1981
  %v2007 = vadd.f32 %v1818, %v1981
  %v2008 = vadd.f32 %v1821, %v1981
  %v2009 = vadd.f32 %v1826, %v1981
  %v2010 = vadd.f32 %v1829, %v1981
  %v2011 = vadd.f32 %v1834, %v1981
  %v2012 = vadd.f32 %v1837, %v1981
  %v2013 = vadd.f32 %v1842, %v1981
  %v2014 = vadd.f32 %v1845, %v1981
  %v2015 = vadd.f32 %v1850, %v1981
  %v2016 = vadd.f32 %v1853, %v1981
  %v2017 = vadd.f32 %v1858, %v1981
  %v2018 = vadd.f32 %v1861, %v1981
  %v2019 = vadd.f32 %v1866, %v1981
  %v2020 = vadd.f32 %v1869, %v1981
  %v2021 = vadd.f32 %v1874, %v1981
  %v2022 = vadd.f32 %v1877, %v1981
  %v2023 = vadd.f32 %v1882, %v1981
  %v2024 = vadd.f32 %v1885, %v1981
  %v2025 = vadd.f32 %v1890, %v1981
  %v2026 = vadd.f32 %v1893, %v1981
  %v2027 = vadd.f32 %v1898, %v1981
  %v2028 = vadd.f32 %v1901, %v1981
  %v2029 = vadd.f32 %v1906, %v1981
  %v2030 = vadd.f32 %v1909, %v1981
  %v2031 = vadd.f32 %v1914, %v1981
  %v2032 = vadd.f32 %v1917, %v1981
  %v2033 = vadd.f32 %v1922, %v1981
  %v2034 = vadd.f32 %v1925, %v1981
  %v2035 = vadd.f32 %v1930, %v1981
  %v2036 = vadd.f32 %v1933, %v1981
  %v2037 = vadd.f32 %v1938, %v1981
  %v2038 = vadd.f32 %v1941, %v1981
  %v2039 = vadd.f32 %v1946, %v1981
  %v2040 = vadd.f32 %v1949, %v1981
  %v2041 = vadd.f32 %v1954, %v1981
  %v2042 = vadd.f32 %v1957, %v1981
  %v2043 = vadd.f32 %v1962, %v1981
  %v2044 = vadd.f32 %v1965, %v1981
  %v2045 = vadd.f32 %v1970, %v1981
  %v2046 = vadd.f32 %v1973, %v1981
  %v2047 = vmax.f32 %v1983, 0.0
  %v2048 = vmax.f32 %v1984, 0.0
  %v2049 = vmax.f32 %v1985, 0.0
  %v2050 = vmax.f32 %v1986, 0.0
  %v2051 = vmax.f32 %v1987, 0.0
  %v2052 = vmax.f32 %v1988, 0.0
  %v2053 = vmax.f32 %v1989, 0.0
  %v2054 = vmax.f32 %v1990, 0.0
  %v2055 = vmax.f32 %v1991, 0.0
  %v2056 = vmax.f32 %v1992, 0.0
  %v2057 = vmax.f32 %v1993, 0.0
  %v2058 = vmax.f32 %v1994, 0.0
  %v2059 = vmax.f32 %v1995, 0.0
  %v2060 = vmax.f32 %v1996, 0.0
  %v2061 = vmax.f32 %v1997, 0.0
  %v2062 = vmax.f32 %v1998, 0.0
  %v2063 = vmax.f32 %v1999, 0.0
  %v2064 = vmax.f32 %v2000, 0.0
  %v2065 = vmax.f32 %v2001, 0.0
  %v2066 = vmax.f32 %v2002, 0.0
  %v2067 = vmax.f32 %v2003, 0.0
  %v2068 = vmax.f32 %v2004, 0.0
  %v2069 = vmax.f32 %v2005, 0.0
  %v2070 = vmax.f32 %v2006, 0.0
  %v2071 = vmax.f32 %v2007, 0.0
  %v2072 = vmax.f32 %v2008, 0.0
  %v2073 = vmax.f32 %v2009, 0.0
  %v2074 = vmax.f32 %v2010, 0.0
  %v2075 = vmax.f32 %v2011, 0.0
  %v2076 = vmax.f32 %v2012, 0.0
  %v2077 = vmax.f32 %v2013, 0.0
  %v2078 = vmax.f32 %v2014, 0.0
  %v2079 = vmax.f32 %v2015, 0.0
  %v2080 = vmax.f32 %v2016, 0.0
  %v2081 = vmax.f32 %v2017, 0.0
  %v2082 = vmax.f32 %v2018, 0.0
  %v2083 = vmax.f32 %v2019, 0.0
  %v2084 = vmax.f32 %v2020, 0.0
  %v2085 = vmax.f32 %v2021, 0.0
  %v2086 = vmax.f32 %v2022, 0.0
  %v2087 = vmax.f32 %v2023, 0.0
  %v2088 = vmax.f32 %v2024, 0.0
  %v2089 = vmax.f32 %v2025, 0.0
  %v2090 = vmax.f32 %v2026, 0.0
  %v2091 = vmax.f32 %v2027, 0.0
  %v2092 = vmax.f32 %v2028, 0.0
  %v2093 = vmax.f32 %v2029, 0.0
  %v2094 = vmax.f32 %v2030, 0.0
  %v2095 = vmax.f32 %v2031, 0.0
  %v2096 = vmax.f32 %v2032, 0.0
  %v2097 = vmax.f32 %v2033, 0.0
  %v2098 = vmax.f32 %v2034, 0.0
  %v2099 = vmax.f32 %v2035, 0.0
  %v2100 = vmax.f32 %v2036, 0.0
  %v2101 = vmax.f32 %v2037, 0.0
  %v2102 = vmax.f32 %v2038, 0.0
  %v2103 = vmax.f32 %v2039, 0.0
  %v2104 = vmax.f32 %v2040, 0.0
  %v2105 = vmax.f32 %v2041, 0.0
  %v2106 = vmax.f32 %v2042, 0.0
  %v2107 = vmax.f32 %v2043, 0.0
  %v2108 = vmax.f32 %v2044, 0.0
  %v2109 = vmax.f32 %v2045, 0.0
  %v2110 = vmax.f32 %v2046, 0.0
  %v2111 = vpack.c.bf16 %v2048, %v2047
  %v2112 = vpack.c.bf16 %v2050, %v2049
  %v2113 = vpack.c.bf16 %v2052, %v2051
  %v2114 = vpack.c.bf16 %v2054, %v2053
  %v2115 = vpack.c.bf16 %v2056, %v2055
  %v2116 = vpack.c.bf16 %v2058, %v2057
  %v2117 = vpack.c.bf16 %v2060, %v2059
  %v2118 = vpack.c.bf16 %v2062, %v2061
  %v2119 = vpack.c.bf16 %v2064, %v2063
  %v2120 = vpack.c.bf16 %v2066, %v2065
  %v2121 = vpack.c.bf16 %v2068, %v2067
  %v2122 = vpack.c.bf16 %v2070, %v2069
  %v2123 = vpack.c.bf16 %v2072, %v2071
  %v2124 = vpack.c.bf16 %v2074, %v2073
  %v2125 = vpack.c.bf16 %v2076, %v2075
  %v2126 = vpack.c.bf16 %v2078, %v2077
  %v2127 = vpack.c.bf16 %v2080, %v2079
  %v2128 = vpack.c.bf16 %v2082, %v2081
  %v2129 = vpack.c.bf16 %v2084, %v2083
  %v2130 = vpack.c.bf16 %v2086, %v2085
  %v2131 = vpack.c.bf16 %v2088, %v2087
  %v2132 = vpack.c.bf16 %v2090, %v2089
  %v2133 = vpack.c.bf16 %v2092, %v2091
  %v2134 = vpack.c.bf16 %v2094, %v2093
  %v2135 = vpack.c.bf16 %v2096, %v2095
  %v2136 = vpack.c.bf16 %v2098, %v2097
  %v2137 = vpack.c.bf16 %v2100, %v2099
  %v2138 = vpack.c.bf16 %v2102, %v2101
  %v2139 = vpack.c.bf16 %v2104, %v2103
  %v2140 = vpack.c.bf16 %v2106, %v2105
  %v2141 = vpack.c.bf16 %v2108, %v2107
  %v2142 = vpack.c.bf16 %v2110, %v2109
  %v2175 = vunpack.c.l.b16 %v2111
  %v2176 = vunpack.c.h.b16 %v2111
  %v2177 = vunpack.c.l.b16 %v2112
  %v2178 = vunpack.c.h.b16 %v2112
  %v2179 = vunpack.c.l.b16 %v2113
  %v2180 = vunpack.c.h.b16 %v2113
  %v2181 = vunpack.c.l.b16 %v2114
  %v2182 = vunpack.c.h.b16 %v2114
  %v2183 = vunpack.c.l.b16 %v2115
  %v2184 = vunpack.c.h.b16 %v2115
  %v2185 = vunpack.c.l.b16 %v2116
  %v2186 = vunpack.c.h.b16 %v2116
  %v2187 = vunpack.c.l.b16 %v2117
  %v2188 = vunpack.c.h.b16 %v2117
  %v2189 = vunpack.c.l.b16 %v2118
  %v2190 = vunpack.c.h.b16 %v2118
  %v2191 = vunpack.c.l.b16 %v2119
  %v2192 = vunpack.c.h.b16 %v2119
  %v2193 = vunpack.c.l.b16 %v2120
  %v2194 = vunpack.c.h.b16 %v2120
  %v2195 = vunpack.c.l.b16 %v2121
  %v2196 = vunpack.c.h.b16 %v2121
  %v2197 = vunpack.c.l.b16 %v2122
  %v2198 = vunpack.c.h.b16 %v2122
  %v2199 = vunpack.c.l.b16 %v2123
  %v2200 = vunpack.c.h.b16 %v2123
  %v2201 = vunpack.c.l.b16 %v2124
  %v2202 = vunpack.c.h.b16 %v2124
  %v2203 = vunpack.c.l.b16 %v2125
  %v2204 = vunpack.c.h.b16 %v2125
  %v2205 = vunpack.c.l.b16 %v2126
  %v2206 = vunpack.c.h.b16 %v2126
  %v2207 = vunpack.c.l.b16 %v2127
  %v2208 = vunpack.c.h.b16 %v2127
  %v2209 = vunpack.c.l.b16 %v2128
  %v2210 = vunpack.c.h.b16 %v2128
  %v2211 = vunpack.c.l.b16 %v2129
  %v2212 = vunpack.c.h.b16 %v2129
  %v2213 = vunpack.c.l.b16 %v2130
  %v2214 = vunpack.c.h.b16 %v2130
  %v2215 = vunpack.c.l.b16 %v2131
  %v2216 = vunpack.c.h.b16 %v2131
  %v2217 = vunpack.c.l.b16 %v2132
  %v2218 = vunpack.c.h.b16 %v2132
  %v2219 = vunpack.c.l.b16 %v2133
  %v2220 = vunpack.c.h.b16 %v2133
  %v2221 = vunpack.c.l.b16 %v2134
  %v2222 = vunpack.c.h.b16 %v2134
  %v2223 = vunpack.c.l.b16 %v2135
  %v2224 = vunpack.c.h.b16 %v2135
  %v2225 = vunpack.c.l.b16 %v2136
  %v2226 = vunpack.c.h.b16 %v2136
  %v2227 = vunpack.c.l.b16 %v2137
  %v2228 = vunpack.c.h.b16 %v2137
  %v2229 = vunpack.c.l.b16 %v2138
  %v2230 = vunpack.c.h.b16 %v2138
  %v2231 = vunpack.c.l.b16 %v2139
  %v2232 = vunpack.c.h.b16 %v2139
  %v2233 = vunpack.c.l.b16 %v2140
  %v2234 = vunpack.c.h.b16 %v2140
  %v2235 = vunpack.c.l.b16 %v2141
  %v2236 = vunpack.c.h.b16 %v2141
  %v2237 = vunpack.c.l.b16 %v2142
  %v2238 = vunpack.c.h.b16 %v2142
  %v2239 = vpack.c.b16 %v2175, %v2175
  %v2240 = vpack.c.b16 %v2176, %v2176
  %v2241 = vpack.c.b16 %v2177, %v2177
  %v2242 = vpack.c.b16 %v2178, %v2178
  %v2243 = vpack.c.b16 %v2179, %v2179
  %v2244 = vpack.c.b16 %v2180, %v2180
  %v2245 = vpack.c.b16 %v2181, %v2181
  %v2246 = vpack.c.b16 %v2182, %v2182
  %v2247 = vpack.c.b16 %v2183, %v2183
  %v2248 = vpack.c.b16 %v2184, %v2184
  %v2249 = vpack.c.b16 %v2185, %v2185
  %v2250 = vpack.c.b16 %v2186, %v2186
  %v2251 = vpack.c.b16 %v2187, %v2187
  %v2252 = vpack.c.b16 %v2188, %v2188
  %v2253 = vpack.c.b16 %v2189, %v2189
  %v2254 = vpack.c.b16 %v2190, %v2190
  %v2255 = vpack.c.b16 %v2191, %v2191
  %v2256 = vpack.c.b16 %v2192, %v2192
  %v2257 = vpack.c.b16 %v2193, %v2193
  %v2258 = vpack.c.b16 %v2194, %v2194
  %v2259 = vpack.c.b16 %v2195, %v2195
  %v2260 = vpack.c.b16 %v2196, %v2196
  %v2261 = vpack.c.b16 %v2197, %v2197
  %v2262 = vpack.c.b16 %v2198, %v2198
  %v2263 = vpack.c.b16 %v2199, %v2199
  %v2264 = vpack.c.b16 %v2200, %v2200
  %v2265 = vpack.c.b16 %v2201, %v2201
  %v2266 = vpack.c.b16 %v2202, %v2202
  %v2267 = vpack.c.b16 %v2203, %v2203
  %v2268 = vpack.c.b16 %v2204, %v2204
  %v2269 = vpack.c.b16 %v2205, %v2205
  %v2270 = vpack.c.b16 %v2206, %v2206
  %v2271 = vpack.c.b16 %v2207, %v2207
  %v2272 = vpack.c.b16 %v2208, %v2208
  %v2273 = vpack.c.b16 %v2209, %v2209
  %v2274 = vpack.c.b16 %v2210, %v2210
  %v2275 = vpack.c.b16 %v2211, %v2211
  %v2276 = vpack.c.b16 %v2212, %v2212
  %v2277 = vpack.c.b16 %v2213, %v2213
  %v2278 = vpack.c.b16 %v2214, %v2214
  %v2279 = vpack.c.b16 %v2215, %v2215
  %v2280 = vpack.c.b16 %v2216, %v2216
  %v2281 = vpack.c.b16 %v2217, %v2217
  %v2282 = vpack.c.b16 %v2218, %v2218
  %v2283 = vpack.c.b16 %v2219, %v2219
  %v2284 = vpack.c.b16 %v2220, %v2220
  %v2285 = vpack.c.b16 %v2221, %v2221
  %v2286 = vpack.c.b16 %v2222, %v2222
  %v2287 = vpack.c.b16 %v2223, %v2223
  %v2288 = vpack.c.b16 %v2224, %v2224
  %v2289 = vpack.c.b16 %v2225, %v2225
  %v2290 = vpack.c.b16 %v2226, %v2226
  %v2291 = vpack.c.b16 %v2227, %v2227
  %v2292 = vpack.c.b16 %v2228, %v2228
  %v2293 = vpack.c.b16 %v2229, %v2229
  %v2294 = vpack.c.b16 %v2230, %v2230
  %v2295 = vpack.c.b16 %v2231, %v2231
  %v2296 = vpack.c.b16 %v2232, %v2232
  %v2297 = vpack.c.b16 %v2233, %v2233
  %v2298 = vpack.c.b16 %v2234, %v2234
  %v2299 = vpack.c.b16 %v2235, %v2235
  %v2300 = vpack.c.b16 %v2236, %v2236
  %v2301 = vpack.c.b16 %v2237, %v2237
  %v2302 = vpack.c.b16 %v2238, %v2238
  %vm2367 = vcmask 257024
  %2368 = vst.msk [vmem:[%s7] sm:$0xf] %vm2367, %v2239
  %2369 = vst.msk [vmem:[%s7 + $0x4] sm:$0xf] %vm2367, %v2240
  %2370 = vst.msk [vmem:[%s7 + $0x8] sm:$0xf] %vm2367, %v2241
  %2371 = vst.msk [vmem:[%s7 + $0xc] sm:$0xf] %vm2367, %v2242
  %2372 = vst.msk [vmem:[%s7 + $0x10] sm:$0xf] %vm2367, %v2243
  %2373 = vst.msk [vmem:[%s7 + $0x14] sm:$0xf] %vm2367, %v2244
  %2374 = vst.msk [vmem:[%s7 + $0x18] sm:$0xf] %vm2367, %v2245
  %2375 = vst.msk [vmem:[%s7 + $0x1c] sm:$0xf] %vm2367, %v2246
  %2376 = vst.msk [vmem:[%s7 + $0x20] sm:$0xf] %vm2367, %v2247
  %2377 = vst.msk [vmem:[%s7 + $0x24] sm:$0xf] %vm2367, %v2248
  %2378 = vst.msk [vmem:[%s7 + $0x28] sm:$0xf] %vm2367, %v2249
  %2379 = vst.msk [vmem:[%s7 + $0x2c] sm:$0xf] %vm2367, %v2250
  %2380 = vst.msk [vmem:[%s7 + $0x30] sm:$0xf] %vm2367, %v2251
  %2381 = vst.msk [vmem:[%s7 + $0x34] sm:$0xf] %vm2367, %v2252
  %2382 = vst.msk [vmem:[%s7 + $0x38] sm:$0xf] %vm2367, %v2253
  %2383 = vst.msk [vmem:[%s7 + $0x3c] sm:$0xf] %vm2367, %v2254
  %2384 = vst.msk [vmem:[%s7 + $0x40] sm:$0xf] %vm2367, %v2255
  %2385 = vst.msk [vmem:[%s7 + $0x44] sm:$0xf] %vm2367, %v2256
  %2386 = vst.msk [vmem:[%s7 + $0x48] sm:$0xf] %vm2367, %v2257
  %2387 = vst.msk [vmem:[%s7 + $0x4c] sm:$0xf] %vm2367, %v2258
  %2388 = vst.msk [vmem:[%s7 + $0x50] sm:$0xf] %vm2367, %v2259
  %2389 = vst.msk [vmem:[%s7 + $0x54] sm:$0xf] %vm2367, %v2260
  %2390 = vst.msk [vmem:[%s7 + $0x58] sm:$0xf] %vm2367, %v2261
  %2391 = vst.msk [vmem:[%s7 + $0x5c] sm:$0xf] %vm2367, %v2262
  %2392 = vst.msk [vmem:[%s7 + $0x60] sm:$0xf] %vm2367, %v2263
  %2393 = vst.msk [vmem:[%s7 + $0x64] sm:$0xf] %vm2367, %v2264
  %2394 = vst.msk [vmem:[%s7 + $0x68] sm:$0xf] %vm2367, %v2265
  %2395 = vst.msk [vmem:[%s7 + $0x6c] sm:$0xf] %vm2367, %v2266
  %2396 = vst.msk [vmem:[%s7 + $0x70] sm:$0xf] %vm2367, %v2267
  %2397 = vst.msk [vmem:[%s7 + $0x74] sm:$0xf] %vm2367, %v2268
  %2398 = vst.msk [vmem:[%s7 + $0x78] sm:$0xf] %vm2367, %v2269
  %2399 = vst.msk [vmem:[%s7 + $0x7c] sm:$0xf] %vm2367, %v2270
  %2400 = vst.msk [vmem:[%s7 + $0x80] sm:$0xf] %vm2367, %v2271
  %2401 = vst.msk [vmem:[%s7 + $0x84] sm:$0xf] %vm2367, %v2272
  %2402 = vst.msk [vmem:[%s7 + $0x88] sm:$0xf] %vm2367, %v2273
  %2403 = vst.msk [vmem:[%s7 + $0x8c] sm:$0xf] %vm2367, %v2274
  %2404 = vst.msk [vmem:[%s7 + $0x90] sm:$0xf] %vm2367, %v2275
  %2405 = vst.msk [vmem:[%s7 + $0x94] sm:$0xf] %vm2367, %v2276
  %2406 = vst.msk [vmem:[%s7 + $0x98] sm:$0xf] %vm2367, %v2277
  %2407 = vst.msk [vmem:[%s7 + $0x9c] sm:$0xf] %vm2367, %v2278
  %2408 = vst.msk [vmem:[%s7 + $0xa0] sm:$0xf] %vm2367, %v2279
  %2409 = vst.msk [vmem:[%s7 + $0xa4] sm:$0xf] %vm2367, %v2280
  %2410 = vst.msk [vmem:[%s7 + $0xa8] sm:$0xf] %vm2367, %v2281
  %2411 = vst.msk [vmem:[%s7 + $0xac] sm:$0xf] %vm2367, %v2282
  %2412 = vst.msk [vmem:[%s7 + $0xb0] sm:$0xf] %vm2367, %v2283
  %2413 = vst.msk [vmem:[%s7 + $0xb4] sm:$0xf] %vm2367, %v2284
  %2414 = vst.msk [vmem:[%s7 + $0xb8] sm:$0xf] %vm2367, %v2285
  %2415 = vst.msk [vmem:[%s7 + $0xbc] sm:$0xf] %vm2367, %v2286
  %2416 = vst.msk [vmem:[%s7 + $0xc0] sm:$0xf] %vm2367, %v2287
  %2417 = vst.msk [vmem:[%s7 + $0xc4] sm:$0xf] %vm2367, %v2288
  %2418 = vst.msk [vmem:[%s7 + $0xc8] sm:$0xf] %vm2367, %v2289
  %2419 = vst.msk [vmem:[%s7 + $0xcc] sm:$0xf] %vm2367, %v2290
  %2420 = vst.msk [vmem:[%s7 + $0xd0] sm:$0xf] %vm2367, %v2291
  %2421 = vst.msk [vmem:[%s7 + $0xd4] sm:$0xf] %vm2367, %v2292
  %2422 = vst.msk [vmem:[%s7 + $0xd8] sm:$0xf] %vm2367, %v2293
  %2423 = vst.msk [vmem:[%s7 + $0xdc] sm:$0xf] %vm2367, %v2294
  %2424 = vst.msk [vmem:[%s7 + $0xe0] sm:$0xf] %vm2367, %v2295
  %2425 = vst.msk [vmem:[%s7 + $0xe4] sm:$0xf] %vm2367, %v2296
  %2426 = vst.msk [vmem:[%s7 + $0xe8] sm:$0xf] %vm2367, %v2297
  %2427 = vst.msk [vmem:[%s7 + $0xec] sm:$0xf] %vm2367, %v2298
  %2428 = vst.msk [vmem:[%s7 + $0xf0] sm:$0xf] %vm2367, %v2299
  %2429 = vst.msk [vmem:[%s7 + $0xf4] sm:$0xf] %vm2367, %v2300
  %2430 = vst.msk [vmem:[%s7 + $0xf8] sm:$0xf] %vm2367, %v2301
  %2431 = vst.msk [vmem:[%s7 + $0xfc] sm:$0xf] %vm2367, %v2302
  // Predicated region
  $region30: #{_lambda_.4} parent=0 // pred_check
    _
  $region31: #{_lambda_.4} parent=0 // pred_check_branch
    %2433 = sbr.rel (0) target = $region33
  $region32: #{_lambda_.4} parent=0 // pred_region
    _
  $region33: #{_lambda_.4} parent=0 // pred_fallthru
    _
  // Predicated region
  $region34: #{_lambda_.4} parent=0 // pred_check
    _
  $region35: #{_lambda_.4} parent=0 // pred_check_branch
    %2435 = sbr.rel (0) target = $region37
  $region36: #{_lambda_.4} parent=0 // pred_region
    _
  $region37: #{_lambda_.4} parent=0 // pred_fallthru
    _

// kernel: custom-call.2
$region0: #{custom-call.2}
  %s0 = inlined_call_operand.hbm [shape: f32[4,4], index: 0, kind: input, shape index: {}]
  %s1 = inlined_call_operand.vmem [shape: f32[4,4], index: 1, kind: output, shape index: {0}]
  %s2 = inlined_call_operand.hbm [shape: s32[4], index: 2, kind: output, shape index: {1}]
  %s3 = inlined_call_operand.hbm [shape: s32[4], index: 3, kind: output, shape index: {2}]
  %4 = xla_tuple %s1, %s2, %s3
  $region1: #{custom-call.2} parent=0
    #allocation0 [shape = 'u8[4096]{0}', space=vmem, size = 0x1000, scoped, tag = 'operand span for operand 0']
    #allocation1 [shape = 'u8[2048]{0}', space=vmem, size = 0x800, scoped, tag = 'packed  for operand 0']
    #allocation2 [shape = 's32[1]{0}', space=sflag, size = 0x4, scoped, tag = 'scoped memory for custom-call.2']
    #allocation3 [shape = 's32[1]{0}', space=sflag, size = 0x4, scoped, tag = 'scoped memory for custom-call.2']
    #allocation4 [shape = 'u8[4096]{0}', space=vmem, size = 0x1000, scoped, tag = 'operand span for operand 1']
    #allocation5 [shape = 'u8[2048]{0}', space=vmem, size = 0x800, scoped, tag = 'packed  for operand 1']
    #allocation6 [shape = 'u8[4096]{0}', space=vmem, size = 0x1000, scoped, tag = 'operand span for operand 2']
    #allocation7 [shape = 'u8[512]{0}', space=vmem, size = 0x400, scoped, tag = 'packed  for operand 2']
    #allocation8 [shape = 'u8[4096]{0}', space=vmem, size = 0x1000, scoped, tag = 'operand span for operand 3']
    #allocation9 [shape = 'u8[512]{0}', space=vmem, size = 0x400, scoped, tag = 'packed  for operand 3']
    #allocation10 [shape = 's32[1]{0}', space=sflag, size = 0x4, scoped, tag = 'scoped memory for custom-call.2']
    #allocation11 [shape = 's32[4,128]{1,0}', space=vmem, size = 0x1000, scoped, tag = 'scratch for permutations']
    %5 = vsyncpa [#allocation2], 0
    %6 = vsyncpa [#allocation3], 0
    %7 = vsyncpa [#allocation10], 0
    %s9 = ssub.s32 64, 64
    %10 = vsyncadd [#allocation2], %s9
    %s11 = sshll.u32 [#allocation1], 4
    %s12 = int_to_ptr.vmem [resolvable:$true] %s11
    %14 = dma.hbm_to_vmem [thread:$0]  %s0, 64, %s12, [#allocation2]
    %15 = dma.done [#allocation2], 64
    %s17 = sshllo.u32 0, 4
    %v18 = vld [vmem:[#allocation1] sm:%s17]
    %19 = vst [vmem:[#allocation0] sm:%s17] %v18
    %v20 = vld [vmem:[#allocation0] sm:$0xff]
    %21 = vst [vmem:[#allocation4] sm:$0xff] %v20
    %22 = vst [vmem:[#allocation6] sm:$0x1] 0
    %v23 = vlaneseq
    %v24 = vshrl.u32 %v23, 7
    %v25 = vmov %v24
    %27 = vst [vmem:[#allocation11] sm:$0xff] %v25
    loop: start=0, step=1, limit=4
    $region3: #{custom-call.2} parent=1 // loop_pre_header
      _
    $region4: #{custom-call.2} parent=1 // loop_header
      %s29 = sphi 0, %s33
      %p30 = scmp.ge.s32.totalorder %s29, 4
    $region5: #{custom-call.2} parent=1 // loop_header_branch
      %32 = sbr.rel (%p30) target = $region9
    $region6: #{custom-call.2} parent=1 // loop_body
      %v34 = vstv %s29
      %v35 = vlaneseq
      %v36 = vshrl.u32 %v35, 7
      %v37 = vmov %v36
      %v38 = vld [vmem:[#allocation4] sm:$0xff]
      %v39 = vand.u32 2147483647, %v38
      %v41 = vstv %s29
      %vm42 = vcmp.ge.s32.totalorder %v37, %v41
      %vm43 = vcmp.lt.s32.totalorder %v37, 4
      %vm44 = vmand %vm42, %vm43
      %vm45 = vcmp.lt.f32.partialorder -inf, %v39
      %vm46 = vmand %vm44, %vm45
      %v47 = vsel %vm46, %v37, %v34
      %v48 = vsel %vm46, %v39, -inf
      %v49 = vrot.slane %v48, 1
      %v50 = vrot.slane %v47, 1
      %vm51 = vcmp.ge.f32.partialorder %v49, %v48
      %v52 = vsel %vm51, %v49, %v48
      %v53 = vsel %vm51, %v50, %v47
      %v54 = vrot.slane %v49, 1
      %v55 = vrot.slane %v50, 1
      %vm56 = vcmp.ge.f32.partialorder %v54, %v52
      %v57 = vsel %vm56, %v54, %v52
      %v58 = vsel %vm56, %v55, %v53
      %v59 = vrot.slane %v54, 1
      %v60 = vrot.slane %v55, 1
      %vm61 = vcmp.ge.f32.partialorder %v59, %v57
      %v62 = vsel %vm61, %v59, %v57
      %v63 = vsel %vm61, %v60, %v58
      %v64 = vrot.slane %v59, 1
      %v65 = vrot.slane %v60, 1
      %vm66 = vcmp.ge.f32.partialorder %v64, %v62
      %v67 = vsel %vm66, %v64, %v62
      %v68 = vsel %vm66, %v65, %v63
      %v69 = vrot.slane %v64, 1
      %v70 = vrot.slane %v65, 1
      %vm71 = vcmp.ge.f32.partialorder %v69, %v67
      %v72 = vsel %vm71, %v69, %v67
      %v73 = vsel %vm71, %v70, %v68
      %v74 = vrot.slane %v69, 1
      %v75 = vrot.slane %v70, 1
      %vm76 = vcmp.ge.f32.partialorder %v74, %v72
      %v77 = vsel %vm76, %v74, %v72
      %v78 = vsel %vm76, %v75, %v73
      %v79 = vrot.slane %v74, 1
      %v80 = vrot.slane %v75, 1
      %vm81 = vcmp.ge.f32.partialorder %v79, %v77
      %v82 = vsel %vm81, %v79, %v77
      %v83 = vsel %vm81, %v80, %v78
      %s84 = ssub.s32 128, %s29
      %85 = vrot.lane.b32.xlu0 %v83, %s84
      %v86 = vpop.permute.xlu0 %85
      %s87 = vtos %v86
      %v88 = vstv %s29
      %v89 = vlaneseq
      %v90 = vand.u32 %v89, 127
      %vm91 = vcmp.eq.s32.totalorder %v90, %v88
      %v92 = vstv %s87
      %v93 = vld [vmem:[#allocation6] ss:$0 sm:$0xff]
      %v94 = vsel %vm91, %v92, %v93
      %95 = vst [vmem:[#allocation6] sm:$0x1] %v94
      %s96 = scalar_lea.vmem [#allocation4], %s29
      %s97 = scalar_lea.vmem [#allocation4], %s87
      %v98 = vld [vmem:[%s96] ss:$0 sm:$0xff]
      %v99 = vld [vmem:[%s97] ss:$0 sm:$0xff]
      %100 = vst [vmem:[%s97] sm:$0x1] %v98
      %101 = vst [vmem:[%s96] sm:$0x1] %v99
      %s102 = scalar_lea.vmem [#allocation11], %s29
      %s103 = scalar_lea.vmem [#allocation11], %s87
      %v104 = vld [vmem:[%s102] ss:$0 sm:$0xff]
      %v105 = vld [vmem:[%s103] ss:$0 sm:$0xff]
      %106 = vst [vmem:[%s103] sm:$0x1] %v104
      %107 = vst [vmem:[%s102] sm:$0x1] %v105
      %vm108 = vcmp.ne.f32.partialorder %v99, 0.0
      %vm109 = vmand %vm91, %vm108
      %v110 = vsel %vm109, %v99, 1.0
      %v111 = vlaneseq
      %v112 = vand.u32 %v111, 127
      %v113 = vstv %s29
      %vm114 = vcmp.gt.s32.totalorder %v112, %v113
      %v115 = vsel %vm114, %v99, 0.0
      %v116 = vlaneseq
      %v117 = vshrl.u32 %v116, 7
      %v118 = vmov %v117
      %v119 = vld [vmem:[#allocation4] sm:$0xff]
      %v121 = vstv %s29
      %vm122 = vcmp.gt.s32.totalorder %v118, %v121
      %v123 = vsel %vm122, %v110, 1.0
      %v124 = vrcp.pop %v123
      %v125 = vmul.f32 %v119, %v124
      %vm126 = vmand %vm122, %vm91
      %v127 = vsel %vm126, %v125, 0.0
      %128 = vadd.xlane.f32.xlu0 %v127
      %v129 = vpop.xlane.xlu0 %128
      %v130 = vmul.f32 %v129, %v115
      %v131 = vsub.f32 %v125, %v130
      %132 = vst [vmem:[#allocation4] sm:$0xff] %v131
    $region7: #{custom-call.2} parent=1 // loop_footer
      %s33 = sadd.s32 1, %s29
    $region8: #{custom-call.2} parent=1 // loop_footer_branch
      %28 = sbr.rel target = $region4
    $region9: #{custom-call.2} parent=1 // loop_exit
      _
    %v133 = vld [vmem:[#allocation11] sm:$0xff]
    %s134 = scalar_lea.vmem [#allocation11], 8
    %s135 = scalar_lea.vmem [#allocation11], 16
    %s136 = scalar_lea.vmem [#allocation11], 24
    %s137 = scalar_lea.vmem [#allocation11], 32
    %s138 = scalar_lea.vmem [#allocation11], 40
    %s139 = scalar_lea.vmem [#allocation11], 48
    %s140 = scalar_lea.vmem [#allocation11], 56
    %s141 = scalar_lea.vmem [#allocation11], 64
    %s142 = scalar_lea.vmem [#allocation11], 72
    %s143 = scalar_lea.vmem [#allocation11], 80
    %s144 = scalar_lea.vmem [#allocation11], 88
    %s145 = scalar_lea.vmem [#allocation11], 96
    %s146 = scalar_lea.vmem [#allocation11], 104
    %s147 = scalar_lea.vmem [#allocation11], 112
    %s148 = scalar_lea.vmem [#allocation11], 120
    %149 = vxpose.xlu0.b32.start [1/16] %v133, 128
    %150 = vxpose.xlu0.b32.cont [2/16] 0, 128
    %151 = vxpose.xlu0.b32.cont [3/16] 0, 128
    %152 = vxpose.xlu0.b32.cont [4/16] 0, 128
    %153 = vxpose.xlu0.b32.cont [5/16] 0, 128
    %154 = vxpose.xlu0.b32.cont [6/16] 0, 128
    %155 = vxpose.xlu0.b32.cont [7/16] 0, 128
    %156 = vxpose.xlu0.b32.cont [8/16] 0, 128
    %157 = vxpose.xlu0.b32.cont [9/16] 0, 128
    %158 = vxpose.xlu0.b32.cont [10/16] 0, 128
    %159 = vxpose.xlu0.b32.cont [11/16] 0, 128
    %160 = vxpose.xlu0.b32.cont [12/16] 0, 128
    %161 = vxpose.xlu0.b32.cont [13/16] 0, 128
    %162 = vxpose.xlu0.b32.cont [14/16] 0, 128
    %163 = vxpose.xlu0.b32.cont [15/16] 0, 128
    %164 = vxpose.xlu0.b32.end [16/16] 0, 128
    %v165 = vpop.trf.xlu0
    %v166 = vpop.trf.xlu0
    %v167 = vpop.trf.xlu0
    %v168 = vpop.trf.xlu0
    %v169 = vpop.trf.xlu0
    %v170 = vpop.trf.xlu0
    %v171 = vpop.trf.xlu0
    %v172 = vpop.trf.xlu0
    %v173 = vpop.trf.xlu0
    %v174 = vpop.trf.xlu0
    %v175 = vpop.trf.xlu0
    %v176 = vpop.trf.xlu0
    %v177 = vpop.trf.xlu0
    %v178 = vpop.trf.xlu0
    %v179 = vpop.trf.xlu0
    %v180 = vpop.trf.xlu0
    %181 = vst [vmem:[#allocation8] sm:$0x1] %v165
    %s183 = sshllo.u32 0, 4
    %v185 = vld [vmem:[#allocation4] sm:%s183]
    %s186 = sshllo.u32 0, 4
    %187 = vst [vmem:[#allocation5] sm:%s186] %v185
    %s189 = sshllo.u32 0, 1
    %v191 = vld [vmem:[#allocation6] sm:%s189]
    %s192 = sshllo.u32 0, 1
    %193 = vst [vmem:[#allocation7] sm:%s192] %v191
    %s195 = sshllo.u32 0, 1
    %v197 = vld [vmem:[#allocation8] sm:%s195]
    %s198 = sshllo.u32 0, 1
    %199 = vst [vmem:[#allocation9] sm:%s198] %v197
    %p201 = scmp.gt.s32.totalorder 4, 0
    // Predicated region
    $region10: #{custom-call.2} parent=1 // pred_check
      %p202 = pneg %p201
    $region11: #{custom-call.2} parent=1 // pred_check_branch
      %204 = sbr.rel (%p202) target = $region13
    $region12: #{custom-call.2} parent=1 // pred_region
      %s205 = sshra.s32 4, 3
      %p206 = scmp.gt.s32.totalorder %s205, 0
      // Predicated region
      $region14: #{custom-call.2} parent=12 // pred_check
        %p207 = pneg %p206
      $region15: #{custom-call.2} parent=12 // pred_check_branch
        %209 = sbr.rel (%p207) target = $region17
      $region16: #{custom-call.2} parent=12 // pred_region
        %s210 = ssub.s32 %s205, 1
        %s211 = smul.u32 %s210, 128
        %s212 = sshra.s32 %s211, 4
        %s213 = scalar_lea.vmem [#allocation5], %s212
        %v214 = vld [vmem:[#allocation5] sm:$0xff]
        // While loop
        $region18: #{custom-call.2} parent=16 // loop_pre_header
          _
        $region19: #{custom-call.2} parent=16 // loop_header
          %s215 = sphi [#allocation5], %s237
          %s216 = sphi %s1, %s238
          %v217 = vphi %v214, %v239
          %s218 = ssub.s32 %s213, 64
          %p219 = scmp.gt.s32.totalorder %s215, %s218
        $region20: #{custom-call.2} parent=16 // loop_header_branch
          %221 = sbr.rel (%p219) target = $region24
        $region21: #{custom-call.2} parent=16 // loop_body
          %222 = vst [vmem:[%s216] sm:$0xff] %v217
          %v223 = vld [vmem:[%s215 + $0x8] sm:$0xff]
          %224 = vst [vmem:[%s216 + $0x8] sm:$0xff] %v223
          %v225 = vld [vmem:[%s215 + $0x10] sm:$0xff]
          %226 = vst [vmem:[%s216 + $0x10] sm:$0xff] %v225
          %v227 = vld [vmem:[%s215 + $0x18] sm:$0xff]
          %228 = vst [vmem:[%s216 + $0x18] sm:$0xff] %v227
          %v229 = vld [vmem:[%s215 + $0x20] sm:$0xff]
          %230 = vst [vmem:[%s216 + $0x20] sm:$0xff] %v229
          %v231 = vld [vmem:[%s215 + $0x28] sm:$0xff]
          %232 = vst [vmem:[%s216 + $0x28] sm:$0xff] %v231
          %v233 = vld [vmem:[%s215 + $0x30] sm:$0xff]
          %234 = vst [vmem:[%s216 + $0x30] sm:$0xff] %v233
          %v235 = vld [vmem:[%s215 + $0x38] sm:$0xff]
          %236 = vst [vmem:[%s216 + $0x38] sm:$0xff] %v235
        $region22: #{custom-call.2} parent=16 // loop_footer
          %s237 = scalar_lea.vmem %s215, 64
          %s238 = scalar_lea.vmem %s216, 64
          %v239 = vld [vmem:[%s215 + $0x40] sm:$0xff]
        $region23: #{custom-call.2} parent=16 // loop_footer_branch
          %240 = sbr.rel target = $region19
        $region24: #{custom-call.2} parent=16 // loop_exit
          _
        // While loop
        $region25: #{custom-call.2} parent=16 // loop_pre_header
          _
        $region26: #{custom-call.2} parent=16 // loop_header
          %s241 = sphi %s215, %s249
          %s242 = sphi %s216, %s250
          %v243 = vphi %v217, %v243
          %p244 = scmp.gt.s32.totalorder %s241, %s213
        $region27: #{custom-call.2} parent=16 // loop_header_branch
          %246 = sbr.rel (%p244) target = $region31
        $region28: #{custom-call.2} parent=16 // loop_body
          %v247 = vld [vmem:[%s241] sm:$0xff]
          %248 = vst [vmem:[%s242] sm:$0xff] %v247
        $region29: #{custom-call.2} parent=16 // loop_footer
          %s249 = scalar_lea.vmem %s241, 8
          %s250 = scalar_lea.vmem %s242, 8
        $region30: #{custom-call.2} parent=16 // loop_footer_branch
          %251 = sbr.rel target = $region26
        $region31: #{custom-call.2} parent=16 // loop_exit
          _
      $region17: #{custom-call.2} parent=12 // pred_fallthru
        _
      %s252 = sand.u32 4, 7
      %s253 = sshllo.u32 0, %s252
      %s254 = smul.u32 %s205, 128
      %s255 = sshra.s32 %s254, 4
      %s256 = scalar_lea.vmem %s1, %s255
      %s257 = smul.u32 %s205, 128
      %s258 = sshra.s32 %s257, 4
      %s259 = scalar_lea.vmem [#allocation5], %s258
      %v260 = vld [vmem:[%s259] sm:%s253]
      %261 = vst [vmem:[%s256] sm:%s253] %v260
    $region13: #{custom-call.2} parent=1 // pred_fallthru
      _
    // Predicated region
    $region32: #{custom-call.2} parent=1 // pred_check
      _
    $region33: #{custom-call.2} parent=1 // pred_check_branch
      %263 = sbr.rel (0) target = $region35
    $region34: #{custom-call.2} parent=1 // pred_region
      %s265 = ssub.s32 16, 16
      %266 = vsyncadd [#allocation3], %s265
      %s267 = sshll.u32 [#allocation7], 4
      %s268 = int_to_ptr.vmem [resolvable:$true] %s267
      %270 = dma.vmem_to_hbm [thread:$0]  %s268, 16, %s2, [#allocation3]
    $region35: #{custom-call.2} parent=1 // pred_fallthru
      _
    // Predicated region
    $region36: #{custom-call.2} parent=1 // pred_check
      _
    $region37: #{custom-call.2} parent=1 // pred_check_branch
      %272 = sbr.rel (0) target = $region39
    $region38: #{custom-call.2} parent=1 // pred_region
      %s274 = ssub.s32 16, 16
      %275 = vsyncadd [#allocation10], %s274
      %s276 = sshll.u32 [#allocation9], 4
      %s277 = int_to_ptr.vmem [resolvable:$true] %s276
      %279 = dma.vmem_to_hbm [thread:$0]  %s277, 16, %s3, [#allocation10]
    $region39: #{custom-call.2} parent=1 // pred_fallthru
      _
    // Predicated region
    $region40: #{custom-call.2} parent=1 // pred_check
      _
    $region41: #{custom-call.2} parent=1 // pred_check_branch
      %281 = sbr.rel (0) target = $region43
    $region42: #{custom-call.2} parent=1 // pred_region
      %282 = dma.done [#allocation3], 16
    $region43: #{custom-call.2} parent=1 // pred_fallthru
      _
    // Predicated region
    $region44: #{custom-call.2} parent=1 // pred_check
      _
    $region45: #{custom-call.2} parent=1 // pred_check_branch
      %284 = sbr.rel (0) target = $region47
    $region46: #{custom-call.2} parent=1 // pred_region
      %285 = dma.done [#allocation10], 16
    $region47: #{custom-call.2} parent=1 // pred_fallthru
      _
    %286 = vsyncpa [#allocation2], 1
    %287 = vsyncpa [#allocation3], 1
    %288 = vsyncpa [#allocation10], 1

// kernel: _lambda_.5
$region0: #{_lambda_.5}
  #allocation0 [shape = 'u32[]', space=smem, size = 0x4, offset = 0x4, fixed_abs, tag = 'smem constant byte address 0x4 - core index']
  #allocation1 [shape = 'u32[144,128]{1,0:T(1,128)}', space=vmem, size = 0x12000, scoped, tag = 'internal scratch']
  %s0 = inlined_call_operand.vmem [shape: bf16[512,288], index: 0, kind: input, shape index: {}]
  %s1 = inlined_call_operand.vmem [shape: f32[512,2], index: 1, kind: input, shape index: {}]
  %s2 = inlined_call_operand.vmem [shape: bf16[288,4], index: 2, kind: input, shape index: {}]
  %s3 = inlined_call_operand.vmem [shape: f32[1,4], index: 3, kind: input, shape index: {}]
  %s4 = inlined_call_operand.vmem [shape: f32[1,2], index: 4, kind: input, shape index: {}]
  %s5 = inlined_call_operand.vmem [shape: f32[512,2], index: 5, kind: output, shape index: {0}]
  %s6 = inlined_call_operand.vmem [shape: f32[512,1], index: 6, kind: output, shape index: {1}]
  %7 = xla_tuple %s5, %s6
  %s8 = sld [smem:[#allocation0]]
  $region38: #{_lambda_.5} parent=0
    _
  %s10 = ssub.s32 1, %s8
  %s11 = scalar_select 0, %s10, %s8
  // Predicated region
  $region2: #{_lambda_.5} parent=0 // pred_check
    _
  $region3: #{_lambda_.5} parent=0 // pred_check_branch
    %13 = sbr.rel (0) target = $region5
  $region4: #{_lambda_.5} parent=0 // pred_region
    _
  $region5: #{_lambda_.5} parent=0 // pred_fallthru
    _
  // Predicated region
  $region6: #{_lambda_.5} parent=0 // pred_check
    _
  $region7: #{_lambda_.5} parent=0 // pred_check_branch
    %15 = sbr.rel (0) target = $region9
  $region8: #{_lambda_.5} parent=0 // pred_region
    _
  $region9: #{_lambda_.5} parent=0 // pred_fallthru
    _
  // Predicated region
  $region10: #{_lambda_.5} parent=0 // pred_check
    _
  $region11: #{_lambda_.5} parent=0 // pred_check_branch
    %17 = sbr.rel (0) target = $region13
  $region12: #{_lambda_.5} parent=0 // pred_region
    _
  $region13: #{_lambda_.5} parent=0 // pred_fallthru
    _
  // Predicated region
  $region14: #{_lambda_.5} parent=0 // pred_check
    _
  $region15: #{_lambda_.5} parent=0 // pred_check_branch
    %19 = sbr.rel (0) target = $region17
  $region16: #{_lambda_.5} parent=0 // pred_region
    _
  $region17: #{_lambda_.5} parent=0 // pred_fallthru
    _
  // Predicated region
  $region18: #{_lambda_.5} parent=0 // pred_check
    _
  $region19: #{_lambda_.5} parent=0 // pred_check_branch
    %21 = sbr.rel (0) target = $region21
  $region20: #{_lambda_.5} parent=0 // pred_region
    _
  $region21: #{_lambda_.5} parent=0 // pred_fallthru
    _
  %v23 = vld [vmem:[%s0] sm:$0xff]
  %v24 = vld [vmem:[%s0 + $0x8] sm:$0xf]
  %v25 = vld [vmem:[%s0 + $0xc] sm:$0xff]
  %v26 = vld [vmem:[%s0 + $0x14] sm:$0xf]
  %v27 = vld [vmem:[%s0 + $0x18] sm:$0xff]
  %v28 = vld [vmem:[%s0 + $0x20] sm:$0xf]
  %v29 = vld [vmem:[%s0 + $0x24] sm:$0xff]
  %v30 = vld [vmem:[%s0 + $0x2c] sm:$0xf]
  %v31 = vld [vmem:[%s0 + $0x30] sm:$0xff]
  %v32 = vld [vmem:[%s0 + $0x38] sm:$0xf]
  %v33 = vld [vmem:[%s0 + $0x3c] sm:$0xff]
  %v34 = vld [vmem:[%s0 + $0x44] sm:$0xf]
  %v35 = vld [vmem:[%s0 + $0x48] sm:$0xff]
  %v36 = vld [vmem:[%s0 + $0x50] sm:$0xf]
  %v37 = vld [vmem:[%s0 + $0x54] sm:$0xff]
  %v38 = vld [vmem:[%s0 + $0x5c] sm:$0xf]
  %v39 = vld [vmem:[%s0 + $0x60] sm:$0xff]
  %v40 = vld [vmem:[%s0 + $0x68] sm:$0xf]
  %v41 = vld [vmem:[%s0 + $0x6c] sm:$0xff]
  %v42 = vld [vmem:[%s0 + $0x74] sm:$0xf]
  %v43 = vld [vmem:[%s0 + $0x78] sm:$0xff]
  %v44 = vld [vmem:[%s0 + $0x80] sm:$0xf]
  %v45 = vld [vmem:[%s0 + $0x84] sm:$0xff]
  %v46 = vld [vmem:[%s0 + $0x8c] sm:$0xf]
  %v47 = vld [vmem:[%s0 + $0x90] sm:$0xff]
  %v48 = vld [vmem:[%s0 + $0x98] sm:$0xf]
  %v49 = vld [vmem:[%s0 + $0x9c] sm:$0xff]
  %v50 = vld [vmem:[%s0 + $0xa4] sm:$0xf]
  %v51 = vld [vmem:[%s0 + $0xa8] sm:$0xff]
  %v52 = vld [vmem:[%s0 + $0xb0] sm:$0xf]
  %v53 = vld [vmem:[%s0 + $0xb4] sm:$0xff]
  %v54 = vld [vmem:[%s0 + $0xbc] sm:$0xf]
  %v55 = vld [vmem:[%s0 + $0xc0] sm:$0xff]
  %v56 = vld [vmem:[%s0 + $0xc8] sm:$0xf]
  %v57 = vld [vmem:[%s0 + $0xcc] sm:$0xff]
  %v58 = vld [vmem:[%s0 + $0xd4] sm:$0xf]
  %v59 = vld [vmem:[%s0 + $0xd8] sm:$0xff]
  %v60 = vld [vmem:[%s0 + $0xe0] sm:$0xf]
  %v61 = vld [vmem:[%s0 + $0xe4] sm:$0xff]
  %v62 = vld [vmem:[%s0 + $0xec] sm:$0xf]
  %v63 = vld [vmem:[%s0 + $0xf0] sm:$0xff]
  %v64 = vld [vmem:[%s0 + $0xf8] sm:$0xf]
  %v65 = vld [vmem:[%s0 + $0xfc] sm:$0xff]
  %v66 = vld [vmem:[%s0 + $0x104] sm:$0xf]
  %v67 = vld [vmem:[%s0 + $0x108] sm:$0xff]
  %v68 = vld [vmem:[%s0 + $0x110] sm:$0xf]
  %v69 = vld [vmem:[%s0 + $0x114] sm:$0xff]
  %v70 = vld [vmem:[%s0 + $0x11c] sm:$0xf]
  %v71 = vld [vmem:[%s0 + $0x120] sm:$0xff]
  %v72 = vld [vmem:[%s0 + $0x128] sm:$0xf]
  %v73 = vld [vmem:[%s0 + $0x12c] sm:$0xff]
  %v74 = vld [vmem:[%s0 + $0x134] sm:$0xf]
  %v75 = vld [vmem:[%s0 + $0x138] sm:$0xff]
  %v76 = vld [vmem:[%s0 + $0x140] sm:$0xf]
  %v77 = vld [vmem:[%s0 + $0x144] sm:$0xff]
  %v78 = vld [vmem:[%s0 + $0x14c] sm:$0xf]
  %v79 = vld [vmem:[%s0 + $0x150] sm:$0xff]
  %v80 = vld [vmem:[%s0 + $0x158] sm:$0xf]
  %v81 = vld [vmem:[%s0 + $0x15c] sm:$0xff]
  %v82 = vld [vmem:[%s0 + $0x164] sm:$0xf]
  %v83 = vld [vmem:[%s0 + $0x168] sm:$0xff]
  %v84 = vld [vmem:[%s0 + $0x170] sm:$0xf]
  %v85 = vld [vmem:[%s0 + $0x174] sm:$0xff]
  %v86 = vld [vmem:[%s0 + $0x17c] sm:$0xf]
  %v87 = vld [vmem:[%s0 + $0x180] sm:$0xff]
  %v88 = vld [vmem:[%s0 + $0x188] sm:$0xf]
  %v89 = vld [vmem:[%s0 + $0x18c] sm:$0xff]
  %v90 = vld [vmem:[%s0 + $0x194] sm:$0xf]
  %v91 = vld [vmem:[%s0 + $0x198] sm:$0xff]
  %v92 = vld [vmem:[%s0 + $0x1a0] sm:$0xf]
  %v93 = vld [vmem:[%s0 + $0x1a4] sm:$0xff]
  %v94 = vld [vmem:[%s0 + $0x1ac] sm:$0xf]
  %v95 = vld [vmem:[%s0 + $0x1b0] sm:$0xff]
  %v96 = vld [vmem:[%s0 + $0x1b8] sm:$0xf]
  %v97 = vld [vmem:[%s0 + $0x1bc] sm:$0xff]
  %v98 = vld [vmem:[%s0 + $0x1c4] sm:$0xf]
  %v99 = vld [vmem:[%s0 + $0x1c8] sm:$0xff]
  %v100 = vld [vmem:[%s0 + $0x1d0] sm:$0xf]
  %v101 = vld [vmem:[%s0 + $0x1d4] sm:$0xff]
  %v102 = vld [vmem:[%s0 + $0x1dc] sm:$0xf]
  %v103 = vld [vmem:[%s0 + $0x1e0] sm:$0xff]
  %v104 = vld [vmem:[%s0 + $0x1e8] sm:$0xf]
  %v105 = vld [vmem:[%s0 + $0x1ec] sm:$0xff]
  %v106 = vld [vmem:[%s0 + $0x1f4] sm:$0xf]
  %v107 = vld [vmem:[%s0 + $0x1f8] sm:$0xff]
  %v108 = vld [vmem:[%s0 + $0x200] sm:$0xf]
  %v109 = vld [vmem:[%s0 + $0x204] sm:$0xff]
  %v110 = vld [vmem:[%s0 + $0x20c] sm:$0xf]
  %v111 = vld [vmem:[%s0 + $0x210] sm:$0xff]
  %v112 = vld [vmem:[%s0 + $0x218] sm:$0xf]
  %v113 = vld [vmem:[%s0 + $0x21c] sm:$0xff]
  %v114 = vld [vmem:[%s0 + $0x224] sm:$0xf]
  %v115 = vld [vmem:[%s0 + $0x228] sm:$0xff]
  %v116 = vld [vmem:[%s0 + $0x230] sm:$0xf]
  %v117 = vld [vmem:[%s0 + $0x234] sm:$0xff]
  %v118 = vld [vmem:[%s0 + $0x23c] sm:$0xf]
  %v119 = vld [vmem:[%s0 + $0x240] sm:$0xff]
  %v120 = vld [vmem:[%s0 + $0x248] sm:$0xf]
  %v121 = vld [vmem:[%s0 + $0x24c] sm:$0xff]
  %v122 = vld [vmem:[%s0 + $0x254] sm:$0xf]
  %v123 = vld [vmem:[%s0 + $0x258] sm:$0xff]
  %v124 = vld [vmem:[%s0 + $0x260] sm:$0xf]
  %v125 = vld [vmem:[%s0 + $0x264] sm:$0xff]
  %v126 = vld [vmem:[%s0 + $0x26c] sm:$0xf]
  %v127 = vld [vmem:[%s0 + $0x270] sm:$0xff]
  %v128 = vld [vmem:[%s0 + $0x278] sm:$0xf]
  %v129 = vld [vmem:[%s0 + $0x27c] sm:$0xff]
  %v130 = vld [vmem:[%s0 + $0x284] sm:$0xf]
  %v131 = vld [vmem:[%s0 + $0x288] sm:$0xff]
  %v132 = vld [vmem:[%s0 + $0x290] sm:$0xf]
  %v133 = vld [vmem:[%s0 + $0x294] sm:$0xff]
  %v134 = vld [vmem:[%s0 + $0x29c] sm:$0xf]
  %v135 = vld [vmem:[%s0 + $0x2a0] sm:$0xff]
  %v136 = vld [vmem:[%s0 + $0x2a8] sm:$0xf]
  %v137 = vld [vmem:[%s0 + $0x2ac] sm:$0xff]
  %v138 = vld [vmem:[%s0 + $0x2b4] sm:$0xf]
  %v139 = vld [vmem:[%s0 + $0x2b8] sm:$0xff]
  %v140 = vld [vmem:[%s0 + $0x2c0] sm:$0xf]
  %v141 = vld [vmem:[%s0 + $0x2c4] sm:$0xff]
  %v142 = vld [vmem:[%s0 + $0x2cc] sm:$0xf]
  %v143 = vld [vmem:[%s0 + $0x2d0] sm:$0xff]
  %v144 = vld [vmem:[%s0 + $0x2d8] sm:$0xf]
  %v145 = vld [vmem:[%s0 + $0x2dc] sm:$0xff]
  %v146 = vld [vmem:[%s0 + $0x2e4] sm:$0xf]
  %v147 = vld [vmem:[%s0 + $0x2e8] sm:$0xff]
  %v148 = vld [vmem:[%s0 + $0x2f0] sm:$0xf]
  %v149 = vld [vmem:[%s0 + $0x2f4] sm:$0xff]
  %v150 = vld [vmem:[%s0 + $0x2fc] sm:$0xf]
  %v151 = vld [vmem:[%s2] sm:$0xf]
  %v152 = vld [vmem:[%s2 + $0x4] sm:$0xf]
  %v153 = vld [vmem:[%s2 + $0x8] sm:$0xf]
  %v154 = vld [vmem:[%s2 + $0xc] sm:$0xf]
  %v155 = vld [vmem:[%s2 + $0x10] sm:$0xf]
  %v156 = vld [vmem:[%s2 + $0x14] sm:$0xf]
  %v157 = vld [vmem:[%s2 + $0x18] sm:$0xf]
  %v158 = vld [vmem:[%s2 + $0x1c] sm:$0xf]
  %v159 = vld [vmem:[%s2 + $0x20] sm:$0xf]
  %v160 = vld [vmem:[%s2 + $0x24] sm:$0xf]
  %v161 = vld [vmem:[%s2 + $0x28] sm:$0xf]
  %v162 = vld [vmem:[%s2 + $0x2c] sm:$0xf]
  %v163 = vld [vmem:[%s2 + $0x30] sm:$0xf]
  %v164 = vld [vmem:[%s2 + $0x34] sm:$0xf]
  %v165 = vld [vmem:[%s2 + $0x38] sm:$0xf]
  %v166 = vld [vmem:[%s2 + $0x3c] sm:$0xf]
  %v167 = vld [vmem:[%s2 + $0x40] sm:$0xf]
  %v168 = vld [vmem:[%s2 + $0x44] sm:$0xf]
  %v169 = vld [vmem:[%s2 + $0x48] sm:$0xf]
  %v170 = vld [vmem:[%s2 + $0x4c] sm:$0xf]
  %v171 = vld [vmem:[%s2 + $0x50] sm:$0xf]
  %v172 = vld [vmem:[%s2 + $0x54] sm:$0xf]
  %v173 = vld [vmem:[%s2 + $0x58] sm:$0xf]
  %v174 = vld [vmem:[%s2 + $0x5c] sm:$0xf]
  %v175 = vld [vmem:[%s2 + $0x60] sm:$0xf]
  %v176 = vld [vmem:[%s2 + $0x64] sm:$0xf]
  %v177 = vld [vmem:[%s2 + $0x68] sm:$0xf]
  %v178 = vld [vmem:[%s2 + $0x6c] sm:$0xf]
  %v179 = vld [vmem:[%s2 + $0x70] sm:$0xf]
  %v180 = vld [vmem:[%s2 + $0x74] sm:$0xf]
  %v181 = vld [vmem:[%s2 + $0x78] sm:$0xf]
  %v182 = vld [vmem:[%s2 + $0x7c] sm:$0xf]
  %v183 = vld [vmem:[%s2 + $0x80] sm:$0xf]
  %v184 = vld [vmem:[%s2 + $0x84] sm:$0xf]
  %v185 = vld [vmem:[%s2 + $0x88] sm:$0xf]
  %v186 = vld [vmem:[%s2 + $0x8c] sm:$0xf]
  %v187 = vld [vmem:[%s3] sm:$0x1]
  %v189 = vlaneseq
  %v190 = vshrl.u32 %v189, 7
  %v191 = vsub.s32 0, %v190
  %v192 = vrot.slane %v187, %v191
  %v322 = vunpack.c.l.b16 %v23
  %v323 = vunpack.c.h.b16 %v23
  %v324 = vunpack.c.l.b16 %v24
  %v325 = vunpack.c.l.b16 %v25
  %v326 = vunpack.c.h.b16 %v25
  %v327 = vunpack.c.l.b16 %v26
  %v328 = vunpack.c.l.b16 %v27
  %v329 = vunpack.c.h.b16 %v27
  %v330 = vunpack.c.l.b16 %v28
  %v331 = vunpack.c.l.b16 %v29
  %v332 = vunpack.c.h.b16 %v29
  %v333 = vunpack.c.l.b16 %v30
  %v334 = vunpack.c.l.b16 %v31
  %v335 = vunpack.c.h.b16 %v31
  %v336 = vunpack.c.l.b16 %v32
  %v337 = vunpack.c.l.b16 %v33
  %v338 = vunpack.c.h.b16 %v33
  %v339 = vunpack.c.l.b16 %v34
  %v340 = vunpack.c.l.b16 %v35
  %v341 = vunpack.c.h.b16 %v35
  %v342 = vunpack.c.l.b16 %v36
  %v343 = vunpack.c.l.b16 %v37
  %v344 = vunpack.c.h.b16 %v37
  %v345 = vunpack.c.l.b16 %v38
  %v346 = vunpack.c.l.b16 %v39
  %v347 = vunpack.c.h.b16 %v39
  %v348 = vunpack.c.l.b16 %v40
  %v349 = vunpack.c.l.b16 %v41
  %v350 = vunpack.c.h.b16 %v41
  %v351 = vunpack.c.l.b16 %v42
  %v352 = vunpack.c.l.b16 %v43
  %v353 = vunpack.c.h.b16 %v43
  %v354 = vunpack.c.l.b16 %v44
  %v355 = vunpack.c.l.b16 %v45
  %v356 = vunpack.c.h.b16 %v45
  %v357 = vunpack.c.l.b16 %v46
  %v358 = vunpack.c.l.b16 %v47
  %v359 = vunpack.c.h.b16 %v47
  %v360 = vunpack.c.l.b16 %v48
  %v361 = vunpack.c.l.b16 %v49
  %v362 = vunpack.c.h.b16 %v49
  %v363 = vunpack.c.l.b16 %v50
  %v364 = vunpack.c.l.b16 %v51
  %v365 = vunpack.c.h.b16 %v51
  %v366 = vunpack.c.l.b16 %v52
  %v367 = vunpack.c.l.b16 %v53
  %v368 = vunpack.c.h.b16 %v53
  %v369 = vunpack.c.l.b16 %v54
  %v370 = vunpack.c.l.b16 %v55
  %v371 = vunpack.c.h.b16 %v55
  %v372 = vunpack.c.l.b16 %v56
  %v373 = vunpack.c.l.b16 %v57
  %v374 = vunpack.c.h.b16 %v57
  %v375 = vunpack.c.l.b16 %v58
  %v376 = vunpack.c.l.b16 %v59
  %v377 = vunpack.c.h.b16 %v59
  %v378 = vunpack.c.l.b16 %v60
  %v379 = vunpack.c.l.b16 %v61
  %v380 = vunpack.c.h.b16 %v61
  %v381 = vunpack.c.l.b16 %v62
  %v382 = vunpack.c.l.b16 %v63
  %v383 = vunpack.c.h.b16 %v63
  %v384 = vunpack.c.l.b16 %v64
  %v385 = vunpack.c.l.b16 %v65
  %v386 = vunpack.c.h.b16 %v65
  %v387 = vunpack.c.l.b16 %v66
  %v388 = vunpack.c.l.b16 %v67
  %v389 = vunpack.c.h.b16 %v67
  %v390 = vunpack.c.l.b16 %v68
  %v391 = vunpack.c.l.b16 %v69
  %v392 = vunpack.c.h.b16 %v69
  %v393 = vunpack.c.l.b16 %v70
  %v394 = vunpack.c.l.b16 %v71
  %v395 = vunpack.c.h.b16 %v71
  %v396 = vunpack.c.l.b16 %v72
  %v397 = vunpack.c.l.b16 %v73
  %v398 = vunpack.c.h.b16 %v73
  %v399 = vunpack.c.l.b16 %v74
  %v400 = vunpack.c.l.b16 %v75
  %v401 = vunpack.c.h.b16 %v75
  %v402 = vunpack.c.l.b16 %v76
  %v403 = vunpack.c.l.b16 %v77
  %v404 = vunpack.c.h.b16 %v77
  %v405 = vunpack.c.l.b16 %v78
  %v406 = vunpack.c.l.b16 %v79
  %v407 = vunpack.c.h.b16 %v79
  %v408 = vunpack.c.l.b16 %v80
  %v409 = vunpack.c.l.b16 %v81
  %v410 = vunpack.c.h.b16 %v81
  %v411 = vunpack.c.l.b16 %v82
  %v412 = vunpack.c.l.b16 %v83
  %v413 = vunpack.c.h.b16 %v83
  %v414 = vunpack.c.l.b16 %v84
  %v415 = vunpack.c.l.b16 %v85
  %v416 = vunpack.c.h.b16 %v85
  %v417 = vunpack.c.l.b16 %v86
  %v418 = vunpack.c.l.b16 %v87
  %v419 = vunpack.c.h.b16 %v87
  %v420 = vunpack.c.l.b16 %v88
  %v421 = vunpack.c.l.b16 %v89
  %v422 = vunpack.c.h.b16 %v89
  %v423 = vunpack.c.l.b16 %v90
  %v424 = vunpack.c.l.b16 %v91
  %v425 = vunpack.c.h.b16 %v91
  %v426 = vunpack.c.l.b16 %v92
  %v427 = vunpack.c.l.b16 %v93
  %v428 = vunpack.c.h.b16 %v93
  %v429 = vunpack.c.l.b16 %v94
  %v430 = vunpack.c.l.b16 %v95
  %v431 = vunpack.c.h.b16 %v95
  %v432 = vunpack.c.l.b16 %v96
  %v433 = vunpack.c.l.b16 %v97
  %v434 = vunpack.c.h.b16 %v97
  %v435 = vunpack.c.l.b16 %v98
  %v436 = vunpack.c.l.b16 %v99
  %v437 = vunpack.c.h.b16 %v99
  %v438 = vunpack.c.l.b16 %v100
  %v439 = vunpack.c.l.b16 %v101
  %v440 = vunpack.c.h.b16 %v101
  %v441 = vunpack.c.l.b16 %v102
  %v442 = vunpack.c.l.b16 %v103
  %v443 = vunpack.c.h.b16 %v103
  %v444 = vunpack.c.l.b16 %v104
  %v445 = vunpack.c.l.b16 %v105
  %v446 = vunpack.c.h.b16 %v105
  %v447 = vunpack.c.l.b16 %v106
  %v448 = vunpack.c.l.b16 %v107
  %v449 = vunpack.c.h.b16 %v107
  %v450 = vunpack.c.l.b16 %v108
  %v451 = vunpack.c.l.b16 %v109
  %v452 = vunpack.c.h.b16 %v109
  %v453 = vunpack.c.l.b16 %v110
  %v454 = vunpack.c.l.b16 %v111
  %v455 = vunpack.c.h.b16 %v111
  %v456 = vunpack.c.l.b16 %v112
  %v457 = vunpack.c.l.b16 %v113
  %v458 = vunpack.c.h.b16 %v113
  %v459 = vunpack.c.l.b16 %v114
  %v460 = vunpack.c.l.b16 %v115
  %v461 = vunpack.c.h.b16 %v115
  %v462 = vunpack.c.l.b16 %v116
  %v463 = vunpack.c.l.b16 %v117
  %v464 = vunpack.c.h.b16 %v117
  %v465 = vunpack.c.l.b16 %v118
  %v466 = vunpack.c.l.b16 %v119
  %v467 = vunpack.c.h.b16 %v119
  %v468 = vunpack.c.l.b16 %v120
  %v469 = vunpack.c.l.b16 %v121
  %v470 = vunpack.c.h.b16 %v121
  %v471 = vunpack.c.l.b16 %v122
  %v472 = vunpack.c.l.b16 %v123
  %v473 = vunpack.c.h.b16 %v123
  %v474 = vunpack.c.l.b16 %v124
  %v475 = vunpack.c.l.b16 %v125
  %v476 = vunpack.c.h.b16 %v125
  %v477 = vunpack.c.l.b16 %v126
  %v478 = vunpack.c.l.b16 %v127
  %v479 = vunpack.c.h.b16 %v127
  %v480 = vunpack.c.l.b16 %v128
  %v481 = vunpack.c.l.b16 %v129
  %v482 = vunpack.c.h.b16 %v129
  %v483 = vunpack.c.l.b16 %v130
  %v484 = vunpack.c.l.b16 %v131
  %v485 = vunpack.c.h.b16 %v131
  %v486 = vunpack.c.l.b16 %v132
  %v487 = vunpack.c.l.b16 %v133
  %v488 = vunpack.c.h.b16 %v133
  %v489 = vunpack.c.l.b16 %v134
  %v490 = vunpack.c.l.b16 %v135
  %v491 = vunpack.c.h.b16 %v135
  %v492 = vunpack.c.l.b16 %v136
  %v493 = vunpack.c.l.b16 %v137
  %v494 = vunpack.c.h.b16 %v137
  %v495 = vunpack.c.l.b16 %v138
  %v496 = vunpack.c.l.b16 %v139
  %v497 = vunpack.c.h.b16 %v139
  %v498 = vunpack.c.l.b16 %v140
  %v499 = vunpack.c.l.b16 %v141
  %v500 = vunpack.c.h.b16 %v141
  %v501 = vunpack.c.l.b16 %v142
  %v502 = vunpack.c.l.b16 %v143
  %v503 = vunpack.c.h.b16 %v143
  %v504 = vunpack.c.l.b16 %v144
  %v505 = vunpack.c.l.b16 %v145
  %v506 = vunpack.c.h.b16 %v145
  %v507 = vunpack.c.l.b16 %v146
  %v508 = vunpack.c.l.b16 %v147
  %v509 = vunpack.c.h.b16 %v147
  %v510 = vunpack.c.l.b16 %v148
  %v511 = vunpack.c.l.b16 %v149
  %v512 = vunpack.c.h.b16 %v149
  %v513 = vunpack.c.l.b16 %v150
  %v514 = vpack.c.b16 %v325, %v322
  %v515 = vpack.c.b16 %v326, %v323
  %v516 = vpack.c.b16 %v327, %v324
  %v517 = vpack.c.b16 %v331, %v328
  %v518 = vpack.c.b16 %v332, %v329
  %v519 = vpack.c.b16 %v333, %v330
  %v520 = vpack.c.b16 %v337, %v334
  %v521 = vpack.c.b16 %v338, %v335
  %v522 = vpack.c.b16 %v339, %v336
  %v523 = vpack.c.b16 %v343, %v340
  %v524 = vpack.c.b16 %v344, %v341
  %v525 = vpack.c.b16 %v345, %v342
  %v526 = vpack.c.b16 %v349, %v346
  %v527 = vpack.c.b16 %v350, %v347
  %v528 = vpack.c.b16 %v351, %v348
  %v529 = vpack.c.b16 %v355, %v352
  %v530 = vpack.c.b16 %v356, %v353
  %v531 = vpack.c.b16 %v357, %v354
  %v532 = vpack.c.b16 %v361, %v358
  %v533 = vpack.c.b16 %v362, %v359
  %v534 = vpack.c.b16 %v363, %v360
  %v535 = vpack.c.b16 %v367, %v364
  %v536 = vpack.c.b16 %v368, %v365
  %v537 = vpack.c.b16 %v369, %v366
  %v538 = vpack.c.b16 %v373, %v370
  %v539 = vpack.c.b16 %v374, %v371
  %v540 = vpack.c.b16 %v375, %v372
  %v541 = vpack.c.b16 %v379, %v376
  %v542 = vpack.c.b16 %v380, %v377
  %v543 = vpack.c.b16 %v381, %v378
  %v544 = vpack.c.b16 %v385, %v382
  %v545 = vpack.c.b16 %v386, %v383
  %v546 = vpack.c.b16 %v387, %v384
  %v547 = vpack.c.b16 %v391, %v388
  %v548 = vpack.c.b16 %v392, %v389
  %v549 = vpack.c.b16 %v393, %v390
  %v550 = vpack.c.b16 %v397, %v394
  %v551 = vpack.c.b16 %v398, %v395
  %v552 = vpack.c.b16 %v399, %v396
  %v553 = vpack.c.b16 %v403, %v400
  %v554 = vpack.c.b16 %v404, %v401
  %v555 = vpack.c.b16 %v405, %v402
  %v556 = vpack.c.b16 %v409, %v406
  %v557 = vpack.c.b16 %v410, %v407
  %v558 = vpack.c.b16 %v411, %v408
  %v559 = vpack.c.b16 %v415, %v412
  %v560 = vpack.c.b16 %v416, %v413
  %v561 = vpack.c.b16 %v417, %v414
  %v562 = vpack.c.b16 %v421, %v418
  %v563 = vpack.c.b16 %v422, %v419
  %v564 = vpack.c.b16 %v423, %v420
  %v565 = vpack.c.b16 %v427, %v424
  %v566 = vpack.c.b16 %v428, %v425
  %v567 = vpack.c.b16 %v429, %v426
  %v568 = vpack.c.b16 %v433, %v430
  %v569 = vpack.c.b16 %v434, %v431
  %v570 = vpack.c.b16 %v435, %v432
  %v571 = vpack.c.b16 %v439, %v436
  %v572 = vpack.c.b16 %v440, %v437
  %v573 = vpack.c.b16 %v441, %v438
  %v574 = vpack.c.b16 %v445, %v442
  %v575 = vpack.c.b16 %v446, %v443
  %v576 = vpack.c.b16 %v447, %v444
  %v577 = vpack.c.b16 %v451, %v448
  %v578 = vpack.c.b16 %v452, %v449
  %v579 = vpack.c.b16 %v453, %v450
  %v580 = vpack.c.b16 %v457, %v454
  %v581 = vpack.c.b16 %v458, %v455
  %v582 = vpack.c.b16 %v459, %v456
  %v583 = vpack.c.b16 %v463, %v460
  %v584 = vpack.c.b16 %v464, %v461
  %v585 = vpack.c.b16 %v465, %v462
  %v586 = vpack.c.b16 %v469, %v466
  %v587 = vpack.c.b16 %v470, %v467
  %v588 = vpack.c.b16 %v471, %v468
  %v589 = vpack.c.b16 %v475, %v472
  %v590 = vpack.c.b16 %v476, %v473
  %v591 = vpack.c.b16 %v477, %v474
  %v592 = vpack.c.b16 %v481, %v478
  %v593 = vpack.c.b16 %v482, %v479
  %v594 = vpack.c.b16 %v483, %v480
  %v595 = vpack.c.b16 %v487, %v484
  %v596 = vpack.c.b16 %v488, %v485
  %v597 = vpack.c.b16 %v489, %v486
  %v598 = vpack.c.b16 %v493, %v490
  %v599 = vpack.c.b16 %v494, %v491
  %v600 = vpack.c.b16 %v495, %v492
  %v601 = vpack.c.b16 %v499, %v496
  %v602 = vpack.c.b16 %v500, %v497
  %v603 = vpack.c.b16 %v501, %v498
  %v604 = vpack.c.b16 %v505, %v502
  %v605 = vpack.c.b16 %v506, %v503
  %v606 = vpack.c.b16 %v507, %v504
  %v607 = vpack.c.b16 %v511, %v508
  %v608 = vpack.c.b16 %v512, %v509
  %v609 = vpack.c.b16 %v513, %v510
  %v710 = vunpack.c.l.b16 %v151
  %v711 = vunpack.c.l.b16 %v152
  %v712 = vunpack.c.l.b16 %v153
  %v713 = vunpack.c.l.b16 %v154
  %v714 = vunpack.c.l.b16 %v155
  %v715 = vunpack.c.l.b16 %v156
  %v716 = vunpack.c.l.b16 %v157
  %v717 = vunpack.c.l.b16 %v158
  %v718 = vunpack.c.l.b16 %v159
  %v719 = vunpack.c.l.b16 %v160
  %v720 = vunpack.c.l.b16 %v161
  %v721 = vunpack.c.l.b16 %v162
  %v722 = vunpack.c.l.b16 %v163
  %v723 = vunpack.c.l.b16 %v164
  %v724 = vunpack.c.l.b16 %v165
  %v725 = vunpack.c.l.b16 %v166
  %v726 = vunpack.c.l.b16 %v167
  %v727 = vunpack.c.l.b16 %v168
  %v728 = vunpack.c.l.b16 %v169
  %v729 = vunpack.c.l.b16 %v170
  %v730 = vunpack.c.l.b16 %v171
  %v731 = vunpack.c.l.b16 %v172
  %v732 = vunpack.c.l.b16 %v173
  %v733 = vunpack.c.l.b16 %v174
  %v734 = vunpack.c.l.b16 %v175
  %v735 = vunpack.c.l.b16 %v176
  %v736 = vunpack.c.l.b16 %v177
  %v737 = vunpack.c.l.b16 %v178
  %v738 = vunpack.c.l.b16 %v179
  %v739 = vunpack.c.l.b16 %v180
  %v740 = vunpack.c.l.b16 %v181
  %v741 = vunpack.c.l.b16 %v182
  %v742 = vunpack.c.l.b16 %v183
  %v743 = vunpack.c.l.b16 %v184
  %v744 = vunpack.c.l.b16 %v185
  %v745 = vunpack.c.l.b16 %v186
  %v746 = vpack.c.b16 %v711, %v710
  %v747 = vpack.c.b16 %v713, %v712
  %v748 = vpack.c.b16 %v715, %v714
  %v749 = vpack.c.b16 %v717, %v716
  %v750 = vpack.c.b16 %v719, %v718
  %v751 = vpack.c.b16 %v721, %v720
  %v752 = vpack.c.b16 %v723, %v722
  %v753 = vpack.c.b16 %v725, %v724
  %v754 = vpack.c.b16 %v727, %v726
  %v755 = vpack.c.b16 %v729, %v728
  %v756 = vpack.c.b16 %v731, %v730
  %v757 = vpack.c.b16 %v733, %v732
  %v758 = vpack.c.b16 %v735, %v734
  %v759 = vpack.c.b16 %v737, %v736
  %v760 = vpack.c.b16 %v739, %v738
  %v761 = vpack.c.b16 %v741, %v740
  %v762 = vpack.c.b16 %v743, %v742
  %v763 = vpack.c.b16 %v745, %v744
  %vm782 = vcmask 261120
  %v784 = vsel %vm782, %v516, 0
  %v787 = vsel %vm782, %v519, 0
  %v790 = vsel %vm782, %v522, 0
  %v793 = vsel %vm782, %v525, 0
  %v796 = vsel %vm782, %v528, 0
  %v799 = vsel %vm782, %v531, 0
  %v802 = vsel %vm782, %v534, 0
  %v805 = vsel %vm782, %v537, 0
  %v808 = vsel %vm782, %v540, 0
  %v811 = vsel %vm782, %v543, 0
  %v814 = vsel %vm782, %v546, 0
  %v817 = vsel %vm782, %v549, 0
  %v820 = vsel %vm782, %v552, 0
  %v823 = vsel %vm782, %v555, 0
  %v826 = vsel %vm782, %v558, 0
  %v829 = vsel %vm782, %v561, 0
  %v832 = vsel %vm782, %v564, 0
  %v835 = vsel %vm782, %v567, 0
  %v838 = vsel %vm782, %v570, 0
  %v841 = vsel %vm782, %v573, 0
  %v844 = vsel %vm782, %v576, 0
  %v847 = vsel %vm782, %v579, 0
  %v850 = vsel %vm782, %v582, 0
  %v853 = vsel %vm782, %v585, 0
  %v856 = vsel %vm782, %v588, 0
  %v859 = vsel %vm782, %v591, 0
  %v862 = vsel %vm782, %v594, 0
  %v865 = vsel %vm782, %v597, 0
  %v868 = vsel %vm782, %v600, 0
  %v871 = vsel %vm782, %v603, 0
  %v874 = vsel %vm782, %v606, 0
  %v877 = vsel %vm782, %v609, 0
  %879 = vmatprep.subr.bf16.mxu0 0
  %880 = vmatpush1.bf16.msra.mxu0 %v746
  %881 = vmatprep.subr.bf16.mxu0 0
  %882 = vmatpush1.bf16.msra.mxu0 %v747
  %883 = vmatprep.subr.bf16.mxu0 0
  %884 = vmatpush1.bf16.msra.mxu0 %v748
  %885 = vmatprep.subr.bf16.mxu0 0
  %886 = vmatpush1.bf16.msra.mxu0 %v749
  %887 = vmatprep.subr.bf16.mxu0 0
  %888 = vmatpush1.bf16.msra.mxu0 %v750
  %889 = vmatprep.subr.bf16.mxu0 0
  %890 = vmatpush1.bf16.msra.mxu0 %v751
  %891 = vmatprep.subr.bf16.mxu0 0
  %892 = vmatpush1.bf16.msra.mxu0 %v752
  %893 = vmatprep.subr.bf16.mxu0 0
  %894 = vmatpush1.bf16.msra.mxu0 %v753
  %895 = vmatprep.subr.bf16.mxu0 0
  %896 = vmatpush1.bf16.msra.mxu0 %v754
  %897 = vmatprep.subr.bf16.mxu0 0
  %898 = vmatpush1.bf16.msra.mxu0 %v755
  %899 = vmatprep.subr.bf16.mxu0 0
  %900 = vmatpush1.bf16.msra.mxu0 %v756
  %901 = vmatprep.subr.bf16.mxu0 0
  %902 = vmatpush1.bf16.msra.mxu0 %v757
  %903 = vmatprep.subr.bf16.mxu0 0
  %904 = vmatpush1.bf16.msra.mxu0 %v758
  %905 = vmatprep.subr.bf16.mxu0 0
  %906 = vmatpush1.bf16.msra.mxu0 %v759
  %907 = vmatprep.subr.bf16.mxu0 0
  %908 = vmatpush1.bf16.msra.mxu0 %v760
  %909 = vmatprep.subr.bf16.mxu0 0
  %910 = vmatpush1.bf16.msra.mxu0 %v761
  %911 = vmatprep.mubr.bf16.mxu0 %v515
  %912 = vmatmul.mubr.bf16.gmra.mrb[0].mxu0 %v514
  %v913 = vpop.f32.mrb[0].mxu0
  %v914 = vadd.f32 %v192, %v913
  %v915 = vpop.f32.mrb[0].mxu0
  %v916 = vpop.f32.mrb[0].mxu0
  %v917 = vadd.f32 %v192, %v916
  %v918 = vpop.f32.mrb[0].mxu0
  %919 = vmatprep.mubr.bf16.mxu0 %v518
  %920 = vmatmul.mubr.bf16.gmra.mrb[0].mxu0 %v517
  %v921 = vpop.f32.mrb[0].mxu0
  %v922 = vadd.f32 %v192, %v921
  %v923 = vpop.f32.mrb[0].mxu0
  %v924 = vpop.f32.mrb[0].mxu0
  %v925 = vadd.f32 %v192, %v924
  %v926 = vpop.f32.mrb[0].mxu0
  %927 = vmatprep.mubr.bf16.mxu0 %v521
  %928 = vmatmul.mubr.bf16.gmra.mrb[0].mxu0 %v520
  %v929 = vpop.f32.mrb[0].mxu0
  %v930 = vadd.f32 %v192, %v929
  %v931 = vpop.f32.mrb[0].mxu0
  %v932 = vpop.f32.mrb[0].mxu0
  %v933 = vadd.f32 %v192, %v932
  %v934 = vpop.f32.mrb[0].mxu0
  %935 = vmatprep.mubr.bf16.mxu0 %v524
  %936 = vmatmul.mubr.bf16.gmra.mrb[0].mxu0 %v523
  %v937 = vpop.f32.mrb[0].mxu0
  %v938 = vadd.f32 %v192, %v937
  %v939 = vpop.f32.mrb[0].mxu0
  %v940 = vpop.f32.mrb[0].mxu0
  %v941 = vadd.f32 %v192, %v940
  %v942 = vpop.f32.mrb[0].mxu0
  %943 = vmatprep.mubr.bf16.mxu0 %v527
  %944 = vmatmul.mubr.bf16.gmra.mrb[0].mxu0 %v526
  %v945 = vpop.f32.mrb[0].mxu0
  %v946 = vadd.f32 %v192, %v945
  %v947 = vpop.f32.mrb[0].mxu0
  %v948 = vpop.f32.mrb[0].mxu0
  %v949 = vadd.f32 %v192, %v948
  %v950 = vpop.f32.mrb[0].mxu0
  %951 = vmatprep.mubr.bf16.mxu0 %v530
  %952 = vmatmul.mubr.bf16.gmra.mrb[0].mxu0 %v529
  %v953 = vpop.f32.mrb[0].mxu0
  %v954 = vadd.f32 %v192, %v953
  %v955 = vpop.f32.mrb[0].mxu0
  %v956 = vpop.f32.mrb[0].mxu0
  %v957 = vadd.f32 %v192, %v956
  %v958 = vpop.f32.mrb[0].mxu0
  %959 = vmatprep.mubr.bf16.mxu0 %v533
  %960 = vmatmul.mubr.bf16.gmra.mrb[0].mxu0 %v532
  %v961 = vpop.f32.mrb[0].mxu0
  %v962 = vadd.f32 %v192, %v961
  %v963 = vpop.f32.mrb[0].mxu0
  %v964 = vpop.f32.mrb[0].mxu0
  %v965 = vadd.f32 %v192, %v964
  %v966 = vpop.f32.mrb[0].mxu0
  %967 = vmatprep.mubr.bf16.mxu0 %v536
  %968 = vmatmul.mubr.bf16.gmra.mrb[0].mxu0 %v535
  %v969 = vpop.f32.mrb[0].mxu0
  %v970 = vadd.f32 %v192, %v969
  %v971 = vpop.f32.mrb[0].mxu0
  %v972 = vpop.f32.mrb[0].mxu0
  %v973 = vadd.f32 %v192, %v972
  %v974 = vpop.f32.mrb[0].mxu0
  %975 = vmatprep.mubr.bf16.mxu0 %v539
  %976 = vmatmul.mubr.bf16.gmra.mrb[0].mxu0 %v538
  %v977 = vpop.f32.mrb[0].mxu0
  %v978 = vadd.f32 %v192, %v977
  %v979 = vpop.f32.mrb[0].mxu0
  %v980 = vpop.f32.mrb[0].mxu0
  %v981 = vadd.f32 %v192, %v980
  %v982 = vpop.f32.mrb[0].mxu0
  %983 = vmatprep.mubr.bf16.mxu0 %v542
  %984 = vmatmul.mubr.bf16.gmra.mrb[0].mxu0 %v541
  %v985 = vpop.f32.mrb[0].mxu0
  %v986 = vadd.f32 %v192, %v985
  %v987 = vpop.f32.mrb[0].mxu0
  %v988 = vpop.f32.mrb[0].mxu0
  %v989 = vadd.f32 %v192, %v988
  %v990 = vpop.f32.mrb[0].mxu0
  %991 = vmatprep.mubr.bf16.mxu0 %v545
  %992 = vmatmul.mubr.bf16.gmra.mrb[0].mxu0 %v544
  %v993 = vpop.f32.mrb[0].mxu0
  %v994 = vadd.f32 %v192, %v993
  %v995 = vpop.f32.mrb[0].mxu0
  %v996 = vpop.f32.mrb[0].mxu0
  %v997 = vadd.f32 %v192, %v996
  %v998 = vpop.f32.mrb[0].mxu0
  %999 = vmatprep.mubr.bf16.mxu0 %v548
  %1000 = vmatmul.mubr.bf16.gmra.mrb[0].mxu0 %v547
  %v1001 = vpop.f32.mrb[0].mxu0
  %v1002 = vadd.f32 %v192, %v1001
  %v1003 = vpop.f32.mrb[0].mxu0
  %v1004 = vpop.f32.mrb[0].mxu0
  %v1005 = vadd.f32 %v192, %v1004
  %v1006 = vpop.f32.mrb[0].mxu0
  %1007 = vmatprep.mubr.bf16.mxu0 %v551
  %1008 = vmatmul.mubr.bf16.gmra.mrb[0].mxu0 %v550
  %v1009 = vpop.f32.mrb[0].mxu0
  %v1010 = vadd.f32 %v192, %v1009
  %v1011 = vpop.f32.mrb[0].mxu0
  %v1012 = vpop.f32.mrb[0].mxu0
  %v1013 = vadd.f32 %v192, %v1012
  %v1014 = vpop.f32.mrb[0].mxu0
  %1015 = vmatprep.mubr.bf16.mxu0 %v554
  %1016 = vmatmul.mubr.bf16.gmra.mrb[0].mxu0 %v553
  %v1017 = vpop.f32.mrb[0].mxu0
  %v1018 = vadd.f32 %v192, %v1017
  %v1019 = vpop.f32.mrb[0].mxu0
  %v1020 = vpop.f32.mrb[0].mxu0
  %v1021 = vadd.f32 %v192, %v1020
  %v1022 = vpop.f32.mrb[0].mxu0
  %1023 = vmatprep.mubr.bf16.mxu0 %v557
  %1024 = vmatmul.mubr.bf16.gmra.mrb[0].mxu0 %v556
  %v1025 = vpop.f32.mrb[0].mxu0
  %v1026 = vadd.f32 %v192, %v1025
  %v1027 = vpop.f32.mrb[0].mxu0
  %v1028 = vpop.f32.mrb[0].mxu0
  %v1029 = vadd.f32 %v192, %v1028
  %v1030 = vpop.f32.mrb[0].mxu0
  %1031 = vmatprep.mubr.bf16.mxu0 %v560
  %1032 = vmatmul.mubr.bf16.gmra.mrb[0].mxu0 %v559
  %v1033 = vpop.f32.mrb[0].mxu0
  %v1034 = vadd.f32 %v192, %v1033
  %v1035 = vpop.f32.mrb[0].mxu0
  %v1036 = vpop.f32.mrb[0].mxu0
  %v1037 = vadd.f32 %v192, %v1036
  %v1038 = vpop.f32.mrb[0].mxu0
  %1039 = vmatprep.mubr.bf16.mxu0 %v563
  %1040 = vmatmul.mubr.bf16.gmra.mrb[0].mxu0 %v562
  %v1041 = vpop.f32.mrb[0].mxu0
  %v1042 = vadd.f32 %v192, %v1041
  %v1043 = vpop.f32.mrb[0].mxu0
  %v1044 = vpop.f32.mrb[0].mxu0
  %v1045 = vadd.f32 %v192, %v1044
  %v1046 = vpop.f32.mrb[0].mxu0
  %1047 = vmatprep.mubr.bf16.mxu0 %v566
  %1048 = vmatmul.mubr.bf16.gmra.mrb[0].mxu0 %v565
  %v1049 = vpop.f32.mrb[0].mxu0
  %v1050 = vadd.f32 %v192, %v1049
  %v1051 = vpop.f32.mrb[0].mxu0
  %v1052 = vpop.f32.mrb[0].mxu0
  %v1053 = vadd.f32 %v192, %v1052
  %v1054 = vpop.f32.mrb[0].mxu0
  %1055 = vmatprep.mubr.bf16.mxu0 %v569
  %1056 = vmatmul.mubr.bf16.gmra.mrb[0].mxu0 %v568
  %v1057 = vpop.f32.mrb[0].mxu0
  %v1058 = vadd.f32 %v192, %v1057
  %v1059 = vpop.f32.mrb[0].mxu0
  %v1060 = vpop.f32.mrb[0].mxu0
  %v1061 = vadd.f32 %v192, %v1060
  %v1062 = vpop.f32.mrb[0].mxu0
  %1063 = vmatprep.mubr.bf16.mxu0 %v572
  %1064 = vmatmul.mubr.bf16.gmra.mrb[0].mxu0 %v571
  %v1065 = vpop.f32.mrb[0].mxu0
  %v1066 = vadd.f32 %v192, %v1065
  %v1067 = vpop.f32.mrb[0].mxu0
  %v1068 = vpop.f32.mrb[0].mxu0
  %v1069 = vadd.f32 %v192, %v1068
  %v1070 = vpop.f32.mrb[0].mxu0
  %1071 = vmatprep.mubr.bf16.mxu0 %v575
  %1072 = vmatmul.mubr.bf16.gmra.mrb[0].mxu0 %v574
  %v1073 = vpop.f32.mrb[0].mxu0
  %v1074 = vadd.f32 %v192, %v1073
  %v1075 = vpop.f32.mrb[0].mxu0
  %v1076 = vpop.f32.mrb[0].mxu0
  %v1077 = vadd.f32 %v192, %v1076
  %v1078 = vpop.f32.mrb[0].mxu0
  %1079 = vmatprep.mubr.bf16.mxu0 %v578
  %1080 = vmatmul.mubr.bf16.gmra.mrb[0].mxu0 %v577
  %v1081 = vpop.f32.mrb[0].mxu0
  %v1082 = vadd.f32 %v192, %v1081
  %v1083 = vpop.f32.mrb[0].mxu0
  %v1084 = vpop.f32.mrb[0].mxu0
  %v1085 = vadd.f32 %v192, %v1084
  %v1086 = vpop.f32.mrb[0].mxu0
  %1087 = vmatprep.mubr.bf16.mxu0 %v581
  %1088 = vmatmul.mubr.bf16.gmra.mrb[0].mxu0 %v580
  %v1089 = vpop.f32.mrb[0].mxu0
  %v1090 = vadd.f32 %v192, %v1089
  %v1091 = vpop.f32.mrb[0].mxu0
  %v1092 = vpop.f32.mrb[0].mxu0
  %v1093 = vadd.f32 %v192, %v1092
  %v1094 = vpop.f32.mrb[0].mxu0
  %1095 = vmatprep.mubr.bf16.mxu0 %v584
  %1096 = vmatmul.mubr.bf16.gmra.mrb[0].mxu0 %v583
  %v1097 = vpop.f32.mrb[0].mxu0
  %v1098 = vadd.f32 %v192, %v1097
  %v1099 = vpop.f32.mrb[0].mxu0
  %v1100 = vpop.f32.mrb[0].mxu0
  %v1101 = vadd.f32 %v192, %v1100
  %v1102 = vpop.f32.mrb[0].mxu0
  %1103 = vmatprep.mubr.bf16.mxu0 %v587
  %1104 = vmatmul.mubr.bf16.gmra.mrb[0].mxu0 %v586
  %v1105 = vpop.f32.mrb[0].mxu0
  %v1106 = vadd.f32 %v192, %v1105
  %v1107 = vpop.f32.mrb[0].mxu0
  %v1108 = vpop.f32.mrb[0].mxu0
  %v1109 = vadd.f32 %v192, %v1108
  %v1110 = vpop.f32.mrb[0].mxu0
  %1111 = vmatprep.mubr.bf16.mxu0 %v590
  %1112 = vmatmul.mubr.bf16.gmra.mrb[0].mxu0 %v589
  %v1113 = vpop.f32.mrb[0].mxu0
  %v1114 = vadd.f32 %v192, %v1113
  %v1115 = vpop.f32.mrb[0].mxu0
  %v1116 = vpop.f32.mrb[0].mxu0
  %v1117 = vadd.f32 %v192, %v1116
  %v1118 = vpop.f32.mrb[0].mxu0
  %1119 = vmatprep.mubr.bf16.mxu0 %v593
  %1120 = vmatmul.mubr.bf16.gmra.mrb[0].mxu0 %v592
  %v1121 = vpop.f32.mrb[0].mxu0
  %v1122 = vadd.f32 %v192, %v1121
  %v1123 = vpop.f32.mrb[0].mxu0
  %v1124 = vpop.f32.mrb[0].mxu0
  %v1125 = vadd.f32 %v192, %v1124
  %v1126 = vpop.f32.mrb[0].mxu0
  %1127 = vmatprep.mubr.bf16.mxu0 %v596
  %1128 = vmatmul.mubr.bf16.gmra.mrb[0].mxu0 %v595
  %v1129 = vpop.f32.mrb[0].mxu0
  %v1130 = vadd.f32 %v192, %v1129
  %v1131 = vpop.f32.mrb[0].mxu0
  %v1132 = vpop.f32.mrb[0].mxu0
  %v1133 = vadd.f32 %v192, %v1132
  %v1134 = vpop.f32.mrb[0].mxu0
  %1135 = vmatprep.mubr.bf16.mxu0 %v599
  %1136 = vmatmul.mubr.bf16.gmra.mrb[0].mxu0 %v598
  %v1137 = vpop.f32.mrb[0].mxu0
  %v1138 = vadd.f32 %v192, %v1137
  %v1139 = vpop.f32.mrb[0].mxu0
  %v1140 = vpop.f32.mrb[0].mxu0
  %v1141 = vadd.f32 %v192, %v1140
  %v1142 = vpop.f32.mrb[0].mxu0
  %1143 = vmatprep.mubr.bf16.mxu0 %v602
  %1144 = vmatmul.mubr.bf16.gmra.mrb[0].mxu0 %v601
  %v1145 = vpop.f32.mrb[0].mxu0
  %v1146 = vadd.f32 %v192, %v1145
  %v1147 = vpop.f32.mrb[0].mxu0
  %v1148 = vpop.f32.mrb[0].mxu0
  %v1149 = vadd.f32 %v192, %v1148
  %v1150 = vpop.f32.mrb[0].mxu0
  %1151 = vmatprep.mubr.bf16.mxu0 %v605
  %1152 = vmatmul.mubr.bf16.gmra.mrb[0].mxu0 %v604
  %v1153 = vpop.f32.mrb[0].mxu0
  %v1154 = vadd.f32 %v192, %v1153
  %v1155 = vpop.f32.mrb[0].mxu0
  %v1156 = vpop.f32.mrb[0].mxu0
  %v1157 = vadd.f32 %v192, %v1156
  %v1158 = vpop.f32.mrb[0].mxu0
  %1159 = vmatprep.mubr.bf16.mxu0 %v608
  %1160 = vmatmul.mubr.bf16.gmra.mrb[0].mxu0 %v607
  %v1161 = vpop.f32.mrb[0].mxu0
  %v1162 = vadd.f32 %v192, %v1161
  %v1163 = vpop.f32.mrb[0].mxu0
  %v1164 = vpop.f32.mrb[0].mxu0
  %v1165 = vadd.f32 %v192, %v1164
  %v1166 = vpop.f32.mrb[0].mxu0
  %1167 = vdwg.mxu0
  %1168 = vmatprep.subr.bf16.mxu0 0
  %1169 = vmatpush1.bf16.msra.mxu0 %v762
  %1170 = vmatprep.subr.bf16.mxu0 0
  %1171 = vmatpush1.bf16.msra.mxu0 %v763
  %1172 = vmatprep.subr.bf16.mxu0 0
  %1173 = vmatpush1.bf16.msra.mxu0 0
  %1174 = vmatprep.subr.bf16.mxu0 0
  %1175 = vmatpush1.bf16.msra.mxu0 0
  %1176 = vmatprep.subr.bf16.mxu0 0
  %1177 = vmatpush1.bf16.msra.mxu0 0
  %1178 = vmatprep.subr.bf16.mxu0 0
  %1179 = vmatpush1.bf16.msra.mxu0 0
  %1180 = vmatprep.subr.bf16.mxu0 0
  %1181 = vmatpush1.bf16.msra.mxu0 0
  %1182 = vmatprep.subr.bf16.mxu0 0
  %1183 = vmatpush1.bf16.msra.mxu0 0
  %1184 = vmatprep.subr.bf16.mxu0 0
  %1185 = vmatpush1.bf16.msra.mxu0 0
  %1186 = vmatprep.subr.bf16.mxu0 0
  %1187 = vmatpush1.bf16.msra.mxu0 0
  %1188 = vmatprep.subr.bf16.mxu0 0
  %1189 = vmatpush1.bf16.msra.mxu0 0
  %1190 = vmatprep.subr.bf16.mxu0 0
  %1191 = vmatpush1.bf16.msra.mxu0 0
  %1192 = vmatprep.subr.bf16.mxu0 0
  %1193 = vmatpush1.bf16.msra.mxu0 0
  %1194 = vmatprep.subr.bf16.mxu0 0
  %1195 = vmatpush1.bf16.msra.mxu0 0
  %1196 = vmatprep.subr.bf16.mxu0 0
  %1197 = vmatpush1.bf16.msra.mxu0 0
  %1198 = vmatprep.subr.bf16.mxu0 0
  %1199 = vmatpush1.bf16.msra.mxu0 0
  %1200 = vmatprep.mubr.bf16.mxu0 0
  %1201 = vmatmul.mubr.bf16.gmra.mrb[0].mxu0 %v784
  %v1202 = vpop.f32.mrb[0].mxu0
  %v1203 = vadd.f32 %v914, %v1202
  %v1204 = vpop.f32.mrb[0].mxu0
  %v1205 = vpop.f32.mrb[0].mxu0
  %v1206 = vadd.f32 %v917, %v1205
  %v1207 = vpop.f32.mrb[0].mxu0
  %1208 = vmatprep.mubr.bf16.mxu0 0
  %1209 = vmatmul.mubr.bf16.gmra.mrb[0].mxu0 %v787
  %v1210 = vpop.f32.mrb[0].mxu0
  %v1211 = vadd.f32 %v922, %v1210
  %v1212 = vpop.f32.mrb[0].mxu0
  %v1213 = vpop.f32.mrb[0].mxu0
  %v1214 = vadd.f32 %v925, %v1213
  %v1215 = vpop.f32.mrb[0].mxu0
  %1216 = vmatprep.mubr.bf16.mxu0 0
  %1217 = vmatmul.mubr.bf16.gmra.mrb[0].mxu0 %v790
  %v1218 = vpop.f32.mrb[0].mxu0
  %v1219 = vadd.f32 %v930, %v1218
  %v1220 = vpop.f32.mrb[0].mxu0
  %v1221 = vpop.f32.mrb[0].mxu0
  %v1222 = vadd.f32 %v933, %v1221
  %v1223 = vpop.f32.mrb[0].mxu0
  %1224 = vmatprep.mubr.bf16.mxu0 0
  %1225 = vmatmul.mubr.bf16.gmra.mrb[0].mxu0 %v793
  %v1226 = vpop.f32.mrb[0].mxu0
  %v1227 = vadd.f32 %v938, %v1226
  %v1228 = vpop.f32.mrb[0].mxu0
  %v1229 = vpop.f32.mrb[0].mxu0
  %v1230 = vadd.f32 %v941, %v1229
  %v1231 = vpop.f32.mrb[0].mxu0
  %1232 = vmatprep.mubr.bf16.mxu0 0
  %1233 = vmatmul.mubr.bf16.gmra.mrb[0].mxu0 %v796
  %v1234 = vpop.f32.mrb[0].mxu0
  %v1235 = vadd.f32 %v946, %v1234
  %v1236 = vpop.f32.mrb[0].mxu0
  %v1237 = vpop.f32.mrb[0].mxu0
  %v1238 = vadd.f32 %v949, %v1237
  %v1239 = vpop.f32.mrb[0].mxu0
  %1240 = vmatprep.mubr.bf16.mxu0 0
  %1241 = vmatmul.mubr.bf16.gmra.mrb[0].mxu0 %v799
  %v1242 = vpop.f32.mrb[0].mxu0
  %v1243 = vadd.f32 %v954, %v1242
  %v1244 = vpop.f32.mrb[0].mxu0
  %v1245 = vpop.f32.mrb[0].mxu0
  %v1246 = vadd.f32 %v957, %v1245
  %v1247 = vpop.f32.mrb[0].mxu0
  %1248 = vmatprep.mubr.bf16.mxu0 0
  %1249 = vmatmul.mubr.bf16.gmra.mrb[0].mxu0 %v802
  %v1250 = vpop.f32.mrb[0].mxu0
  %v1251 = vadd.f32 %v962, %v1250
  %v1252 = vpop.f32.mrb[0].mxu0
  %v1253 = vpop.f32.mrb[0].mxu0
  %v1254 = vadd.f32 %v965, %v1253
  %v1255 = vpop.f32.mrb[0].mxu0
  %1256 = vmatprep.mubr.bf16.mxu0 0
  %1257 = vmatmul.mubr.bf16.gmra.mrb[0].mxu0 %v805
  %v1258 = vpop.f32.mrb[0].mxu0
  %v1259 = vadd.f32 %v970, %v1258
  %v1260 = vpop.f32.mrb[0].mxu0
  %v1261 = vpop.f32.mrb[0].mxu0
  %v1262 = vadd.f32 %v973, %v1261
  %v1263 = vpop.f32.mrb[0].mxu0
  %1264 = vmatprep.mubr.bf16.mxu0 0
  %1265 = vmatmul.mubr.bf16.gmra.mrb[0].mxu0 %v808
  %v1266 = vpop.f32.mrb[0].mxu0
  %v1267 = vadd.f32 %v978, %v1266
  %v1268 = vpop.f32.mrb[0].mxu0
  %v1269 = vpop.f32.mrb[0].mxu0
  %v1270 = vadd.f32 %v981, %v1269
  %v1271 = vpop.f32.mrb[0].mxu0
  %1272 = vmatprep.mubr.bf16.mxu0 0
  %1273 = vmatmul.mubr.bf16.gmra.mrb[0].mxu0 %v811
  %v1274 = vpop.f32.mrb[0].mxu0
  %v1275 = vadd.f32 %v986, %v1274
  %v1276 = vpop.f32.mrb[0].mxu0
  %v1277 = vpop.f32.mrb[0].mxu0
  %v1278 = vadd.f32 %v989, %v1277
  %v1279 = vpop.f32.mrb[0].mxu0
  %1280 = vmatprep.mubr.bf16.mxu0 0
  %1281 = vmatmul.mubr.bf16.gmra.mrb[0].mxu0 %v814
  %v1282 = vpop.f32.mrb[0].mxu0
  %v1283 = vadd.f32 %v994, %v1282
  %v1284 = vpop.f32.mrb[0].mxu0
  %v1285 = vpop.f32.mrb[0].mxu0
  %v1286 = vadd.f32 %v997, %v1285
  %v1287 = vpop.f32.mrb[0].mxu0
  %1288 = vmatprep.mubr.bf16.mxu0 0
  %1289 = vmatmul.mubr.bf16.gmra.mrb[0].mxu0 %v817
  %v1290 = vpop.f32.mrb[0].mxu0
  %v1291 = vadd.f32 %v1002, %v1290
  %v1292 = vpop.f32.mrb[0].mxu0
  %v1293 = vpop.f32.mrb[0].mxu0
  %v1294 = vadd.f32 %v1005, %v1293
  %v1295 = vpop.f32.mrb[0].mxu0
  %1296 = vmatprep.mubr.bf16.mxu0 0
  %1297 = vmatmul.mubr.bf16.gmra.mrb[0].mxu0 %v820
  %v1298 = vpop.f32.mrb[0].mxu0
  %v1299 = vadd.f32 %v1010, %v1298
  %v1300 = vpop.f32.mrb[0].mxu0
  %v1301 = vpop.f32.mrb[0].mxu0
  %v1302 = vadd.f32 %v1013, %v1301
  %v1303 = vpop.f32.mrb[0].mxu0
  %1304 = vmatprep.mubr.bf16.mxu0 0
  %1305 = vmatmul.mubr.bf16.gmra.mrb[0].mxu0 %v823
  %v1306 = vpop.f32.mrb[0].mxu0
  %v1307 = vadd.f32 %v1018, %v1306
  %v1308 = vpop.f32.mrb[0].mxu0
  %v1309 = vpop.f32.mrb[0].mxu0
  %v1310 = vadd.f32 %v1021, %v1309
  %v1311 = vpop.f32.mrb[0].mxu0
  %1312 = vmatprep.mubr.bf16.mxu0 0
  %1313 = vmatmul.mubr.bf16.gmra.mrb[0].mxu0 %v826
  %v1314 = vpop.f32.mrb[0].mxu0
  %v1315 = vadd.f32 %v1026, %v1314
  %v1316 = vpop.f32.mrb[0].mxu0
  %v1317 = vpop.f32.mrb[0].mxu0
  %v1318 = vadd.f32 %v1029, %v1317
  %v1319 = vpop.f32.mrb[0].mxu0
  %1320 = vmatprep.mubr.bf16.mxu0 0
  %1321 = vmatmul.mubr.bf16.gmra.mrb[0].mxu0 %v829
  %v1322 = vpop.f32.mrb[0].mxu0
  %v1323 = vadd.f32 %v1034, %v1322
  %v1324 = vpop.f32.mrb[0].mxu0
  %v1325 = vpop.f32.mrb[0].mxu0
  %v1326 = vadd.f32 %v1037, %v1325
  %v1327 = vpop.f32.mrb[0].mxu0
  %1328 = vmatprep.mubr.bf16.mxu0 0
  %1329 = vmatmul.mubr.bf16.gmra.mrb[0].mxu0 %v832
  %v1330 = vpop.f32.mrb[0].mxu0
  %v1331 = vadd.f32 %v1042, %v1330
  %v1332 = vpop.f32.mrb[0].mxu0
  %v1333 = vpop.f32.mrb[0].mxu0
  %v1334 = vadd.f32 %v1045, %v1333
  %v1335 = vpop.f32.mrb[0].mxu0
  %1336 = vmatprep.mubr.bf16.mxu0 0
  %1337 = vmatmul.mubr.bf16.gmra.mrb[0].mxu0 %v835
  %v1338 = vpop.f32.mrb[0].mxu0
  %v1339 = vadd.f32 %v1050, %v1338
  %v1340 = vpop.f32.mrb[0].mxu0
  %v1341 = vpop.f32.mrb[0].mxu0
  %v1342 = vadd.f32 %v1053, %v1341
  %v1343 = vpop.f32.mrb[0].mxu0
  %1344 = vmatprep.mubr.bf16.mxu0 0
  %1345 = vmatmul.mubr.bf16.gmra.mrb[0].mxu0 %v838
  %v1346 = vpop.f32.mrb[0].mxu0
  %v1347 = vadd.f32 %v1058, %v1346
  %v1348 = vpop.f32.mrb[0].mxu0
  %v1349 = vpop.f32.mrb[0].mxu0
  %v1350 = vadd.f32 %v1061, %v1349
  %v1351 = vpop.f32.mrb[0].mxu0
  %1352 = vmatprep.mubr.bf16.mxu0 0
  %1353 = vmatmul.mubr.bf16.gmra.mrb[0].mxu0 %v841
  %v1354 = vpop.f32.mrb[0].mxu0
  %v1355 = vadd.f32 %v1066, %v1354
  %v1356 = vpop.f32.mrb[0].mxu0
  %v1357 = vpop.f32.mrb[0].mxu0
  %v1358 = vadd.f32 %v1069, %v1357
  %v1359 = vpop.f32.mrb[0].mxu0
  %1360 = vmatprep.mubr.bf16.mxu0 0
  %1361 = vmatmul.mubr.bf16.gmra.mrb[0].mxu0 %v844
  %v1362 = vpop.f32.mrb[0].mxu0
  %v1363 = vadd.f32 %v1074, %v1362
  %v1364 = vpop.f32.mrb[0].mxu0
  %v1365 = vpop.f32.mrb[0].mxu0
  %v1366 = vadd.f32 %v1077, %v1365
  %v1367 = vpop.f32.mrb[0].mxu0
  %1368 = vmatprep.mubr.bf16.mxu0 0
  %1369 = vmatmul.mubr.bf16.gmra.mrb[0].mxu0 %v847
  %v1370 = vpop.f32.mrb[0].mxu0
  %v1371 = vadd.f32 %v1082, %v1370
  %v1372 = vpop.f32.mrb[0].mxu0
  %v1373 = vpop.f32.mrb[0].mxu0
  %v1374 = vadd.f32 %v1085, %v1373
  %v1375 = vpop.f32.mrb[0].mxu0
  %1376 = vmatprep.mubr.bf16.mxu0 0
  %1377 = vmatmul.mubr.bf16.gmra.mrb[0].mxu0 %v850
  %v1378 = vpop.f32.mrb[0].mxu0
  %v1379 = vadd.f32 %v1090, %v1378
  %v1380 = vpop.f32.mrb[0].mxu0
  %v1381 = vpop.f32.mrb[0].mxu0
  %v1382 = vadd.f32 %v1093, %v1381
  %v1383 = vpop.f32.mrb[0].mxu0
  %1384 = vmatprep.mubr.bf16.mxu0 0
  %1385 = vmatmul.mubr.bf16.gmra.mrb[0].mxu0 %v853
  %v1386 = vpop.f32.mrb[0].mxu0
  %v1387 = vadd.f32 %v1098, %v1386
  %v1388 = vpop.f32.mrb[0].mxu0
  %v1389 = vpop.f32.mrb[0].mxu0
  %v1390 = vadd.f32 %v1101, %v1389
  %v1391 = vpop.f32.mrb[0].mxu0
  %1392 = vmatprep.mubr.bf16.mxu0 0
  %1393 = vmatmul.mubr.bf16.gmra.mrb[0].mxu0 %v856
  %v1394 = vpop.f32.mrb[0].mxu0
  %v1395 = vadd.f32 %v1106, %v1394
  %v1396 = vpop.f32.mrb[0].mxu0
  %v1397 = vpop.f32.mrb[0].mxu0
  %v1398 = vadd.f32 %v1109, %v1397
  %v1399 = vpop.f32.mrb[0].mxu0
  %1400 = vmatprep.mubr.bf16.mxu0 0
  %1401 = vmatmul.mubr.bf16.gmra.mrb[0].mxu0 %v859
  %v1402 = vpop.f32.mrb[0].mxu0
  %v1403 = vadd.f32 %v1114, %v1402
  %v1404 = vpop.f32.mrb[0].mxu0
  %v1405 = vpop.f32.mrb[0].mxu0
  %v1406 = vadd.f32 %v1117, %v1405
  %v1407 = vpop.f32.mrb[0].mxu0
  %1408 = vmatprep.mubr.bf16.mxu0 0
  %1409 = vmatmul.mubr.bf16.gmra.mrb[0].mxu0 %v862
  %v1410 = vpop.f32.mrb[0].mxu0
  %v1411 = vadd.f32 %v1122, %v1410
  %v1412 = vpop.f32.mrb[0].mxu0
  %v1413 = vpop.f32.mrb[0].mxu0
  %v1414 = vadd.f32 %v1125, %v1413
  %v1415 = vpop.f32.mrb[0].mxu0
  %1416 = vmatprep.mubr.bf16.mxu0 0
  %1417 = vmatmul.mubr.bf16.gmra.mrb[0].mxu0 %v865
  %v1418 = vpop.f32.mrb[0].mxu0
  %v1419 = vadd.f32 %v1130, %v1418
  %v1420 = vpop.f32.mrb[0].mxu0
  %v1421 = vpop.f32.mrb[0].mxu0
  %v1422 = vadd.f32 %v1133, %v1421
  %v1423 = vpop.f32.mrb[0].mxu0
  %1424 = vmatprep.mubr.bf16.mxu0 0
  %1425 = vmatmul.mubr.bf16.gmra.mrb[0].mxu0 %v868
  %v1426 = vpop.f32.mrb[0].mxu0
  %v1427 = vadd.f32 %v1138, %v1426
  %v1428 = vpop.f32.mrb[0].mxu0
  %v1429 = vpop.f32.mrb[0].mxu0
  %v1430 = vadd.f32 %v1141, %v1429
  %v1431 = vpop.f32.mrb[0].mxu0
  %1432 = vmatprep.mubr.bf16.mxu0 0
  %1433 = vmatmul.mubr.bf16.gmra.mrb[0].mxu0 %v871
  %v1434 = vpop.f32.mrb[0].mxu0
  %v1435 = vadd.f32 %v1146, %v1434
  %v1436 = vpop.f32.mrb[0].mxu0
  %v1437 = vpop.f32.mrb[0].mxu0
  %v1438 = vadd.f32 %v1149, %v1437
  %v1439 = vpop.f32.mrb[0].mxu0
  %1440 = vmatprep.mubr.bf16.mxu0 0
  %1441 = vmatmul.mubr.bf16.gmra.mrb[0].mxu0 %v874
  %v1442 = vpop.f32.mrb[0].mxu0
  %v1443 = vadd.f32 %v1154, %v1442
  %v1444 = vpop.f32.mrb[0].mxu0
  %v1445 = vpop.f32.mrb[0].mxu0
  %v1446 = vadd.f32 %v1157, %v1445
  %v1447 = vpop.f32.mrb[0].mxu0
  %1448 = vmatprep.mubr.bf16.mxu0 0
  %1449 = vmatmul.mubr.bf16.gmra.mrb[0].mxu0 %v877
  %v1450 = vpop.f32.mrb[0].mxu0
  %v1451 = vadd.f32 %v1162, %v1450
  %v1452 = vpop.f32.mrb[0].mxu0
  %v1453 = vpop.f32.mrb[0].mxu0
  %v1454 = vadd.f32 %v1165, %v1453
  %v1455 = vpop.f32.mrb[0].mxu0
  %1456 = vdwg.mxu0
  %v1457 = vld [vmem:[%s4] sm:$0x1]
  %v1458 = vtanh.pop %v1203
  %v1459 = vtanh.pop %v1206
  %v1460 = vtanh.pop %v1211
  %v1461 = vtanh.pop %v1214
  %v1462 = vtanh.pop %v1219
  %v1463 = vtanh.pop %v1222
  %v1464 = vtanh.pop %v1227
  %v1465 = vtanh.pop %v1230
  %v1466 = vtanh.pop %v1235
  %v1467 = vtanh.pop %v1238
  %v1468 = vtanh.pop %v1243
  %v1469 = vtanh.pop %v1246
  %v1470 = vtanh.pop %v1251
  %v1471 = vtanh.pop %v1254
  %v1472 = vtanh.pop %v1259
  %v1473 = vtanh.pop %v1262
  %v1474 = vtanh.pop %v1267
  %v1475 = vtanh.pop %v1270
  %v1476 = vtanh.pop %v1275
  %v1477 = vtanh.pop %v1278
  %v1478 = vtanh.pop %v1283
  %v1479 = vtanh.pop %v1286
  %v1480 = vtanh.pop %v1291
  %v1481 = vtanh.pop %v1294
  %v1482 = vtanh.pop %v1299
  %v1483 = vtanh.pop %v1302
  %v1484 = vtanh.pop %v1307
  %v1485 = vtanh.pop %v1310
  %v1486 = vtanh.pop %v1315
  %v1487 = vtanh.pop %v1318
  %v1488 = vtanh.pop %v1323
  %v1489 = vtanh.pop %v1326
  %v1490 = vtanh.pop %v1331
  %v1491 = vtanh.pop %v1334
  %v1492 = vtanh.pop %v1339
  %v1493 = vtanh.pop %v1342
  %v1494 = vtanh.pop %v1347
  %v1495 = vtanh.pop %v1350
  %v1496 = vtanh.pop %v1355
  %v1497 = vtanh.pop %v1358
  %v1498 = vtanh.pop %v1363
  %v1499 = vtanh.pop %v1366
  %v1500 = vtanh.pop %v1371
  %v1501 = vtanh.pop %v1374
  %v1502 = vtanh.pop %v1379
  %v1503 = vtanh.pop %v1382
  %v1504 = vtanh.pop %v1387
  %v1505 = vtanh.pop %v1390
  %v1506 = vtanh.pop %v1395
  %v1507 = vtanh.pop %v1398
  %v1508 = vtanh.pop %v1403
  %v1509 = vtanh.pop %v1406
  %v1510 = vtanh.pop %v1411
  %v1511 = vtanh.pop %v1414
  %v1512 = vtanh.pop %v1419
  %v1513 = vtanh.pop %v1422
  %v1514 = vtanh.pop %v1427
  %v1515 = vtanh.pop %v1430
  %v1516 = vtanh.pop %v1435
  %v1517 = vtanh.pop %v1438
  %v1518 = vtanh.pop %v1443
  %v1519 = vtanh.pop %v1446
  %v1520 = vtanh.pop %v1451
  %v1521 = vtanh.pop %v1454
  %v1523 = vlaneseq
  %v1524 = vshrl.u32 %v1523, 7
  %v1525 = vsub.s32 0, %v1524
  %v1526 = vrot.slane %v1457, %v1525
  %v1528 = vmul.f32 %v1526, %v1458
  %v1529 = vmul.f32 %v1526, %v1459
  %v1530 = vmul.f32 %v1526, %v1460
  %v1531 = vmul.f32 %v1526, %v1461
  %v1532 = vmul.f32 %v1526, %v1462
  %v1533 = vmul.f32 %v1526, %v1463
  %v1534 = vmul.f32 %v1526, %v1464
  %v1535 = vmul.f32 %v1526, %v1465
  %v1536 = vmul.f32 %v1526, %v1466
  %v1537 = vmul.f32 %v1526, %v1467
  %v1538 = vmul.f32 %v1526, %v1468
  %v1539 = vmul.f32 %v1526, %v1469
  %v1540 = vmul.f32 %v1526, %v1470
  %v1541 = vmul.f32 %v1526, %v1471
  %v1542 = vmul.f32 %v1526, %v1472
  %v1543 = vmul.f32 %v1526, %v1473
  %v1544 = vmul.f32 %v1526, %v1474
  %v1545 = vmul.f32 %v1526, %v1475
  %v1546 = vmul.f32 %v1526, %v1476
  %v1547 = vmul.f32 %v1526, %v1477
  %v1548 = vmul.f32 %v1526, %v1478
  %v1549 = vmul.f32 %v1526, %v1479
  %v1550 = vmul.f32 %v1526, %v1480
  %v1551 = vmul.f32 %v1526, %v1481
  %v1552 = vmul.f32 %v1526, %v1482
  %v1553 = vmul.f32 %v1526, %v1483
  %v1554 = vmul.f32 %v1526, %v1484
  %v1555 = vmul.f32 %v1526, %v1485
  %v1556 = vmul.f32 %v1526, %v1486
  %v1557 = vmul.f32 %v1526, %v1487
  %v1558 = vmul.f32 %v1526, %v1488
  %v1559 = vmul.f32 %v1526, %v1489
  %v1560 = vmul.f32 %v1526, %v1490
  %v1561 = vmul.f32 %v1526, %v1491
  %v1562 = vmul.f32 %v1526, %v1492
  %v1563 = vmul.f32 %v1526, %v1493
  %v1564 = vmul.f32 %v1526, %v1494
  %v1565 = vmul.f32 %v1526, %v1495
  %v1566 = vmul.f32 %v1526, %v1496
  %v1567 = vmul.f32 %v1526, %v1497
  %v1568 = vmul.f32 %v1526, %v1498
  %v1569 = vmul.f32 %v1526, %v1499
  %v1570 = vmul.f32 %v1526, %v1500
  %v1571 = vmul.f32 %v1526, %v1501
  %v1572 = vmul.f32 %v1526, %v1502
  %v1573 = vmul.f32 %v1526, %v1503
  %v1574 = vmul.f32 %v1526, %v1504
  %v1575 = vmul.f32 %v1526, %v1505
  %v1576 = vmul.f32 %v1526, %v1506
  %v1577 = vmul.f32 %v1526, %v1507
  %v1578 = vmul.f32 %v1526, %v1508
  %v1579 = vmul.f32 %v1526, %v1509
  %v1580 = vmul.f32 %v1526, %v1510
  %v1581 = vmul.f32 %v1526, %v1511
  %v1582 = vmul.f32 %v1526, %v1512
  %v1583 = vmul.f32 %v1526, %v1513
  %v1584 = vmul.f32 %v1526, %v1514
  %v1585 = vmul.f32 %v1526, %v1515
  %v1586 = vmul.f32 %v1526, %v1516
  %v1587 = vmul.f32 %v1526, %v1517
  %v1588 = vmul.f32 %v1526, %v1518
  %v1589 = vmul.f32 %v1526, %v1519
  %v1590 = vmul.f32 %v1526, %v1520
  %v1591 = vmul.f32 %v1526, %v1521
  %v1592 = vld [vmem:[%s1] sm:$0xff]
  %v1593 = vld [vmem:[%s1 + $0x8] sm:$0xff]
  %v1594 = vld [vmem:[%s1 + $0x10] sm:$0xff]
  %v1595 = vld [vmem:[%s1 + $0x18] sm:$0xff]
  %v1596 = vld [vmem:[%s1 + $0x20] sm:$0xff]
  %v1597 = vld [vmem:[%s1 + $0x28] sm:$0xff]
  %v1598 = vld [vmem:[%s1 + $0x30] sm:$0xff]
  %v1599 = vld [vmem:[%s1 + $0x38] sm:$0xff]
  %v1600 = vld [vmem:[%s1 + $0x40] sm:$0xff]
  %v1601 = vld [vmem:[%s1 + $0x48] sm:$0xff]
  %v1602 = vld [vmem:[%s1 + $0x50] sm:$0xff]
  %v1603 = vld [vmem:[%s1 + $0x58] sm:$0xff]
  %v1604 = vld [vmem:[%s1 + $0x60] sm:$0xff]
  %v1605 = vld [vmem:[%s1 + $0x68] sm:$0xff]
  %v1606 = vld [vmem:[%s1 + $0x70] sm:$0xff]
  %v1607 = vld [vmem:[%s1 + $0x78] sm:$0xff]
  %v1608 = vld [vmem:[%s1 + $0x80] sm:$0xff]
  %v1609 = vld [vmem:[%s1 + $0x88] sm:$0xff]
  %v1610 = vld [vmem:[%s1 + $0x90] sm:$0xff]
  %v1611 = vld [vmem:[%s1 + $0x98] sm:$0xff]
  %v1612 = vld [vmem:[%s1 + $0xa0] sm:$0xff]
  %v1613 = vld [vmem:[%s1 + $0xa8] sm:$0xff]
  %v1614 = vld [vmem:[%s1 + $0xb0] sm:$0xff]
  %v1615 = vld [vmem:[%s1 + $0xb8] sm:$0xff]
  %v1616 = vld [vmem:[%s1 + $0xc0] sm:$0xff]
  %v1617 = vld [vmem:[%s1 + $0xc8] sm:$0xff]
  %v1618 = vld [vmem:[%s1 + $0xd0] sm:$0xff]
  %v1619 = vld [vmem:[%s1 + $0xd8] sm:$0xff]
  %v1620 = vld [vmem:[%s1 + $0xe0] sm:$0xff]
  %v1621 = vld [vmem:[%s1 + $0xe8] sm:$0xff]
  %v1622 = vld [vmem:[%s1 + $0xf0] sm:$0xff]
  %v1623 = vld [vmem:[%s1 + $0xf8] sm:$0xff]
  %v1624 = vld [vmem:[%s1 + $0x100] sm:$0xff]
  %v1625 = vld [vmem:[%s1 + $0x108] sm:$0xff]
  %v1626 = vld [vmem:[%s1 + $0x110] sm:$0xff]
  %v1627 = vld [vmem:[%s1 + $0x118] sm:$0xff]
  %v1628 = vld [vmem:[%s1 + $0x120] sm:$0xff]
  %v1629 = vld [vmem:[%s1 + $0x128] sm:$0xff]
  %v1630 = vld [vmem:[%s1 + $0x130] sm:$0xff]
  %v1631 = vld [vmem:[%s1 + $0x138] sm:$0xff]
  %v1632 = vld [vmem:[%s1 + $0x140] sm:$0xff]
  %v1633 = vld [vmem:[%s1 + $0x148] sm:$0xff]
  %v1634 = vld [vmem:[%s1 + $0x150] sm:$0xff]
  %v1635 = vld [vmem:[%s1 + $0x158] sm:$0xff]
  %v1636 = vld [vmem:[%s1 + $0x160] sm:$0xff]
  %v1637 = vld [vmem:[%s1 + $0x168] sm:$0xff]
  %v1638 = vld [vmem:[%s1 + $0x170] sm:$0xff]
  %v1639 = vld [vmem:[%s1 + $0x178] sm:$0xff]
  %v1640 = vld [vmem:[%s1 + $0x180] sm:$0xff]
  %v1641 = vld [vmem:[%s1 + $0x188] sm:$0xff]
  %v1642 = vld [vmem:[%s1 + $0x190] sm:$0xff]
  %v1643 = vld [vmem:[%s1 + $0x198] sm:$0xff]
  %v1644 = vld [vmem:[%s1 + $0x1a0] sm:$0xff]
  %v1645 = vld [vmem:[%s1 + $0x1a8] sm:$0xff]
  %v1646 = vld [vmem:[%s1 + $0x1b0] sm:$0xff]
  %v1647 = vld [vmem:[%s1 + $0x1b8] sm:$0xff]
  %v1648 = vld [vmem:[%s1 + $0x1c0] sm:$0xff]
  %v1649 = vld [vmem:[%s1 + $0x1c8] sm:$0xff]
  %v1650 = vld [vmem:[%s1 + $0x1d0] sm:$0xff]
  %v1651 = vld [vmem:[%s1 + $0x1d8] sm:$0xff]
  %v1652 = vld [vmem:[%s1 + $0x1e0] sm:$0xff]
  %v1653 = vld [vmem:[%s1 + $0x1e8] sm:$0xff]
  %v1654 = vld [vmem:[%s1 + $0x1f0] sm:$0xff]
  %v1655 = vld [vmem:[%s1 + $0x1f8] sm:$0xff]
  %1720 = vrot.lane.b32.xlu0 %v1203, 126
  %v1721 = vpop.permute.xlu0 %1720
  %1722 = vrot.lane.b32.xlu0 %v1206, 126
  %v1723 = vpop.permute.xlu0 %1722
  %1724 = vrot.lane.b32.xlu0 %v1211, 126
  %v1725 = vpop.permute.xlu0 %1724
  %1726 = vrot.lane.b32.xlu0 %v1214, 126
  %v1727 = vpop.permute.xlu0 %1726
  %1728 = vrot.lane.b32.xlu0 %v1219, 126
  %v1729 = vpop.permute.xlu0 %1728
  %1730 = vrot.lane.b32.xlu0 %v1222, 126
  %v1731 = vpop.permute.xlu0 %1730
  %1732 = vrot.lane.b32.xlu0 %v1227, 126
  %v1733 = vpop.permute.xlu0 %1732
  %1734 = vrot.lane.b32.xlu0 %v1230, 126
  %v1735 = vpop.permute.xlu0 %1734
  %1736 = vrot.lane.b32.xlu0 %v1235, 126
  %v1737 = vpop.permute.xlu0 %1736
  %1738 = vrot.lane.b32.xlu0 %v1238, 126
  %v1739 = vpop.permute.xlu0 %1738
  %1740 = vrot.lane.b32.xlu0 %v1243, 126
  %v1741 = vpop.permute.xlu0 %1740
  %1742 = vrot.lane.b32.xlu0 %v1246, 126
  %v1743 = vpop.permute.xlu0 %1742
  %1744 = vrot.lane.b32.xlu0 %v1251, 126
  %v1745 = vpop.permute.xlu0 %1744
  %1746 = vrot.lane.b32.xlu0 %v1254, 126
  %v1747 = vpop.permute.xlu0 %1746
  %1748 = vrot.lane.b32.xlu0 %v1259, 126
  %v1749 = vpop.permute.xlu0 %1748
  %1750 = vrot.lane.b32.xlu0 %v1262, 126
  %v1751 = vpop.permute.xlu0 %1750
  %1752 = vrot.lane.b32.xlu0 %v1267, 126
  %v1753 = vpop.permute.xlu0 %1752
  %1754 = vrot.lane.b32.xlu0 %v1270, 126
  %v1755 = vpop.permute.xlu0 %1754
  %1756 = vrot.lane.b32.xlu0 %v1275, 126
  %v1757 = vpop.permute.xlu0 %1756
  %1758 = vrot.lane.b32.xlu0 %v1278, 126
  %v1759 = vpop.permute.xlu0 %1758
  %1760 = vrot.lane.b32.xlu0 %v1283, 126
  %v1761 = vpop.permute.xlu0 %1760
  %1762 = vrot.lane.b32.xlu0 %v1286, 126
  %v1763 = vpop.permute.xlu0 %1762
  %1764 = vrot.lane.b32.xlu0 %v1291, 126
  %v1765 = vpop.permute.xlu0 %1764
  %1766 = vrot.lane.b32.xlu0 %v1294, 126
  %v1767 = vpop.permute.xlu0 %1766
  %1768 = vrot.lane.b32.xlu0 %v1299, 126
  %v1769 = vpop.permute.xlu0 %1768
  %1770 = vrot.lane.b32.xlu0 %v1302, 126
  %v1771 = vpop.permute.xlu0 %1770
  %1772 = vrot.lane.b32.xlu0 %v1307, 126
  %v1773 = vpop.permute.xlu0 %1772
  %1774 = vrot.lane.b32.xlu0 %v1310, 126
  %v1775 = vpop.permute.xlu0 %1774
  %1776 = vrot.lane.b32.xlu0 %v1315, 126
  %v1777 = vpop.permute.xlu0 %1776
  %1778 = vrot.lane.b32.xlu0 %v1318, 126
  %v1779 = vpop.permute.xlu0 %1778
  %1780 = vrot.lane.b32.xlu0 %v1323, 126
  %v1781 = vpop.permute.xlu0 %1780
  %1782 = vrot.lane.b32.xlu0 %v1326, 126
  %v1783 = vpop.permute.xlu0 %1782
  %1784 = vrot.lane.b32.xlu0 %v1331, 126
  %v1785 = vpop.permute.xlu0 %1784
  %1786 = vrot.lane.b32.xlu0 %v1334, 126
  %v1787 = vpop.permute.xlu0 %1786
  %1788 = vrot.lane.b32.xlu0 %v1339, 126
  %v1789 = vpop.permute.xlu0 %1788
  %1790 = vrot.lane.b32.xlu0 %v1342, 126
  %v1791 = vpop.permute.xlu0 %1790
  %1792 = vrot.lane.b32.xlu0 %v1347, 126
  %v1793 = vpop.permute.xlu0 %1792
  %1794 = vrot.lane.b32.xlu0 %v1350, 126
  %v1795 = vpop.permute.xlu0 %1794
  %1796 = vrot.lane.b32.xlu0 %v1355, 126
  %v1797 = vpop.permute.xlu0 %1796
  %1798 = vrot.lane.b32.xlu0 %v1358, 126
  %v1799 = vpop.permute.xlu0 %1798
  %1800 = vrot.lane.b32.xlu0 %v1363, 126
  %v1801 = vpop.permute.xlu0 %1800
  %1802 = vrot.lane.b32.xlu0 %v1366, 126
  %v1803 = vpop.permute.xlu0 %1802
  %1804 = vrot.lane.b32.xlu0 %v1371, 126
  %v1805 = vpop.permute.xlu0 %1804
  %1806 = vrot.lane.b32.xlu0 %v1374, 126
  %v1807 = vpop.permute.xlu0 %1806
  %1808 = vrot.lane.b32.xlu0 %v1379, 126
  %v1809 = vpop.permute.xlu0 %1808
  %1810 = vrot.lane.b32.xlu0 %v1382, 126
  %v1811 = vpop.permute.xlu0 %1810
  %1812 = vrot.lane.b32.xlu0 %v1387, 126
  %v1813 = vpop.permute.xlu0 %1812
  %1814 = vrot.lane.b32.xlu0 %v1390, 126
  %v1815 = vpop.permute.xlu0 %1814
  %1816 = vrot.lane.b32.xlu0 %v1395, 126
  %v1817 = vpop.permute.xlu0 %1816
  %1818 = vrot.lane.b32.xlu0 %v1398, 126
  %v1819 = vpop.permute.xlu0 %1818
  %1820 = vrot.lane.b32.xlu0 %v1403, 126
  %v1821 = vpop.permute.xlu0 %1820
  %1822 = vrot.lane.b32.xlu0 %v1406, 126
  %v1823 = vpop.permute.xlu0 %1822
  %1824 = vrot.lane.b32.xlu0 %v1411, 126
  %v1825 = vpop.permute.xlu0 %1824
  %1826 = vrot.lane.b32.xlu0 %v1414, 126
  %v1827 = vpop.permute.xlu0 %1826
  %1828 = vrot.lane.b32.xlu0 %v1419, 126
  %v1829 = vpop.permute.xlu0 %1828
  %1830 = vrot.lane.b32.xlu0 %v1422, 126
  %v1831 = vpop.permute.xlu0 %1830
  %1832 = vrot.lane.b32.xlu0 %v1427, 126
  %v1833 = vpop.permute.xlu0 %1832
  %1834 = vrot.lane.b32.xlu0 %v1430, 126
  %v1835 = vpop.permute.xlu0 %1834
  %1836 = vrot.lane.b32.xlu0 %v1435, 126
  %v1837 = vpop.permute.xlu0 %1836
  %1838 = vrot.lane.b32.xlu0 %v1438, 126
  %v1839 = vpop.permute.xlu0 %1838
  %1840 = vrot.lane.b32.xlu0 %v1443, 126
  %v1841 = vpop.permute.xlu0 %1840
  %1842 = vrot.lane.b32.xlu0 %v1446, 126
  %v1843 = vpop.permute.xlu0 %1842
  %1844 = vrot.lane.b32.xlu0 %v1451, 126
  %v1845 = vpop.permute.xlu0 %1844
  %1846 = vrot.lane.b32.xlu0 %v1454, 126
  %v1847 = vpop.permute.xlu0 %1846
  %v1912 = vadd.f32 %v1592, %v1721
  %v1913 = vadd.f32 %v1593, %v1723
  %v1914 = vadd.f32 %v1594, %v1725
  %v1915 = vadd.f32 %v1595, %v1727
  %v1916 = vadd.f32 %v1596, %v1729
  %v1917 = vadd.f32 %v1597, %v1731
  %v1918 = vadd.f32 %v1598, %v1733
  %v1919 = vadd.f32 %v1599, %v1735
  %v1920 = vadd.f32 %v1600, %v1737
  %v1921 = vadd.f32 %v1601, %v1739
  %v1922 = vadd.f32 %v1602, %v1741
  %v1923 = vadd.f32 %v1603, %v1743
  %v1924 = vadd.f32 %v1604, %v1745
  %v1925 = vadd.f32 %v1605, %v1747
  %v1926 = vadd.f32 %v1606, %v1749
  %v1927 = vadd.f32 %v1607, %v1751
  %v1928 = vadd.f32 %v1608, %v1753
  %v1929 = vadd.f32 %v1609, %v1755
  %v1930 = vadd.f32 %v1610, %v1757
  %v1931 = vadd.f32 %v1611, %v1759
  %v1932 = vadd.f32 %v1612, %v1761
  %v1933 = vadd.f32 %v1613, %v1763
  %v1934 = vadd.f32 %v1614, %v1765
  %v1935 = vadd.f32 %v1615, %v1767
  %v1936 = vadd.f32 %v1616, %v1769
  %v1937 = vadd.f32 %v1617, %v1771
  %v1938 = vadd.f32 %v1618, %v1773
  %v1939 = vadd.f32 %v1619, %v1775
  %v1940 = vadd.f32 %v1620, %v1777
  %v1941 = vadd.f32 %v1621, %v1779
  %v1942 = vadd.f32 %v1622, %v1781
  %v1943 = vadd.f32 %v1623, %v1783
  %v1944 = vadd.f32 %v1624, %v1785
  %v1945 = vadd.f32 %v1625, %v1787
  %v1946 = vadd.f32 %v1626, %v1789
  %v1947 = vadd.f32 %v1627, %v1791
  %v1948 = vadd.f32 %v1628, %v1793
  %v1949 = vadd.f32 %v1629, %v1795
  %v1950 = vadd.f32 %v1630, %v1797
  %v1951 = vadd.f32 %v1631, %v1799
  %v1952 = vadd.f32 %v1632, %v1801
  %v1953 = vadd.f32 %v1633, %v1803
  %v1954 = vadd.f32 %v1634, %v1805
  %v1955 = vadd.f32 %v1635, %v1807
  %v1956 = vadd.f32 %v1636, %v1809
  %v1957 = vadd.f32 %v1637, %v1811
  %v1958 = vadd.f32 %v1638, %v1813
  %v1959 = vadd.f32 %v1639, %v1815
  %v1960 = vadd.f32 %v1640, %v1817
  %v1961 = vadd.f32 %v1641, %v1819
  %v1962 = vadd.f32 %v1642, %v1821
  %v1963 = vadd.f32 %v1643, %v1823
  %v1964 = vadd.f32 %v1644, %v1825
  %v1965 = vadd.f32 %v1645, %v1827
  %v1966 = vadd.f32 %v1646, %v1829
  %v1967 = vadd.f32 %v1647, %v1831
  %v1968 = vadd.f32 %v1648, %v1833
  %v1969 = vadd.f32 %v1649, %v1835
  %v1970 = vadd.f32 %v1650, %v1837
  %v1971 = vadd.f32 %v1651, %v1839
  %v1972 = vadd.f32 %v1652, %v1841
  %v1973 = vadd.f32 %v1653, %v1843
  %v1974 = vadd.f32 %v1654, %v1845
  %v1975 = vadd.f32 %v1655, %v1847
  %v1976 = vmul.f32 %v1528, 1.442695
  %v1977 = vpow.pop %v1976
  %v1978 = vmul.f32 %v1529, 1.442695
  %v1979 = vpow.pop %v1978
  %v1980 = vmul.f32 %v1530, 1.442695
  %v1981 = vpow.pop %v1980
  %v1982 = vmul.f32 %v1531, 1.442695
  %v1983 = vpow.pop %v1982
  %v1984 = vmul.f32 %v1532, 1.442695
  %v1985 = vpow.pop %v1984
  %v1986 = vmul.f32 %v1533, 1.442695
  %v1987 = vpow.pop %v1986
  %v1988 = vmul.f32 %v1534, 1.442695
  %v1989 = vpow.pop %v1988
  %v1990 = vmul.f32 %v1535, 1.442695
  %v1991 = vpow.pop %v1990
  %v1992 = vmul.f32 %v1536, 1.442695
  %v1993 = vpow.pop %v1992
  %v1994 = vmul.f32 %v1537, 1.442695
  %v1995 = vpow.pop %v1994
  %v1996 = vmul.f32 %v1538, 1.442695
  %v1997 = vpow.pop %v1996
  %v1998 = vmul.f32 %v1539, 1.442695
  %v1999 = vpow.pop %v1998
  %v2000 = vmul.f32 %v1540, 1.442695
  %v2001 = vpow.pop %v2000
  %v2002 = vmul.f32 %v1541, 1.442695
  %v2003 = vpow.pop %v2002
  %v2004 = vmul.f32 %v1542, 1.442695
  %v2005 = vpow.pop %v2004
  %v2006 = vmul.f32 %v1543, 1.442695
  %v2007 = vpow.pop %v2006
  %v2008 = vmul.f32 %v1544, 1.442695
  %v2009 = vpow.pop %v2008
  %v2010 = vmul.f32 %v1545, 1.442695
  %v2011 = vpow.pop %v2010
  %v2012 = vmul.f32 %v1546, 1.442695
  %v2013 = vpow.pop %v2012
  %v2014 = vmul.f32 %v1547, 1.442695
  %v2015 = vpow.pop %v2014
  %v2016 = vmul.f32 %v1548, 1.442695
  %v2017 = vpow.pop %v2016
  %v2018 = vmul.f32 %v1549, 1.442695
  %v2019 = vpow.pop %v2018
  %v2020 = vmul.f32 %v1550, 1.442695
  %v2021 = vpow.pop %v2020
  %v2022 = vmul.f32 %v1551, 1.442695
  %v2023 = vpow.pop %v2022
  %v2024 = vmul.f32 %v1552, 1.442695
  %v2025 = vpow.pop %v2024
  %v2026 = vmul.f32 %v1553, 1.442695
  %v2027 = vpow.pop %v2026
  %v2028 = vmul.f32 %v1554, 1.442695
  %v2029 = vpow.pop %v2028
  %v2030 = vmul.f32 %v1555, 1.442695
  %v2031 = vpow.pop %v2030
  %v2032 = vmul.f32 %v1556, 1.442695
  %v2033 = vpow.pop %v2032
  %v2034 = vmul.f32 %v1557, 1.442695
  %v2035 = vpow.pop %v2034
  %v2036 = vmul.f32 %v1558, 1.442695
  %v2037 = vpow.pop %v2036
  %v2038 = vmul.f32 %v1559, 1.442695
  %v2039 = vpow.pop %v2038
  %v2040 = vmul.f32 %v1560, 1.442695
  %v2041 = vpow.pop %v2040
  %v2042 = vmul.f32 %v1561, 1.442695
  %v2043 = vpow.pop %v2042
  %v2044 = vmul.f32 %v1562, 1.442695
  %v2045 = vpow.pop %v2044
  %v2046 = vmul.f32 %v1563, 1.442695
  %v2047 = vpow.pop %v2046
  %v2048 = vmul.f32 %v1564, 1.442695
  %v2049 = vpow.pop %v2048
  %v2050 = vmul.f32 %v1565, 1.442695
  %v2051 = vpow.pop %v2050
  %v2052 = vmul.f32 %v1566, 1.442695
  %v2053 = vpow.pop %v2052
  %v2054 = vmul.f32 %v1567, 1.442695
  %v2055 = vpow.pop %v2054
  %v2056 = vmul.f32 %v1568, 1.442695
  %v2057 = vpow.pop %v2056
  %v2058 = vmul.f32 %v1569, 1.442695
  %v2059 = vpow.pop %v2058
  %v2060 = vmul.f32 %v1570, 1.442695
  %v2061 = vpow.pop %v2060
  %v2062 = vmul.f32 %v1571, 1.442695
  %v2063 = vpow.pop %v2062
  %v2064 = vmul.f32 %v1572, 1.442695
  %v2065 = vpow.pop %v2064
  %v2066 = vmul.f32 %v1573, 1.442695
  %v2067 = vpow.pop %v2066
  %v2068 = vmul.f32 %v1574, 1.442695
  %v2069 = vpow.pop %v2068
  %v2070 = vmul.f32 %v1575, 1.442695
  %v2071 = vpow.pop %v2070
  %v2072 = vmul.f32 %v1576, 1.442695
  %v2073 = vpow.pop %v2072
  %v2074 = vmul.f32 %v1577, 1.442695
  %v2075 = vpow.pop %v2074
  %v2076 = vmul.f32 %v1578, 1.442695
  %v2077 = vpow.pop %v2076
  %v2078 = vmul.f32 %v1579, 1.442695
  %v2079 = vpow.pop %v2078
  %v2080 = vmul.f32 %v1580, 1.442695
  %v2081 = vpow.pop %v2080
  %v2082 = vmul.f32 %v1581, 1.442695
  %v2083 = vpow.pop %v2082
  %v2084 = vmul.f32 %v1582, 1.442695
  %v2085 = vpow.pop %v2084
  %v2086 = vmul.f32 %v1583, 1.442695
  %v2087 = vpow.pop %v2086
  %v2088 = vmul.f32 %v1584, 1.442695
  %v2089 = vpow.pop %v2088
  %v2090 = vmul.f32 %v1585, 1.442695
  %v2091 = vpow.pop %v2090
  %v2092 = vmul.f32 %v1586, 1.442695
  %v2093 = vpow.pop %v2092
  %v2094 = vmul.f32 %v1587, 1.442695
  %v2095 = vpow.pop %v2094
  %v2096 = vmul.f32 %v1588, 1.442695
  %v2097 = vpow.pop %v2096
  %v2098 = vmul.f32 %v1589, 1.442695
  %v2099 = vpow.pop %v2098
  %v2100 = vmul.f32 %v1590, 1.442695
  %v2101 = vpow.pop %v2100
  %v2102 = vmul.f32 %v1591, 1.442695
  %v2103 = vpow.pop %v2102
  %v2104 = vmul.f32 %v1912, %v1977
  %v2105 = vmul.f32 %v1913, %v1979
  %v2106 = vmul.f32 %v1914, %v1981
  %v2107 = vmul.f32 %v1915, %v1983
  %v2108 = vmul.f32 %v1916, %v1985
  %v2109 = vmul.f32 %v1917, %v1987
  %v2110 = vmul.f32 %v1918, %v1989
  %v2111 = vmul.f32 %v1919, %v1991
  %v2112 = vmul.f32 %v1920, %v1993
  %v2113 = vmul.f32 %v1921, %v1995
  %v2114 = vmul.f32 %v1922, %v1997
  %v2115 = vmul.f32 %v1923, %v1999
  %v2116 = vmul.f32 %v1924, %v2001
  %v2117 = vmul.f32 %v1925, %v2003
  %v2118 = vmul.f32 %v1926, %v2005
  %v2119 = vmul.f32 %v1927, %v2007
  %v2120 = vmul.f32 %v1928, %v2009
  %v2121 = vmul.f32 %v1929, %v2011
  %v2122 = vmul.f32 %v1930, %v2013
  %v2123 = vmul.f32 %v1931, %v2015
  %v2124 = vmul.f32 %v1932, %v2017
  %v2125 = vmul.f32 %v1933, %v2019
  %v2126 = vmul.f32 %v1934, %v2021
  %v2127 = vmul.f32 %v1935, %v2023
  %v2128 = vmul.f32 %v1936, %v2025
  %v2129 = vmul.f32 %v1937, %v2027
  %v2130 = vmul.f32 %v1938, %v2029
  %v2131 = vmul.f32 %v1939, %v2031
  %v2132 = vmul.f32 %v1940, %v2033
  %v2133 = vmul.f32 %v1941, %v2035
  %v2134 = vmul.f32 %v1942, %v2037
  %v2135 = vmul.f32 %v1943, %v2039
  %v2136 = vmul.f32 %v1944, %v2041
  %v2137 = vmul.f32 %v1945, %v2043
  %v2138 = vmul.f32 %v1946, %v2045
  %v2139 = vmul.f32 %v1947, %v2047
  %v2140 = vmul.f32 %v1948, %v2049
  %v2141 = vmul.f32 %v1949, %v2051
  %v2142 = vmul.f32 %v1950, %v2053
  %v2143 = vmul.f32 %v1951, %v2055
  %v2144 = vmul.f32 %v1952, %v2057
  %v2145 = vmul.f32 %v1953, %v2059
  %v2146 = vmul.f32 %v1954, %v2061
  %v2147 = vmul.f32 %v1955, %v2063
  %v2148 = vmul.f32 %v1956, %v2065
  %v2149 = vmul.f32 %v1957, %v2067
  %v2150 = vmul.f32 %v1958, %v2069
  %v2151 = vmul.f32 %v1959, %v2071
  %v2152 = vmul.f32 %v1960, %v2073
  %v2153 = vmul.f32 %v1961, %v2075
  %v2154 = vmul.f32 %v1962, %v2077
  %v2155 = vmul.f32 %v1963, %v2079
  %v2156 = vmul.f32 %v1964, %v2081
  %v2157 = vmul.f32 %v1965, %v2083
  %v2158 = vmul.f32 %v1966, %v2085
  %v2159 = vmul.f32 %v1967, %v2087
  %v2160 = vmul.f32 %v1968, %v2089
  %v2161 = vmul.f32 %v1969, %v2091
  %v2162 = vmul.f32 %v1970, %v2093
  %v2163 = vmul.f32 %v1971, %v2095
  %v2164 = vmul.f32 %v1972, %v2097
  %v2165 = vmul.f32 %v1973, %v2099
  %v2166 = vmul.f32 %v1974, %v2101
  %v2167 = vmul.f32 %v1975, %v2103
  %vm2168 = vcmask 15360
  %2169 = vst.msk [vmem:[%s5] sm:$0xff] %vm2168, %v2104
  %2170 = vst.msk [vmem:[%s5 + $0x8] sm:$0xff] %vm2168, %v2105
  %2171 = vst.msk [vmem:[%s5 + $0x10] sm:$0xff] %vm2168, %v2106
  %2172 = vst.msk [vmem:[%s5 + $0x18] sm:$0xff] %vm2168, %v2107
  %2173 = vst.msk [vmem:[%s5 + $0x20] sm:$0xff] %vm2168, %v2108
  %2174 = vst.msk [vmem:[%s5 + $0x28] sm:$0xff] %vm2168, %v2109
  %2175 = vst.msk [vmem:[%s5 + $0x30] sm:$0xff] %vm2168, %v2110
  %2176 = vst.msk [vmem:[%s5 + $0x38] sm:$0xff] %vm2168, %v2111
  %2177 = vst.msk [vmem:[%s5 + $0x40] sm:$0xff] %vm2168, %v2112
  %2178 = vst.msk [vmem:[%s5 + $0x48] sm:$0xff] %vm2168, %v2113
  %2179 = vst.msk [vmem:[%s5 + $0x50] sm:$0xff] %vm2168, %v2114
  %2180 = vst.msk [vmem:[%s5 + $0x58] sm:$0xff] %vm2168, %v2115
  %2181 = vst.msk [vmem:[%s5 + $0x60] sm:$0xff] %vm2168, %v2116
  %2182 = vst.msk [vmem:[%s5 + $0x68] sm:$0xff] %vm2168, %v2117
  %2183 = vst.msk [vmem:[%s5 + $0x70] sm:$0xff] %vm2168, %v2118
  %2184 = vst.msk [vmem:[%s5 + $0x78] sm:$0xff] %vm2168, %v2119
  %2185 = vst.msk [vmem:[%s5 + $0x80] sm:$0xff] %vm2168, %v2120
  %2186 = vst.msk [vmem:[%s5 + $0x88] sm:$0xff] %vm2168, %v2121
  %2187 = vst.msk [vmem:[%s5 + $0x90] sm:$0xff] %vm2168, %v2122
  %2188 = vst.msk [vmem:[%s5 + $0x98] sm:$0xff] %vm2168, %v2123
  %2189 = vst.msk [vmem:[%s5 + $0xa0] sm:$0xff] %vm2168, %v2124
  %2190 = vst.msk [vmem:[%s5 + $0xa8] sm:$0xff] %vm2168, %v2125
  %2191 = vst.msk [vmem:[%s5 + $0xb0] sm:$0xff] %vm2168, %v2126
  %2192 = vst.msk [vmem:[%s5 + $0xb8] sm:$0xff] %vm2168, %v2127
  %2193 = vst.msk [vmem:[%s5 + $0xc0] sm:$0xff] %vm2168, %v2128
  %2194 = vst.msk [vmem:[%s5 + $0xc8] sm:$0xff] %vm2168, %v2129
  %2195 = vst.msk [vmem:[%s5 + $0xd0] sm:$0xff] %vm2168, %v2130
  %2196 = vst.msk [vmem:[%s5 + $0xd8] sm:$0xff] %vm2168, %v2131
  %2197 = vst.msk [vmem:[%s5 + $0xe0] sm:$0xff] %vm2168, %v2132
  %2198 = vst.msk [vmem:[%s5 + $0xe8] sm:$0xff] %vm2168, %v2133
  %2199 = vst.msk [vmem:[%s5 + $0xf0] sm:$0xff] %vm2168, %v2134
  %2200 = vst.msk [vmem:[%s5 + $0xf8] sm:$0xff] %vm2168, %v2135
  %2201 = vst.msk [vmem:[%s5 + $0x100] sm:$0xff] %vm2168, %v2136
  %2202 = vst.msk [vmem:[%s5 + $0x108] sm:$0xff] %vm2168, %v2137
  %2203 = vst.msk [vmem:[%s5 + $0x110] sm:$0xff] %vm2168, %v2138
  %2204 = vst.msk [vmem:[%s5 + $0x118] sm:$0xff] %vm2168, %v2139
  %2205 = vst.msk [vmem:[%s5 + $0x120] sm:$0xff] %vm2168, %v2140
  %2206 = vst.msk [vmem:[%s5 + $0x128] sm:$0xff] %vm2168, %v2141
  %2207 = vst.msk [vmem:[%s5 + $0x130] sm:$0xff] %vm2168, %v2142
  %2208 = vst.msk [vmem:[%s5 + $0x138] sm:$0xff] %vm2168, %v2143
  %2209 = vst.msk [vmem:[%s5 + $0x140] sm:$0xff] %vm2168, %v2144
  %2210 = vst.msk [vmem:[%s5 + $0x148] sm:$0xff] %vm2168, %v2145
  %2211 = vst.msk [vmem:[%s5 + $0x150] sm:$0xff] %vm2168, %v2146
  %2212 = vst.msk [vmem:[%s5 + $0x158] sm:$0xff] %vm2168, %v2147
  %2213 = vst.msk [vmem:[%s5 + $0x160] sm:$0xff] %vm2168, %v2148
  %2214 = vst.msk [vmem:[%s5 + $0x168] sm:$0xff] %vm2168, %v2149
  %2215 = vst.msk [vmem:[%s5 + $0x170] sm:$0xff] %vm2168, %v2150
  %2216 = vst.msk [vmem:[%s5 + $0x178] sm:$0xff] %vm2168, %v2151
  %2217 = vst.msk [vmem:[%s5 + $0x180] sm:$0xff] %vm2168, %v2152
  %2218 = vst.msk [vmem:[%s5 + $0x188] sm:$0xff] %vm2168, %v2153
  %2219 = vst.msk [vmem:[%s5 + $0x190] sm:$0xff] %vm2168, %v2154
  %2220 = vst.msk [vmem:[%s5 + $0x198] sm:$0xff] %vm2168, %v2155
  %2221 = vst.msk [vmem:[%s5 + $0x1a0] sm:$0xff] %vm2168, %v2156
  %2222 = vst.msk [vmem:[%s5 + $0x1a8] sm:$0xff] %vm2168, %v2157
  %2223 = vst.msk [vmem:[%s5 + $0x1b0] sm:$0xff] %vm2168, %v2158
  %2224 = vst.msk [vmem:[%s5 + $0x1b8] sm:$0xff] %vm2168, %v2159
  %2225 = vst.msk [vmem:[%s5 + $0x1c0] sm:$0xff] %vm2168, %v2160
  %2226 = vst.msk [vmem:[%s5 + $0x1c8] sm:$0xff] %vm2168, %v2161
  %2227 = vst.msk [vmem:[%s5 + $0x1d0] sm:$0xff] %vm2168, %v2162
  %2228 = vst.msk [vmem:[%s5 + $0x1d8] sm:$0xff] %vm2168, %v2163
  %2229 = vst.msk [vmem:[%s5 + $0x1e0] sm:$0xff] %vm2168, %v2164
  %2230 = vst.msk [vmem:[%s5 + $0x1e8] sm:$0xff] %vm2168, %v2165
  %2231 = vst.msk [vmem:[%s5 + $0x1f0] sm:$0xff] %vm2168, %v2166
  %2232 = vst.msk [vmem:[%s5 + $0x1f8] sm:$0xff] %vm2168, %v2167
  %v2233 = vsel %vm2168, %v1528, 0.0
  %2234 = vadd.xlane.f32.xlu0 %v2233
  %v2235 = vpop.xlane.xlu0 %2234
  %v2236 = vsel %vm2168, %v1529, 0.0
  %2237 = vadd.xlane.f32.xlu0 %v2236
  %v2238 = vpop.xlane.xlu0 %2237
  %v2239 = vsel %vm2168, %v1530, 0.0
  %2240 = vadd.xlane.f32.xlu0 %v2239
  %v2241 = vpop.xlane.xlu0 %2240
  %v2242 = vsel %vm2168, %v1531, 0.0
  %2243 = vadd.xlane.f32.xlu0 %v2242
  %v2244 = vpop.xlane.xlu0 %2243
  %v2245 = vsel %vm2168, %v1532, 0.0
  %2246 = vadd.xlane.f32.xlu0 %v2245
  %v2247 = vpop.xlane.xlu0 %2246
  %v2248 = vsel %vm2168, %v1533, 0.0
  %2249 = vadd.xlane.f32.xlu0 %v2248
  %v2250 = vpop.xlane.xlu0 %2249
  %v2251 = vsel %vm2168, %v1534, 0.0
  %2252 = vadd.xlane.f32.xlu0 %v2251
  %v2253 = vpop.xlane.xlu0 %2252
  %v2254 = vsel %vm2168, %v1535, 0.0
  %2255 = vadd.xlane.f32.xlu0 %v2254
  %v2256 = vpop.xlane.xlu0 %2255
  %v2257 = vsel %vm2168, %v1536, 0.0
  %2258 = vadd.xlane.f32.xlu0 %v2257
  %v2259 = vpop.xlane.xlu0 %2258
  %v2260 = vsel %vm2168, %v1537, 0.0
  %2261 = vadd.xlane.f32.xlu0 %v2260
  %v2262 = vpop.xlane.xlu0 %2261
  %v2263 = vsel %vm2168, %v1538, 0.0
  %2264 = vadd.xlane.f32.xlu0 %v2263
  %v2265 = vpop.xlane.xlu0 %2264
  %v2266 = vsel %vm2168, %v1539, 0.0
  %2267 = vadd.xlane.f32.xlu0 %v2266
  %v2268 = vpop.xlane.xlu0 %2267
  %v2269 = vsel %vm2168, %v1540, 0.0
  %2270 = vadd.xlane.f32.xlu0 %v2269
  %v2271 = vpop.xlane.xlu0 %2270
  %v2272 = vsel %vm2168, %v1541, 0.0
  %2273 = vadd.xlane.f32.xlu0 %v2272
  %v2274 = vpop.xlane.xlu0 %2273
  %v2275 = vsel %vm2168, %v1542, 0.0
  %2276 = vadd.xlane.f32.xlu0 %v2275
  %v2277 = vpop.xlane.xlu0 %2276
  %v2278 = vsel %vm2168, %v1543, 0.0
  %2279 = vadd.xlane.f32.xlu0 %v2278
  %v2280 = vpop.xlane.xlu0 %2279
  %v2281 = vsel %vm2168, %v1544, 0.0
  %2282 = vadd.xlane.f32.xlu0 %v2281
  %v2283 = vpop.xlane.xlu0 %2282
  %v2284 = vsel %vm2168, %v1545, 0.0
  %2285 = vadd.xlane.f32.xlu0 %v2284
  %v2286 = vpop.xlane.xlu0 %2285
  %v2287 = vsel %vm2168, %v1546, 0.0
  %2288 = vadd.xlane.f32.xlu0 %v2287
  %v2289 = vpop.xlane.xlu0 %2288
  %v2290 = vsel %vm2168, %v1547, 0.0
  %2291 = vadd.xlane.f32.xlu0 %v2290
  %v2292 = vpop.xlane.xlu0 %2291
  %v2293 = vsel %vm2168, %v1548, 0.0
  %2294 = vadd.xlane.f32.xlu0 %v2293
  %v2295 = vpop.xlane.xlu0 %2294
  %v2296 = vsel %vm2168, %v1549, 0.0
  %2297 = vadd.xlane.f32.xlu0 %v2296
  %v2298 = vpop.xlane.xlu0 %2297
  %v2299 = vsel %vm2168, %v1550, 0.0
  %2300 = vadd.xlane.f32.xlu0 %v2299
  %v2301 = vpop.xlane.xlu0 %2300
  %v2302 = vsel %vm2168, %v1551, 0.0
  %2303 = vadd.xlane.f32.xlu0 %v2302
  %v2304 = vpop.xlane.xlu0 %2303
  %v2305 = vsel %vm2168, %v1552, 0.0
  %2306 = vadd.xlane.f32.xlu0 %v2305
  %v2307 = vpop.xlane.xlu0 %2306
  %v2308 = vsel %vm2168, %v1553, 0.0
  %2309 = vadd.xlane.f32.xlu0 %v2308
  %v2310 = vpop.xlane.xlu0 %2309
  %v2311 = vsel %vm2168, %v1554, 0.0
  %2312 = vadd.xlane.f32.xlu0 %v2311
  %v2313 = vpop.xlane.xlu0 %2312
  %v2314 = vsel %vm2168, %v1555, 0.0
  %2315 = vadd.xlane.f32.xlu0 %v2314
  %v2316 = vpop.xlane.xlu0 %2315
  %v2317 = vsel %vm2168, %v1556, 0.0
  %2318 = vadd.xlane.f32.xlu0 %v2317
  %v2319 = vpop.xlane.xlu0 %2318
  %v2320 = vsel %vm2168, %v1557, 0.0
  %2321 = vadd.xlane.f32.xlu0 %v2320
  %v2322 = vpop.xlane.xlu0 %2321
  %v2323 = vsel %vm2168, %v1558, 0.0
  %2324 = vadd.xlane.f32.xlu0 %v2323
  %v2325 = vpop.xlane.xlu0 %2324
  %v2326 = vsel %vm2168, %v1559, 0.0
  %2327 = vadd.xlane.f32.xlu0 %v2326
  %v2328 = vpop.xlane.xlu0 %2327
  %v2329 = vsel %vm2168, %v1560, 0.0
  %2330 = vadd.xlane.f32.xlu0 %v2329
  %v2331 = vpop.xlane.xlu0 %2330
  %v2332 = vsel %vm2168, %v1561, 0.0
  %2333 = vadd.xlane.f32.xlu0 %v2332
  %v2334 = vpop.xlane.xlu0 %2333
  %v2335 = vsel %vm2168, %v1562, 0.0
  %2336 = vadd.xlane.f32.xlu0 %v2335
  %v2337 = vpop.xlane.xlu0 %2336
  %v2338 = vsel %vm2168, %v1563, 0.0
  %2339 = vadd.xlane.f32.xlu0 %v2338
  %v2340 = vpop.xlane.xlu0 %2339
  %v2341 = vsel %vm2168, %v1564, 0.0
  %2342 = vadd.xlane.f32.xlu0 %v2341
  %v2343 = vpop.xlane.xlu0 %2342
  %v2344 = vsel %vm2168, %v1565, 0.0
  %2345 = vadd.xlane.f32.xlu0 %v2344
  %v2346 = vpop.xlane.xlu0 %2345
  %v2347 = vsel %vm2168, %v1566, 0.0
  %2348 = vadd.xlane.f32.xlu0 %v2347
  %v2349 = vpop.xlane.xlu0 %2348
  %v2350 = vsel %vm2168, %v1567, 0.0
  %2351 = vadd.xlane.f32.xlu0 %v2350
  %v2352 = vpop.xlane.xlu0 %2351
  %v2353 = vsel %vm2168, %v1568, 0.0
  %2354 = vadd.xlane.f32.xlu0 %v2353
  %v2355 = vpop.xlane.xlu0 %2354
  %v2356 = vsel %vm2168, %v1569, 0.0
  %2357 = vadd.xlane.f32.xlu0 %v2356
  %v2358 = vpop.xlane.xlu0 %2357
  %v2359 = vsel %vm2168, %v1570, 0.0
  %2360 = vadd.xlane.f32.xlu0 %v2359
  %v2361 = vpop.xlane.xlu0 %2360
  %v2362 = vsel %vm2168, %v1571, 0.0
  %2363 = vadd.xlane.f32.xlu0 %v2362
  %v2364 = vpop.xlane.xlu0 %2363
  %v2365 = vsel %vm2168, %v1572, 0.0
  %2366 = vadd.xlane.f32.xlu0 %v2365
  %v2367 = vpop.xlane.xlu0 %2366
  %v2368 = vsel %vm2168, %v1573, 0.0
  %2369 = vadd.xlane.f32.xlu0 %v2368
  %v2370 = vpop.xlane.xlu0 %2369
  %v2371 = vsel %vm2168, %v1574, 0.0
  %2372 = vadd.xlane.f32.xlu0 %v2371
  %v2373 = vpop.xlane.xlu0 %2372
  %v2374 = vsel %vm2168, %v1575, 0.0
  %2375 = vadd.xlane.f32.xlu0 %v2374
  %v2376 = vpop.xlane.xlu0 %2375
  %v2377 = vsel %vm2168, %v1576, 0.0
  %2378 = vadd.xlane.f32.xlu0 %v2377
  %v2379 = vpop.xlane.xlu0 %2378
  %v2380 = vsel %vm2168, %v1577, 0.0
  %2381 = vadd.xlane.f32.xlu0 %v2380
  %v2382 = vpop.xlane.xlu0 %2381
  %v2383 = vsel %vm2168, %v1578, 0.0
  %2384 = vadd.xlane.f32.xlu0 %v2383
  %v2385 = vpop.xlane.xlu0 %2384
  %v2386 = vsel %vm2168, %v1579, 0.0
  %2387 = vadd.xlane.f32.xlu0 %v2386
  %v2388 = vpop.xlane.xlu0 %2387
  %v2389 = vsel %vm2168, %v1580, 0.0
  %2390 = vadd.xlane.f32.xlu0 %v2389
  %v2391 = vpop.xlane.xlu0 %2390
  %v2392 = vsel %vm2168, %v1581, 0.0
  %2393 = vadd.xlane.f32.xlu0 %v2392
  %v2394 = vpop.xlane.xlu0 %2393
  %v2395 = vsel %vm2168, %v1582, 0.0
  %2396 = vadd.xlane.f32.xlu0 %v2395
  %v2397 = vpop.xlane.xlu0 %2396
  %v2398 = vsel %vm2168, %v1583, 0.0
  %2399 = vadd.xlane.f32.xlu0 %v2398
  %v2400 = vpop.xlane.xlu0 %2399
  %v2401 = vsel %vm2168, %v1584, 0.0
  %2402 = vadd.xlane.f32.xlu0 %v2401
  %v2403 = vpop.xlane.xlu0 %2402
  %v2404 = vsel %vm2168, %v1585, 0.0
  %2405 = vadd.xlane.f32.xlu0 %v2404
  %v2406 = vpop.xlane.xlu0 %2405
  %v2407 = vsel %vm2168, %v1586, 0.0
  %2408 = vadd.xlane.f32.xlu0 %v2407
  %v2409 = vpop.xlane.xlu0 %2408
  %v2410 = vsel %vm2168, %v1587, 0.0
  %2411 = vadd.xlane.f32.xlu0 %v2410
  %v2412 = vpop.xlane.xlu0 %2411
  %v2413 = vsel %vm2168, %v1588, 0.0
  %2414 = vadd.xlane.f32.xlu0 %v2413
  %v2415 = vpop.xlane.xlu0 %2414
  %v2416 = vsel %vm2168, %v1589, 0.0
  %2417 = vadd.xlane.f32.xlu0 %v2416
  %v2418 = vpop.xlane.xlu0 %2417
  %v2419 = vsel %vm2168, %v1590, 0.0
  %2420 = vadd.xlane.f32.xlu0 %v2419
  %v2421 = vpop.xlane.xlu0 %2420
  %v2422 = vsel %vm2168, %v1591, 0.0
  %2423 = vadd.xlane.f32.xlu0 %v2422
  %v2424 = vpop.xlane.xlu0 %2423
  %vm2425 = vcmask 7168
  %2426 = vst.msk [vmem:[%s6] sm:$0xff] %vm2425, %v2235
  %2427 = vst.msk [vmem:[%s6 + $0x8] sm:$0xff] %vm2425, %v2238
  %2428 = vst.msk [vmem:[%s6 + $0x10] sm:$0xff] %vm2425, %v2241
  %2429 = vst.msk [vmem:[%s6 + $0x18] sm:$0xff] %vm2425, %v2244
  %2430 = vst.msk [vmem:[%s6 + $0x20] sm:$0xff] %vm2425, %v2247
  %2431 = vst.msk [vmem:[%s6 + $0x28] sm:$0xff] %vm2425, %v2250
  %2432 = vst.msk [vmem:[%s6 + $0x30] sm:$0xff] %vm2425, %v2253
  %2433 = vst.msk [vmem:[%s6 + $0x38] sm:$0xff] %vm2425, %v2256
  %2434 = vst.msk [vmem:[%s6 + $0x40] sm:$0xff] %vm2425, %v2259
  %2435 = vst.msk [vmem:[%s6 + $0x48] sm:$0xff] %vm2425, %v2262
  %2436 = vst.msk [vmem:[%s6 + $0x50] sm:$0xff] %vm2425, %v2265
  %2437 = vst.msk [vmem:[%s6 + $0x58] sm:$0xff] %vm2425, %v2268
  %2438 = vst.msk [vmem:[%s6 + $0x60] sm:$0xff] %vm2425, %v2271
  %2439 = vst.msk [vmem:[%s6 + $0x68] sm:$0xff] %vm2425, %v2274
  %2440 = vst.msk [vmem:[%s6 + $0x70] sm:$0xff] %vm2425, %v2277
  %2441 = vst.msk [vmem:[%s6 + $0x78] sm:$0xff] %vm2425, %v2280
  %2442 = vst.msk [vmem:[%s6 + $0x80] sm:$0xff] %vm2425, %v2283
  %2443 = vst.msk [vmem:[%s6 + $0x88] sm:$0xff] %vm2425, %v2286
  %2444 = vst.msk [vmem:[%s6 + $0x90] sm:$0xff] %vm2425, %v2289
  %2445 = vst.msk [vmem:[%s6 + $0x98] sm:$0xff] %vm2425, %v2292
  %2446 = vst.msk [vmem:[%s6 + $0xa0] sm:$0xff] %vm2425, %v2295
  %2447 = vst.msk [vmem:[%s6 + $0xa8] sm:$0xff] %vm2425, %v2298
  %2448 = vst.msk [vmem:[%s6 + $0xb0] sm:$0xff] %vm2425, %v2301
  %2449 = vst.msk [vmem:[%s6 + $0xb8] sm:$0xff] %vm2425, %v2304
  %2450 = vst.msk [vmem:[%s6 + $0xc0] sm:$0xff] %vm2425, %v2307
  %2451 = vst.msk [vmem:[%s6 + $0xc8] sm:$0xff] %vm2425, %v2310
  %2452 = vst.msk [vmem:[%s6 + $0xd0] sm:$0xff] %vm2425, %v2313
  %2453 = vst.msk [vmem:[%s6 + $0xd8] sm:$0xff] %vm2425, %v2316
  %2454 = vst.msk [vmem:[%s6 + $0xe0] sm:$0xff] %vm2425, %v2319
  %2455 = vst.msk [vmem:[%s6 + $0xe8] sm:$0xff] %vm2425, %v2322
  %2456 = vst.msk [vmem:[%s6 + $0xf0] sm:$0xff] %vm2425, %v2325
  %2457 = vst.msk [vmem:[%s6 + $0xf8] sm:$0xff] %vm2425, %v2328
  %2458 = vst.msk [vmem:[%s6 + $0x100] sm:$0xff] %vm2425, %v2331
  %2459 = vst.msk [vmem:[%s6 + $0x108] sm:$0xff] %vm2425, %v2334
  %2460 = vst.msk [vmem:[%s6 + $0x110] sm:$0xff] %vm2425, %v2337
  %2461 = vst.msk [vmem:[%s6 + $0x118] sm:$0xff] %vm2425, %v2340
  %2462 = vst.msk [vmem:[%s6 + $0x120] sm:$0xff] %vm2425, %v2343
  %2463 = vst.msk [vmem:[%s6 + $0x128] sm:$0xff] %vm2425, %v2346
  %2464 = vst.msk [vmem:[%s6 + $0x130] sm:$0xff] %vm2425, %v2349
  %2465 = vst.msk [vmem:[%s6 + $0x138] sm:$0xff] %vm2425, %v2352
  %2466 = vst.msk [vmem:[%s6 + $0x140] sm:$0xff] %vm2425, %v2355
  %2467 = vst.msk [vmem:[%s6 + $0x148] sm:$0xff] %vm2425, %v2358
  %2468 = vst.msk [vmem:[%s6 + $0x150] sm:$0xff] %vm2425, %v2361
  %2469 = vst.msk [vmem:[%s6 + $0x158] sm:$0xff] %vm2425, %v2364
  %2470 = vst.msk [vmem:[%s6 + $0x160] sm:$0xff] %vm2425, %v2367
  %2471 = vst.msk [vmem:[%s6 + $0x168] sm:$0xff] %vm2425, %v2370
  %2472 = vst.msk [vmem:[%s6 + $0x170] sm:$0xff] %vm2425, %v2373
  %2473 = vst.msk [vmem:[%s6 + $0x178] sm:$0xff] %vm2425, %v2376
  %2474 = vst.msk [vmem:[%s6 + $0x180] sm:$0xff] %vm2425, %v2379
  %2475 = vst.msk [vmem:[%s6 + $0x188] sm:$0xff] %vm2425, %v2382
  %2476 = vst.msk [vmem:[%s6 + $0x190] sm:$0xff] %vm2425, %v2385
  %2477 = vst.msk [vmem:[%s6 + $0x198] sm:$0xff] %vm2425, %v2388
  %2478 = vst.msk [vmem:[%s6 + $0x1a0] sm:$0xff] %vm2425, %v2391
  %2479 = vst.msk [vmem:[%s6 + $0x1a8] sm:$0xff] %vm2425, %v2394
  %2480 = vst.msk [vmem:[%s6 + $0x1b0] sm:$0xff] %vm2425, %v2397
  %2481 = vst.msk [vmem:[%s6 + $0x1b8] sm:$0xff] %vm2425, %v2400
  %2482 = vst.msk [vmem:[%s6 + $0x1c0] sm:$0xff] %vm2425, %v2403
  %2483 = vst.msk [vmem:[%s6 + $0x1c8] sm:$0xff] %vm2425, %v2406
  %2484 = vst.msk [vmem:[%s6 + $0x1d0] sm:$0xff] %vm2425, %v2409
  %2485 = vst.msk [vmem:[%s6 + $0x1d8] sm:$0xff] %vm2425, %v2412
  %2486 = vst.msk [vmem:[%s6 + $0x1e0] sm:$0xff] %vm2425, %v2415
  %2487 = vst.msk [vmem:[%s6 + $0x1e8] sm:$0xff] %vm2425, %v2418
  %2488 = vst.msk [vmem:[%s6 + $0x1f0] sm:$0xff] %vm2425, %v2421
  %2489 = vst.msk [vmem:[%s6 + $0x1f8] sm:$0xff] %vm2425, %v2424
  // Predicated region
  $region22: #{_lambda_.5} parent=0 // pred_check
    _
  $region23: #{_lambda_.5} parent=0 // pred_check_branch
    %2491 = sbr.rel (0) target = $region25
  $region24: #{_lambda_.5} parent=0 // pred_region
    _
  $region25: #{_lambda_.5} parent=0 // pred_fallthru
    _
  // Predicated region
  $region26: #{_lambda_.5} parent=0 // pred_check
    _
  $region27: #{_lambda_.5} parent=0 // pred_check_branch
    %2493 = sbr.rel (0) target = $region29
  $region28: #{_lambda_.5} parent=0 // pred_region
    _
  $region29: #{_lambda_.5} parent=0 // pred_fallthru
    _
  // Predicated region
  $region30: #{_lambda_.5} parent=0 // pred_check
    _
  $region31: #{_lambda_.5} parent=0 // pred_check_branch
    %2495 = sbr.rel (0) target = $region33
  $region32: #{_lambda_.5} parent=0 // pred_region
    _
  $region33: #{_lambda_.5} parent=0 // pred_fallthru
    _
  // Predicated region
  $region34: #{_lambda_.5} parent=0 // pred_check
    _
  $region35: #{_lambda_.5} parent=0 // pred_check_branch
    %2497 = sbr.rel (0) target = $region37
  $region36: #{_lambda_.5} parent=0 // pred_region
    _
  $region37: #{_lambda_.5} parent=0 // pred_fallthru
    _

</llo_original>
